<compile_context>
chip_gen: v7x
topology: tpu7x:2x2x1
jax: 0.10.0
libtpu: 0.0.40
codegen_flags: <defaults>
</compile_context>

<pallas_src>
import functools

import jax
import jax.numpy as jnp
from jax import lax
from jax.experimental import pallas as pl
from jax.experimental.pallas import tpu as pltpu


_PARAM_ORDER = ("wq", "wk", "wv", "wo", "bo",
                "g1", "b1", "g2", "b2",
                "w1", "bf1", "w2", "bf2")


def _layernorm(x, gamma, beta, eps=1e-5):
    mu = jnp.mean(x, axis=-1, keepdims=True)
    var = jnp.mean((x - mu) ** 2, axis=-1, keepdims=True)
    return (x - mu) * jax.lax.rsqrt(var + eps) * gamma + beta


def block_kernel(
    x_ref,        # (1, T, C)  f32  : full sequence (residual source + K/V source)
    wq_ref,       # (n_head, C, hs)  bf16  head-major Q projection
    wk_ref,       # (n_head, C, hs)  bf16  head-major K projection
    wv_ref,       # (n_head, C, hs)  bf16  head-major V projection
    wo_ref,       # (n_head, hs, C)  bf16  head-major output projection
    bo_ref,       # (1, C)   f32
    g1_ref, b1_ref, g2_ref, b2_ref,   # (1, C) f32 layernorm params
    w1_ref,       # (C, 4C)  bf16
    bf1_ref,      # (1, 4C)  f32
    w2_ref,       # (4C, C)  bf16
    bf2_ref,      # (1, C)   f32
    o_ref,        # (1, tq, C) f32
    k_sc,         # VMEM (n_head, T, hs) bf16 : persistent per-batch K (head-major)
    v_sc,         # VMEM (n_head, T, hs) bf16 : persistent per-batch V (head-major)
    *, n_head, head_size, tq,
):
    bf16 = jnp.bfloat16
    C = n_head * head_size
    qi = pl.program_id(1)

    g1 = g1_ref[...]
    b1 = b1_ref[...]

    # ---- once per batch element: ln1 + K/V projections over the full sequence ----
    @pl.when(qi == 0)
    def _():
        h_kv = _layernorm(x_ref[0], g1, b1).astype(bf16)                  # (T, C)

        def kv_body(h, carry):
            k_sc[h] = jnp.dot(h_kv, wk_ref[h],
                              preferred_element_type=jnp.float32).astype(bf16)
            v_sc[h] = jnp.dot(h_kv, wv_ref[h],
                              preferred_element_type=jnp.float32).astype(bf16)
            return carry

        lax.fori_loop(0, n_head, kv_body, 0)

    # ---- query / residual tile for this grid step ----
    row0 = pl.multiple_of(qi * tq, tq)
    x_t = x_ref[0, pl.ds(row0, tq), :]                                    # (tq, C) f32
    h_q = _layernorm(x_t, g1, b1).astype(bf16)                            # (tq, C) bf16

    scale = head_size ** -0.5

    def attn_body(h, sa_acc):
        q_h = jnp.dot(h_q, wq_ref[h], preferred_element_type=jnp.float32)
        q_h = (q_h * scale).astype(bf16)                                  # (tq, hs)
        k_h = k_sc[h]                                                     # (T, hs) bf16
        v_h = v_sc[h]                                                     # (T, hs) bf16
        # scores: contract the head dim of q and k directly (no explicit transpose)
        s = lax.dot_general(q_h, k_h, (((1,), (1,)), ((), ())),
                            preferred_element_type=jnp.float32)           # (tq, T)
        s = s - jnp.max(s, axis=-1, keepdims=True)
        p = jnp.exp(s)
        denom = jnp.sum(p, axis=-1, keepdims=True)                        # (tq, 1)
        pv = jnp.dot(p.astype(bf16), v_h,
                     preferred_element_type=jnp.float32)                  # (tq, hs)
        # deferred softmax normalization: hs-wide multiply, reciprocal on the EUP slot
        pv = pv * pl.reciprocal(denom, approx=True)
        # fold this head straight into the output projection (no concat / masked stores)
        return sa_acc + jnp.dot(pv.astype(bf16), wo_ref[h],
                                preferred_element_type=jnp.float32)       # (tq, C)

    sa = lax.fori_loop(0, n_head, attn_body, jnp.zeros((tq, C), jnp.float32))
    sa = sa + bo_ref[...]
    x1 = x_t + sa                                  # attention dropout -> identity (eval)

    # ---- ln2 + feed-forward ----
    h2 = _layernorm(x1, g2_ref[...], b2_ref[...]).astype(bf16)
    hid = jnp.maximum(
        jnp.dot(h2, w1_ref[...], preferred_element_type=jnp.float32) + bf1_ref[...], 0.0)
    ff = jnp.dot(hid.astype(bf16), w2_ref[...],
                 preferred_element_type=jnp.float32) + bf2_ref[...]
    o_ref[0] = x1 + ff                             # ffwd dropout -> identity (eval)


def transformer_block(x, params, *, n_head, tq=None):
    B, T, C = x.shape
    assert C % n_head == 0
    head_size = C // n_head

    # Query-tile heuristic: 256-row tiles fill the 256-wide MXU on v6e/v7x; fall back
    # to 128 or the full sequence for short / non-aligned T.
    if tq is None:
        if T % 256 == 0 and T > 256:
            tq = 256
        elif T % 128 == 0 and T > 128:
            tq = 128
        else:
            tq = T
    assert T % tq == 0
    n_qt = T // tq

    kernel = functools.partial(block_kernel, n_head=n_head,
                               head_size=head_size, tq=tq)

    # Advisory cost estimate (K/V projections counted once per batch; x read once per batch).
    flops = int(
        2 * B * T * C * (2 * C)                   # K + V projections (once per batch)
        + 2 * B * T * C * C                       # Q projection
        + 4 * B * n_head * T * T * head_size      # scores + PV
        + 2 * B * T * C * C                       # output projection
        + 16 * B * T * C * C                      # feed-forward (C<->4C, twice)
    )
    transcendentals = int(B * n_head * T * T + B * T * (2 + n_head))
    w_bytes = sum(int(v.size) * int(v.dtype.itemsize) for v in params.values())
    bytes_accessed = int(4 * B * T * C * 2 + w_bytes)   # x read + out write + weights

    def build_and_call(single_buffer_resident):
        if single_buffer_resident:
            def resident(arr):
                nd = arr.ndim
                return pl.BlockSpec(arr.shape, lambda *_a, _nd=nd: (0,) * _nd,
                                    pipeline_mode=pl.Buffered(1))
            x_spec = pl.BlockSpec((1, T, C), lambda b, qi: (b, 0, 0),
                                  pipeline_mode=pl.Buffered(1))
        else:
            def resident(arr):
                nd = arr.ndim
                return pl.BlockSpec(arr.shape, lambda *_a, _nd=nd: (0,) * _nd)
            x_spec = pl.BlockSpec((1, T, C), lambda b, qi: (b, 0, 0))

        in_specs = [x_spec] + [resident(params[k]) for k in _PARAM_ORDER]

        return pl.pallas_call(
            kernel,
            out_shape=jax.ShapeDtypeStruct((B, T, C), jnp.float32),
            grid_spec=pltpu.PrefetchScalarGridSpec(
                num_scalar_prefetch=0,
                grid=(B, n_qt),
                in_specs=in_specs,
                out_specs=pl.BlockSpec((1, tq, C), lambda b, qi: (b, qi, 0)),
                scratch_shapes=[
                    pltpu.VMEM((n_head, T, head_size), jnp.bfloat16),  # K (per-batch persistent)
                    pltpu.VMEM((n_head, T, head_size), jnp.bfloat16),  # V (per-batch persistent)
                ],
            ),
            compiler_params=pltpu.CompilerParams(
                # b independent (megacore), qi sequential so the per-batch K/V scratch
                # computed at qi == 0 persists across query tiles.
                dimension_semantics=("parallel", "arbitrary"),
                # leave headroom below v7x's 64 MiB physical VMEM
                vmem_limit_bytes=48 * 1024 * 1024,
            ),
            cost_estimate=pl.CostEstimate(
                flops=flops, transcendentals=transcendentals,
                bytes_accessed=bytes_accessed),
        )(x, *(params[k] for k in _PARAM_ORDER))

    try:
        out = build_and_call(True)
        return jax.block_until_ready(out)
    except Exception:
        # TODO(synk): fallback for jax builds where BlockSpec.pipeline_mode isn't plumbed
        # through the top-level TPU pipeline; identical math, default double buffering.
        return build_and_call(False)


def reference_block(x, p, *, n_head):
    """Pure-JAX reference with the same bf16-matmul / f32-accumulate numerics."""
    B, T, C = x.shape
    hs = C // n_head
    bf16 = jnp.bfloat16

    h = _layernorm(x, p["g1"], p["b1"]).astype(bf16)
    q = jnp.dot(h, p["wq"], preferred_element_type=jnp.float32)
    k = jnp.dot(h, p["wk"], preferred_element_type=jnp.float32)
    v = jnp.dot(h, p["wv"], preferred_element_type=jnp.float32)

    q = (q * (hs ** -0.5)).reshape(B, T, n_head, hs).transpose(0, 2, 1, 3)
    k = k.reshape(B, T, n_head, hs).transpose(0, 2, 1, 3)
    v = v.reshape(B, T, n_head, hs).transpose(0, 2, 1, 3)
    s = jnp.einsum("bhqd,bhkd->bhqk", q.astype(bf16), k.astype(bf16),
                   preferred_element_type=jnp.float32)
    pr = jax.nn.softmax(s, axis=-1)
    att = jnp.einsum("bhqk,bhkd->bhqd", pr.astype(bf16), v.astype(bf16),
                     preferred_element_type=jnp.float32)
    att = att.transpose(0, 2, 1, 3).reshape(B, T, C)

    sa = jnp.dot(att.astype(bf16), p["wo"],
                 preferred_element_type=jnp.float32) + p["bo"]
    x1 = x + sa

    h2 = _layernorm(x1, p["g2"], p["b2"]).astype(bf16)
    hid = jnp.maximum(
        jnp.dot(h2, p["w1"], preferred_element_type=jnp.float32) + p["bf1"], 0.0)
    ff = jnp.dot(hid.astype(bf16), p["w2"],
                 preferred_element_type=jnp.float32) + p["bf2"]
    return x1 + ff


if __name__ == "__main__":
    B, T, C = 2, 8, 32
    n_head = 4
    hs = C // n_head

    key = jax.random.PRNGKey(0)
    keys = jax.random.split(key, 10)
    w_scale = 0.02

    wq = w_scale * jax.random.normal(keys[0], (C, C), jnp.float32)
    wk = w_scale * jax.random.normal(keys[1], (C, C), jnp.float32)
    wv = w_scale * jax.random.normal(keys[2], (C, C), jnp.float32)
    wo = w_scale * jax.random.normal(keys[3], (C, C), jnp.float32)
    bo = w_scale * jax.random.normal(keys[4], (1, C), jnp.float32)
    w1 = w_scale * jax.random.normal(keys[5], (C, 4 * C), jnp.float32)
    bf1 = w_scale * jax.random.normal(keys[6], (1, 4 * C), jnp.float32)
    w2 = w_scale * jax.random.normal(keys[7], (4 * C, C), jnp.float32)
    bf2 = w_scale * jax.random.normal(keys[8], (1, C), jnp.float32)

    bf16 = jnp.bfloat16
    wq_bf, wk_bf, wv_bf, wo_bf = (w.astype(bf16) for w in (wq, wk, wv, wo))

    def cols_head_major(w):      # (C, C) -> (n_head, C, hs): per-head output columns
        return w.reshape(C, n_head, hs).transpose(1, 0, 2)

    # Kernel params: head-major bf16 attention weights, bf16 FFN weights, f32 biases / LN.
    params = {
        "wq": cols_head_major(wq_bf),
        "wk": cols_head_major(wk_bf),
        "wv": cols_head_major(wv_bf),
        "wo": wo_bf.reshape(n_head, hs, C),
        "bo": bo,
        "g1": jnp.ones((1, C), jnp.float32),
        "b1": jnp.zeros((1, C), jnp.float32),
        "g2": jnp.ones((1, C), jnp.float32),
        "b2": jnp.zeros((1, C), jnp.float32),
        "w1": w1.astype(bf16),
        "bf1": bf1,
        "w2": w2.astype(bf16),
        "bf2": bf2,
    }
    # Reference params: same bf16 values, flat (C_in, C_out) layout.
    ref_params = {
        "wq": wq_bf, "wk": wk_bf, "wv": wv_bf, "wo": wo_bf, "bo": bo,
        "g1": params["g1"], "b1": params["b1"],
        "g2": params["g2"], "b2": params["b2"],
        "w1": params["w1"], "bf1": bf1, "w2": params["w2"], "bf2": bf2,
    }

    x = jax.random.normal(keys[9], (B, T, C), jnp.float32)

    out = jax.block_until_ready(transformer_block(x, params, n_head=n_head))
    ref = reference_block(x, ref_params, n_head=n_head)

    assert out.shape == (B, T, C)
    assert out.dtype == jnp.float32
    # bf16 matmuls + approx softmax reciprocal -> modest tolerance vs. the
    # numerics-matched reference.
    assert jnp.allclose(out, ref, atol=1e-2, rtol=1e-2), "mismatch vs reference"

    print("KERNEL_OK")
</pallas_src>

<mosaic_0001>
module attributes {stable_mosaic.version = 11 : i64} {
  func.func @block_kernel(%arg0: i32, %arg1: i32, %arg2: memref<1x8x32xf32, #tpu.memory_space<vmem>>, %arg3: memref<4x32x8xbf16, #tpu.memory_space<vmem>>, %arg4: memref<4x32x8xbf16, #tpu.memory_space<vmem>>, %arg5: memref<4x32x8xbf16, #tpu.memory_space<vmem>>, %arg6: memref<4x8x32xbf16, #tpu.memory_space<vmem>>, %arg7: memref<1x32xf32, #tpu.memory_space<vmem>>, %arg8: memref<1x32xf32, #tpu.memory_space<vmem>>, %arg9: memref<1x32xf32, #tpu.memory_space<vmem>>, %arg10: memref<1x32xf32, #tpu.memory_space<vmem>>, %arg11: memref<1x32xf32, #tpu.memory_space<vmem>>, %arg12: memref<32x128xbf16, #tpu.memory_space<vmem>>, %arg13: memref<1x128xf32, #tpu.memory_space<vmem>>, %arg14: memref<128x32xbf16, #tpu.memory_space<vmem>>, %arg15: memref<1x32xf32, #tpu.memory_space<vmem>>, %arg16: memref<1x8x32xf32, #tpu.memory_space<vmem>>, %arg17: memref<4x8x8xbf16, #tpu.memory_space<vmem>>, %arg18: memref<4x8x8xbf16, #tpu.memory_space<vmem>>) attributes {dimension_semantics = [#tpu.dimension_semantics<parallel>, #tpu.dimension_semantics<arbitrary>], iteration_bounds = array<i64: 2, 1>, scalar_prefetch = 0 : i64, scratch_operands = 2 : i64, tpu.core_type = #tpu.core_type<tc>, window_params = [{pipeline_mode = #tpu.pipeline_mode<synchronous>, transform_indices = @transform_0, window_bounds = array<i64: 1, 8, 32>}, {pipeline_mode = #tpu.pipeline_mode<synchronous>, transform_indices = @transform_1, window_bounds = array<i64: 4, 32, 8>}, {pipeline_mode = #tpu.pipeline_mode<synchronous>, transform_indices = @transform_2, window_bounds = array<i64: 4, 32, 8>}, {pipeline_mode = #tpu.pipeline_mode<synchronous>, transform_indices = @transform_3, window_bounds = array<i64: 4, 32, 8>}, {pipeline_mode = #tpu.pipeline_mode<synchronous>, transform_indices = @transform_4, window_bounds = array<i64: 4, 8, 32>}, {pipeline_mode = #tpu.pipeline_mode<synchronous>, transform_indices = @transform_5, window_bounds = array<i64: 1, 32>}, {pipeline_mode = #tpu.pipeline_mode<synchronous>, transform_indices = @transform_6, window_bounds = array<i64: 1, 32>}, {pipeline_mode = #tpu.pipeline_mode<synchronous>, transform_indices = @transform_7, window_bounds = array<i64: 1, 32>}, {pipeline_mode = #tpu.pipeline_mode<synchronous>, transform_indices = @transform_8, window_bounds = array<i64: 1, 32>}, {pipeline_mode = #tpu.pipeline_mode<synchronous>, transform_indices = @transform_9, window_bounds = array<i64: 1, 32>}, {pipeline_mode = #tpu.pipeline_mode<synchronous>, transform_indices = @transform_10, window_bounds = array<i64: 32, 128>}, {pipeline_mode = #tpu.pipeline_mode<synchronous>, transform_indices = @transform_11, window_bounds = array<i64: 1, 128>}, {pipeline_mode = #tpu.pipeline_mode<synchronous>, transform_indices = @transform_12, window_bounds = array<i64: 128, 32>}, {pipeline_mode = #tpu.pipeline_mode<synchronous>, transform_indices = @transform_13, window_bounds = array<i64: 1, 32>}, {transform_indices = @transform_14, window_bounds = array<i64: 1, 8, 32>}]} {
    %c0 = arith.constant 0 : index
    %c0_0 = arith.constant 0 : index
    %0 = vector.load %arg8[%c0, %c0_0] : memref<1x32xf32, #tpu.memory_space<vmem>>, vector<1x32xf32>
    %c0_1 = arith.constant 0 : index
    %c0_2 = arith.constant 0 : index
    %1 = vector.load %arg9[%c0_1, %c0_2] : memref<1x32xf32, #tpu.memory_space<vmem>>, vector<1x32xf32>
    %c0_i32 = arith.constant 0 : i32
    %2 = arith.cmpi eq, %arg1, %c0_i32 : i32
    %3 = arith.extui %2 : i1 to i32
    %c0_i32_3 = arith.constant 0 : i32
    %4 = arith.cmpi ne, %3, %c0_i32_3 : i32
    scf.if %4 {
      %c0_38 = arith.constant 0 : index
      %c0_39 = arith.constant 0 : index
      %c0_40 = arith.constant 0 : index
      %82 = vector.load %arg2[%c0_38, %c0_39, %c0_40] : memref<1x8x32xf32, #tpu.memory_space<vmem>>, vector<1x8x32xf32>
      %83 = vector.shape_cast %82 : vector<1x8x32xf32> to vector<8x32xf32>
      %cst_41 = arith.constant dense<0.000000e+00> : vector<8xf32>
      %84 = vector.multi_reduction <add>, %83, %cst_41 [1] : vector<8x32xf32> to vector<8xf32>
      %85 = vector.shape_cast %84 : vector<8xf32> to vector<8x1xf32>
      %cst_42 = arith.constant 3.200000e+01 : f32
      %86 = vector.broadcast %cst_42 : f32 to vector<8x1xf32>
      %87 = arith.divf %85, %86 : vector<8x1xf32>
      %88 = vector.broadcast %87 : vector<8x1xf32> to vector<8x32xf32>
      %89 = arith.subf %83, %88 : vector<8x32xf32>
      %90 = arith.mulf %89, %89 : vector<8x32xf32>
      %cst_43 = arith.constant dense<0.000000e+00> : vector<8xf32>
      %91 = vector.multi_reduction <add>, %90, %cst_43 [1] : vector<8x32xf32> to vector<8xf32>
      %92 = vector.shape_cast %91 : vector<8xf32> to vector<8x1xf32>
      %cst_44 = arith.constant 3.200000e+01 : f32
      %93 = vector.broadcast %cst_44 : f32 to vector<8x1xf32>
      %94 = arith.divf %92, %93 : vector<8x1xf32>
      %95 = vector.broadcast %87 : vector<8x1xf32> to vector<8x32xf32>
      %96 = arith.subf %83, %95 : vector<8x32xf32>
      %cst_45 = arith.constant 9.99999974E-6 : f32
      %97 = vector.broadcast %cst_45 : f32 to vector<8x1xf32>
      %98 = arith.addf %94, %97 : vector<8x1xf32>
      %99 = math.rsqrt %98 : vector<8x1xf32>
      %100 = vector.broadcast %99 : vector<8x1xf32> to vector<8x32xf32>
      %101 = arith.mulf %96, %100 : vector<8x32xf32>
      %102 = vector.broadcast %0 : vector<1x32xf32> to vector<8x32xf32>
      %103 = arith.mulf %101, %102 : vector<8x32xf32>
      %104 = vector.broadcast %1 : vector<1x32xf32> to vector<8x32xf32>
      %105 = arith.addf %103, %104 : vector<8x32xf32>
      %106 = arith.truncf %105 : vector<8x32xf32> to vector<8x32xbf16>
      %c0_i32_46 = arith.constant 0 : i32
      %c4_i32_47 = arith.constant 4 : i32
      %107 = arith.addi %c0_i32_46, %c4_i32_47 : i32
      %c1_i32_48 = arith.constant 1 : i32
      scf.for %arg19 = %c0_i32_46 to %107 step %c1_i32_48  : i32 {
        %108 = arith.index_cast %arg19 : i32 to index
        %c0_50 = arith.constant 0 : index
        %c0_51 = arith.constant 0 : index
        %109 = vector.load %arg4[%108, %c0_50, %c0_51] : memref<4x32x8xbf16, #tpu.memory_space<vmem>>, vector<1x32x8xbf16>
        %110 = vector.shape_cast %109 : vector<1x32x8xbf16> to vector<32x8xbf16>
        %cst_52 = arith.constant dense<0.000000e+00> : vector<8x8xf32>
        %111 = tpu.matmul %106, %110, %cst_52 {dimension_numbers = #tpu.dot_dimension_numbers<[1], [0], [0], [1], [0, 0, 1, 1], [], []>} : vector<8x32xbf16>, vector<32x8xbf16>, vector<8x8xf32> -> vector<8x8xf32>
        %112 = arith.truncf %111 : vector<8x8xf32> to vector<8x8xbf16>
        %113 = arith.index_cast %arg19 : i32 to index
        %c0_53 = arith.constant 0 : index
        %c0_54 = arith.constant 0 : index
        %114 = vector.load %arg17[%113, %c0_53, %c0_54] : memref<4x8x8xbf16, #tpu.memory_space<vmem>>, vector<1x8x8xbf16>
        %115 = vector.shape_cast %114 : vector<1x8x8xbf16> to vector<8x8xbf16>
        %116 = vector.shape_cast %112 : vector<8x8xbf16> to vector<1x8x8xbf16>
        tpu.vector_store %arg17[%113, %c0_53, %c0_54], %116 {strides = array<i32>} : memref<4x8x8xbf16, #tpu.memory_space<vmem>>, vector<1x8x8xbf16>,
        %117 = arith.index_cast %arg19 : i32 to index
        %c0_55 = arith.constant 0 : index
        %c0_56 = arith.constant 0 : index
        %118 = vector.load %arg5[%117, %c0_55, %c0_56] : memref<4x32x8xbf16, #tpu.memory_space<vmem>>, vector<1x32x8xbf16>
        %119 = vector.shape_cast %118 : vector<1x32x8xbf16> to vector<32x8xbf16>
        %cst_57 = arith.constant dense<0.000000e+00> : vector<8x8xf32>
        %120 = tpu.matmul %106, %119, %cst_57 {dimension_numbers = #tpu.dot_dimension_numbers<[1], [0], [0], [1], [0, 0, 1, 1], [], []>} : vector<8x32xbf16>, vector<32x8xbf16>, vector<8x8xf32> -> vector<8x8xf32>
        %121 = arith.truncf %120 : vector<8x8xf32> to vector<8x8xbf16>
        %122 = arith.index_cast %arg19 : i32 to index
        %c0_58 = arith.constant 0 : index
        %c0_59 = arith.constant 0 : index
        %123 = vector.load %arg18[%122, %c0_58, %c0_59] : memref<4x8x8xbf16, #tpu.memory_space<vmem>>, vector<1x8x8xbf16>
        %124 = vector.shape_cast %123 : vector<1x8x8xbf16> to vector<8x8xbf16>
        %125 = vector.shape_cast %121 : vector<8x8xbf16> to vector<1x8x8xbf16>
        tpu.vector_store %arg18[%122, %c0_58, %c0_59], %125 {strides = array<i32>} : memref<4x8x8xbf16, #tpu.memory_space<vmem>>, vector<1x8x8xbf16>,
      }
      %c4_i32_49 = arith.constant 4 : i32
    } else {
    }
    %c8_i32 = arith.constant 8 : i32
    %5 = arith.muli %arg1, %c8_i32 : i32
    %6 = tpu.assume_multiple %5, 8 : i32
    %c0_4 = arith.constant 0 : index
    %7 = arith.index_cast %6 : i32 to index
    %c0_5 = arith.constant 0 : index
    %8 = vector.load %arg2[%c0_4, %7, %c0_5] : memref<1x8x32xf32, #tpu.memory_space<vmem>>, vector<1x8x32xf32>
    %9 = vector.shape_cast %8 : vector<1x8x32xf32> to vector<8x32xf32>
    %cst = arith.constant dense<0.000000e+00> : vector<8xf32>
    %10 = vector.multi_reduction <add>, %9, %cst [1] : vector<8x32xf32> to vector<8xf32>
    %11 = vector.shape_cast %10 : vector<8xf32> to vector<8x1xf32>
    %cst_6 = arith.constant 3.200000e+01 : f32
    %12 = vector.broadcast %cst_6 : f32 to vector<8x1xf32>
    %13 = arith.divf %11, %12 : vector<8x1xf32>
    %14 = vector.broadcast %13 : vector<8x1xf32> to vector<8x32xf32>
    %15 = arith.subf %9, %14 : vector<8x32xf32>
    %16 = arith.mulf %15, %15 : vector<8x32xf32>
    %cst_7 = arith.constant dense<0.000000e+00> : vector<8xf32>
    %17 = vector.multi_reduction <add>, %16, %cst_7 [1] : vector<8x32xf32> to vector<8xf32>
    %18 = vector.shape_cast %17 : vector<8xf32> to vector<8x1xf32>
    %cst_8 = arith.constant 3.200000e+01 : f32
    %19 = vector.broadcast %cst_8 : f32 to vector<8x1xf32>
    %20 = arith.divf %18, %19 : vector<8x1xf32>
    %21 = vector.broadcast %13 : vector<8x1xf32> to vector<8x32xf32>
    %22 = arith.subf %9, %21 : vector<8x32xf32>
    %cst_9 = arith.constant 9.99999974E-6 : f32
    %23 = vector.broadcast %cst_9 : f32 to vector<8x1xf32>
    %24 = arith.addf %20, %23 : vector<8x1xf32>
    %25 = math.rsqrt %24 : vector<8x1xf32>
    %26 = vector.broadcast %25 : vector<8x1xf32> to vector<8x32xf32>
    %27 = arith.mulf %22, %26 : vector<8x32xf32>
    %28 = vector.broadcast %0 : vector<1x32xf32> to vector<8x32xf32>
    %29 = arith.mulf %27, %28 : vector<8x32xf32>
    %30 = vector.broadcast %1 : vector<1x32xf32> to vector<8x32xf32>
    %31 = arith.addf %29, %30 : vector<8x32xf32>
    %32 = arith.truncf %31 : vector<8x32xf32> to vector<8x32xbf16>
    %cst_10 = arith.constant 0.000000e+00 : f32
    %33 = vector.broadcast %cst_10 : f32 to vector<8x32xf32>
    %c0_i32_11 = arith.constant 0 : i32
    %c4_i32 = arith.constant 4 : i32
    %34 = arith.addi %c0_i32_11, %c4_i32 : i32
    %c1_i32 = arith.constant 1 : i32
    %35 = scf.for %arg19 = %c0_i32_11 to %34 step %c1_i32 iter_args(%arg20 = %33) -> (vector<8x32xf32>)  : i32 {
      %82 = arith.index_cast %arg19 : i32 to index
      %c0_38 = arith.constant 0 : index
      %c0_39 = arith.constant 0 : index
      %83 = vector.load %arg3[%82, %c0_38, %c0_39] : memref<4x32x8xbf16, #tpu.memory_space<vmem>>, vector<1x32x8xbf16>
      %84 = vector.shape_cast %83 : vector<1x32x8xbf16> to vector<32x8xbf16>
      %cst_40 = arith.constant dense<0.000000e+00> : vector<8x8xf32>
      %85 = tpu.matmul %32, %84, %cst_40 {dimension_numbers = #tpu.dot_dimension_numbers<[1], [0], [0], [1], [0, 0, 1, 1], [], []>} : vector<8x32xbf16>, vector<32x8xbf16>, vector<8x8xf32> -> vector<8x8xf32>
      %cst_41 = arith.constant 0.353553385 : f32
      %86 = vector.broadcast %cst_41 : f32 to vector<8x8xf32>
      %87 = arith.mulf %85, %86 : vector<8x8xf32>
      %88 = arith.truncf %87 : vector<8x8xf32> to vector<8x8xbf16>
      %89 = arith.index_cast %arg19 : i32 to index
      %c0_42 = arith.constant 0 : index
      %c0_43 = arith.constant 0 : index
      %90 = vector.load %arg17[%89, %c0_42, %c0_43] : memref<4x8x8xbf16, #tpu.memory_space<vmem>>, vector<1x8x8xbf16>
      %91 = vector.shape_cast %90 : vector<1x8x8xbf16> to vector<8x8xbf16>
      %92 = arith.index_cast %arg19 : i32 to index
      %c0_44 = arith.constant 0 : index
      %c0_45 = arith.constant 0 : index
      %93 = vector.load %arg18[%92, %c0_44, %c0_45] : memref<4x8x8xbf16, #tpu.memory_space<vmem>>, vector<1x8x8xbf16>
      %94 = vector.shape_cast %93 : vector<1x8x8xbf16> to vector<8x8xbf16>
      %cst_46 = arith.constant dense<0.000000e+00> : vector<8x8xf32>
      %95 = tpu.matmul %88, %91, %cst_46 {dimension_numbers = #tpu.dot_dimension_numbers<[1], [1], [0], [0], [0, 0, 1, 0], [], []>} : vector<8x8xbf16>, vector<8x8xbf16>, vector<8x8xf32> -> vector<8x8xf32>
      %cst_47 = arith.constant dense<0xFF800000> : vector<8xf32>
      %96 = vector.multi_reduction <maximumf>, %95, %cst_47 [1] : vector<8x8xf32> to vector<8xf32>
      %97 = vector.shape_cast %96 : vector<8xf32> to vector<8x1xf32>
      %98 = vector.broadcast %97 : vector<8x1xf32> to vector<8x8xf32>
      %99 = arith.subf %95, %98 : vector<8x8xf32>
      %100 = math.exp %99 : vector<8x8xf32>
      %cst_48 = arith.constant dense<0.000000e+00> : vector<8xf32>
      %101 = vector.multi_reduction <add>, %100, %cst_48 [1] : vector<8x8xf32> to vector<8xf32>
      %102 = vector.shape_cast %101 : vector<8xf32> to vector<8x1xf32>
      %103 = arith.truncf %100 : vector<8x8xf32> to vector<8x8xbf16>
      %cst_49 = arith.constant dense<0.000000e+00> : vector<8x8xf32>
      %104 = tpu.matmul %103, %94, %cst_49 {dimension_numbers = #tpu.dot_dimension_numbers<[1], [0], [0], [1], [0, 0, 1, 1], [], []>} : vector<8x8xbf16>, vector<8x8xbf16>, vector<8x8xf32> -> vector<8x8xf32>
      %105 = tpu.reciprocal %102 {approx = true} : vector<8x1xf32> -> vector<8x1xf32>
      %106 = vector.broadcast %105 : vector<8x1xf32> to vector<8x8xf32>
      %107 = arith.mulf %104, %106 : vector<8x8xf32>
      %108 = arith.truncf %107 : vector<8x8xf32> to vector<8x8xbf16>
      %109 = arith.index_cast %arg19 : i32 to index
      %c0_50 = arith.constant 0 : index
      %c0_51 = arith.constant 0 : index
      %110 = vector.load %arg6[%109, %c0_50, %c0_51] : memref<4x8x32xbf16, #tpu.memory_space<vmem>>, vector<1x8x32xbf16>
      %111 = vector.shape_cast %110 : vector<1x8x32xbf16> to vector<8x32xbf16>
      %cst_52 = arith.constant dense<0.000000e+00> : vector<8x32xf32>
      %112 = tpu.matmul %108, %111, %cst_52 {dimension_numbers = #tpu.dot_dimension_numbers<[1], [0], [0], [1], [0, 0, 1, 1], [], []>} : vector<8x8xbf16>, vector<8x32xbf16>, vector<8x32xf32> -> vector<8x32xf32>
      %113 = arith.addf %arg20, %112 : vector<8x32xf32>
      scf.yield %113 : vector<8x32xf32>
    }
    %c4_i32_12 = arith.constant 4 : i32
    %c0_13 = arith.constant 0 : index
    %c0_14 = arith.constant 0 : index
    %36 = vector.load %arg7[%c0_13, %c0_14] : memref<1x32xf32, #tpu.memory_space<vmem>>, vector<1x32xf32>
    %37 = vector.broadcast %36 : vector<1x32xf32> to vector<8x32xf32>
    %38 = arith.addf %35, %37 : vector<8x32xf32>
    %39 = arith.addf %9, %38 : vector<8x32xf32>
    %c0_15 = arith.constant 0 : index
    %c0_16 = arith.constant 0 : index
    %40 = vector.load %arg10[%c0_15, %c0_16] : memref<1x32xf32, #tpu.memory_space<vmem>>, vector<1x32xf32>
    %c0_17 = arith.constant 0 : index
    %c0_18 = arith.constant 0 : index
    %41 = vector.load %arg11[%c0_17, %c0_18] : memref<1x32xf32, #tpu.memory_space<vmem>>, vector<1x32xf32>
    %cst_19 = arith.constant dense<0.000000e+00> : vector<8xf32>
    %42 = vector.multi_reduction <add>, %39, %cst_19 [1] : vector<8x32xf32> to vector<8xf32>
    %43 = vector.shape_cast %42 : vector<8xf32> to vector<8x1xf32>
    %cst_20 = arith.constant 3.200000e+01 : f32
    %44 = vector.broadcast %cst_20 : f32 to vector<8x1xf32>
    %45 = arith.divf %43, %44 : vector<8x1xf32>
    %46 = vector.broadcast %45 : vector<8x1xf32> to vector<8x32xf32>
    %47 = arith.subf %39, %46 : vector<8x32xf32>
    %48 = arith.mulf %47, %47 : vector<8x32xf32>
    %cst_21 = arith.constant dense<0.000000e+00> : vector<8xf32>
    %49 = vector.multi_reduction <add>, %48, %cst_21 [1] : vector<8x32xf32> to vector<8xf32>
    %50 = vector.shape_cast %49 : vector<8xf32> to vector<8x1xf32>
    %cst_22 = arith.constant 3.200000e+01 : f32
    %51 = vector.broadcast %cst_22 : f32 to vector<8x1xf32>
    %52 = arith.divf %50, %51 : vector<8x1xf32>
    %53 = vector.broadcast %45 : vector<8x1xf32> to vector<8x32xf32>
    %54 = arith.subf %39, %53 : vector<8x32xf32>
    %cst_23 = arith.constant 9.99999974E-6 : f32
    %55 = vector.broadcast %cst_23 : f32 to vector<8x1xf32>
    %56 = arith.addf %52, %55 : vector<8x1xf32>
    %57 = math.rsqrt %56 : vector<8x1xf32>
    %58 = vector.broadcast %57 : vector<8x1xf32> to vector<8x32xf32>
    %59 = arith.mulf %54, %58 : vector<8x32xf32>
    %60 = vector.broadcast %40 : vector<1x32xf32> to vector<8x32xf32>
    %61 = arith.mulf %59, %60 : vector<8x32xf32>
    %62 = vector.broadcast %41 : vector<1x32xf32> to vector<8x32xf32>
    %63 = arith.addf %61, %62 : vector<8x32xf32>
    %64 = arith.truncf %63 : vector<8x32xf32> to vector<8x32xbf16>
    %c0_24 = arith.constant 0 : index
    %c0_25 = arith.constant 0 : index
    %65 = vector.load %arg12[%c0_24, %c0_25] : memref<32x128xbf16, #tpu.memory_space<vmem>>, vector<32x128xbf16>
    %cst_26 = arith.constant dense<0.000000e+00> : vector<8x128xf32>
    %66 = tpu.matmul %64, %65, %cst_26 {dimension_numbers = #tpu.dot_dimension_numbers<[1], [0], [0], [1], [0, 0, 1, 1], [], []>} : vector<8x32xbf16>, vector<32x128xbf16>, vector<8x128xf32> -> vector<8x128xf32>
    %c0_27 = arith.constant 0 : index
    %c0_28 = arith.constant 0 : index
    %67 = vector.load %arg13[%c0_27, %c0_28] : memref<1x128xf32, #tpu.memory_space<vmem>>, vector<1x128xf32>
    %68 = vector.broadcast %67 : vector<1x128xf32> to vector<8x128xf32>
    %69 = arith.addf %66, %68 : vector<8x128xf32>
    %cst_29 = arith.constant 0.000000e+00 : f32
    %70 = vector.broadcast %cst_29 : f32 to vector<8x128xf32>
    %71 = arith.maximumf %69, %70 : vector<8x128xf32>
    %72 = arith.truncf %71 : vector<8x128xf32> to vector<8x128xbf16>
    %c0_30 = arith.constant 0 : index
    %c0_31 = arith.constant 0 : index
    %73 = vector.load %arg14[%c0_30, %c0_31] : memref<128x32xbf16, #tpu.memory_space<vmem>>, vector<128x32xbf16>
    %cst_32 = arith.constant dense<0.000000e+00> : vector<8x32xf32>
    %74 = tpu.matmul %72, %73, %cst_32 {dimension_numbers = #tpu.dot_dimension_numbers<[1], [0], [0], [1], [0, 0, 1, 1], [], []>} : vector<8x128xbf16>, vector<128x32xbf16>, vector<8x32xf32> -> vector<8x32xf32>
    %c0_33 = arith.constant 0 : index
    %c0_34 = arith.constant 0 : index
    %75 = vector.load %arg15[%c0_33, %c0_34] : memref<1x32xf32, #tpu.memory_space<vmem>>, vector<1x32xf32>
    %76 = vector.broadcast %75 : vector<1x32xf32> to vector<8x32xf32>
    %77 = arith.addf %74, %76 : vector<8x32xf32>
    %78 = arith.addf %39, %77 : vector<8x32xf32>
    %c0_35 = arith.constant 0 : index
    %c0_36 = arith.constant 0 : index
    %c0_37 = arith.constant 0 : index
    %79 = vector.load %arg16[%c0_35, %c0_36, %c0_37] : memref<1x8x32xf32, #tpu.memory_space<vmem>>, vector<1x8x32xf32>
    %80 = vector.shape_cast %79 : vector<1x8x32xf32> to vector<8x32xf32>
    %81 = vector.shape_cast %78 : vector<8x32xf32> to vector<1x8x32xf32>
    tpu.vector_store %arg16[%c0_35, %c0_36, %c0_37], %81 {strides = array<i32>} : memref<1x8x32xf32, #tpu.memory_space<vmem>>, vector<1x8x32xf32>,
    return
  }
  func.func @transform_0(%arg0: i32, %arg1: i32) -> (i32, i32, i32) {
    %c0_i32 = arith.constant 0 : i32
    %c0_i32_0 = arith.constant 0 : i32
    %c0_i32_1 = arith.constant 0 : i32
    return %arg0, %c0_i32, %c0_i32_0 : i32, i32, i32
  }
  func.func @transform_1(%arg0: i32, %arg1: i32) -> (i32, i32, i32) {
    %c0_i32 = arith.constant 0 : i32
    %c0_i32_0 = arith.constant 0 : i32
    %c0_i32_1 = arith.constant 0 : i32
    %c0_i32_2 = arith.constant 0 : i32
    return %c0_i32, %c0_i32_0, %c0_i32_1 : i32, i32, i32
  }
  func.func @transform_2(%arg0: i32, %arg1: i32) -> (i32, i32, i32) {
    %c0_i32 = arith.constant 0 : i32
    %c0_i32_0 = arith.constant 0 : i32
    %c0_i32_1 = arith.constant 0 : i32
    %c0_i32_2 = arith.constant 0 : i32
    return %c0_i32, %c0_i32_0, %c0_i32_1 : i32, i32, i32
  }
  func.func @transform_3(%arg0: i32, %arg1: i32) -> (i32, i32, i32) {
    %c0_i32 = arith.constant 0 : i32
    %c0_i32_0 = arith.constant 0 : i32
    %c0_i32_1 = arith.constant 0 : i32
    %c0_i32_2 = arith.constant 0 : i32
    return %c0_i32, %c0_i32_0, %c0_i32_1 : i32, i32, i32
  }
  func.func @transform_4(%arg0: i32, %arg1: i32) -> (i32, i32, i32) {
    %c0_i32 = arith.constant 0 : i32
    %c0_i32_0 = arith.constant 0 : i32
    %c0_i32_1 = arith.constant 0 : i32
    %c0_i32_2 = arith.constant 0 : i32
    return %c0_i32, %c0_i32_0, %c0_i32_1 : i32, i32, i32
  }
  func.func @transform_5(%arg0: i32, %arg1: i32) -> (i32, i32) {
    %c0_i32 = arith.constant 0 : i32
    %c0_i32_0 = arith.constant 0 : i32
    %c0_i32_1 = arith.constant 0 : i32
    return %c0_i32, %c0_i32_0 : i32, i32
  }
  func.func @transform_6(%arg0: i32, %arg1: i32) -> (i32, i32) {
    %c0_i32 = arith.constant 0 : i32
    %c0_i32_0 = arith.constant 0 : i32
    %c0_i32_1 = arith.constant 0 : i32
    return %c0_i32, %c0_i32_0 : i32, i32
  }
  func.func @transform_7(%arg0: i32, %arg1: i32) -> (i32, i32) {
    %c0_i32 = arith.constant 0 : i32
    %c0_i32_0 = arith.constant 0 : i32
    %c0_i32_1 = arith.constant 0 : i32
    return %c0_i32, %c0_i32_0 : i32, i32
  }
  func.func @transform_8(%arg0: i32, %arg1: i32) -> (i32, i32) {
    %c0_i32 = arith.constant 0 : i32
    %c0_i32_0 = arith.constant 0 : i32
    %c0_i32_1 = arith.constant 0 : i32
    return %c0_i32, %c0_i32_0 : i32, i32
  }
  func.func @transform_9(%arg0: i32, %arg1: i32) -> (i32, i32) {
    %c0_i32 = arith.constant 0 : i32
    %c0_i32_0 = arith.constant 0 : i32
    %c0_i32_1 = arith.constant 0 : i32
    return %c0_i32, %c0_i32_0 : i32, i32
  }
  func.func @transform_10(%arg0: i32, %arg1: i32) -> (i32, i32) {
    %c0_i32 = arith.constant 0 : i32
    %c0_i32_0 = arith.constant 0 : i32
    %c0_i32_1 = arith.constant 0 : i32
    return %c0_i32, %c0_i32_0 : i32, i32
  }
  func.func @transform_11(%arg0: i32, %arg1: i32) -> (i32, i32) {
    %c0_i32 = arith.constant 0 : i32
    %c0_i32_0 = arith.constant 0 : i32
    %c0_i32_1 = arith.constant 0 : i32
    return %c0_i32, %c0_i32_0 : i32, i32
  }
  func.func @transform_12(%arg0: i32, %arg1: i32) -> (i32, i32) {
    %c0_i32 = arith.constant 0 : i32
    %c0_i32_0 = arith.constant 0 : i32
    %c0_i32_1 = arith.constant 0 : i32
    return %c0_i32, %c0_i32_0 : i32, i32
  }
  func.func @transform_13(%arg0: i32, %arg1: i32) -> (i32, i32) {
    %c0_i32 = arith.constant 0 : i32
    %c0_i32_0 = arith.constant 0 : i32
    %c0_i32_1 = arith.constant 0 : i32
    return %c0_i32, %c0_i32_0 : i32, i32
  }
  func.func @transform_14(%arg0: i32, %arg1: i32) -> (i32, i32, i32) {
    %c0_i32 = arith.constant 0 : i32
    %c0_i32_0 = arith.constant 0 : i32
    return %arg0, %arg1, %c0_i32 : i32, i32, i32
  }
}

module attributes {stable_mosaic.version = 11 : i64} {
  func.func @block_kernel(%arg0: i32, %arg1: i32, %arg2: memref<1x8x32xf32, #tpu.memory_space<vmem>>, %arg3: memref<4x32x8xbf16, #tpu.memory_space<vmem>>, %arg4: memref<4x32x8xbf16, #tpu.memory_space<vmem>>, %arg5: memref<4x32x8xbf16, #tpu.memory_space<vmem>>, %arg6: memref<4x8x32xbf16, #tpu.memory_space<vmem>>, %arg7: memref<1x32xf32, #tpu.memory_space<vmem>>, %arg8: memref<1x32xf32, #tpu.memory_space<vmem>>, %arg9: memref<1x32xf32, #tpu.memory_space<vmem>>, %arg10: memref<1x32xf32, #tpu.memory_space<vmem>>, %arg11: memref<1x32xf32, #tpu.memory_space<vmem>>, %arg12: memref<32x128xbf16, #tpu.memory_space<vmem>>, %arg13: memref<1x128xf32, #tpu.memory_space<vmem>>, %arg14: memref<128x32xbf16, #tpu.memory_space<vmem>>, %arg15: memref<1x32xf32, #tpu.memory_space<vmem>>, %arg16: memref<1x8x32xf32, #tpu.memory_space<vmem>>, %arg17: memref<4x8x8xbf16, #tpu.memory_space<vmem>>, %arg18: memref<4x8x8xbf16, #tpu.memory_space<vmem>>) attributes {dimension_semantics = [#tpu.dimension_semantics<parallel>, #tpu.dimension_semantics<arbitrary>], iteration_bounds = array<i64: 2, 1>, scalar_prefetch = 0 : i64, scratch_operands = 2 : i64, tpu.core_type = #tpu.core_type<tc>, window_params = [{transform_indices = @transform_0, window_bounds = array<i64: 1, 8, 32>}, {pipeline_mode = #tpu.pipeline_mode<synchronous>, transform_indices = @transform_1, window_bounds = array<i64: 4, 32, 8>}, {pipeline_mode = #tpu.pipeline_mode<synchronous>, transform_indices = @transform_2, window_bounds = array<i64: 4, 32, 8>}, {pipeline_mode = #tpu.pipeline_mode<synchronous>, transform_indices = @transform_3, window_bounds = array<i64: 4, 32, 8>}, {pipeline_mode = #tpu.pipeline_mode<synchronous>, transform_indices = @transform_4, window_bounds = array<i64: 4, 8, 32>}, {pipeline_mode = #tpu.pipeline_mode<synchronous>, transform_indices = @transform_5, window_bounds = array<i64: 1, 32>}, {pipeline_mode = #tpu.pipeline_mode<synchronous>, transform_indices = @transform_6, window_bounds = array<i64: 1, 32>}, {pipeline_mode = #tpu.pipeline_mode<synchronous>, transform_indices = @transform_7, window_bounds = array<i64: 1, 32>}, {pipeline_mode = #tpu.pipeline_mode<synchronous>, transform_indices = @transform_8, window_bounds = array<i64: 1, 32>}, {pipeline_mode = #tpu.pipeline_mode<synchronous>, transform_indices = @transform_9, window_bounds = array<i64: 1, 32>}, {pipeline_mode = #tpu.pipeline_mode<synchronous>, transform_indices = @transform_10, window_bounds = array<i64: 32, 128>}, {pipeline_mode = #tpu.pipeline_mode<synchronous>, transform_indices = @transform_11, window_bounds = array<i64: 1, 128>}, {pipeline_mode = #tpu.pipeline_mode<synchronous>, transform_indices = @transform_12, window_bounds = array<i64: 128, 32>}, {pipeline_mode = #tpu.pipeline_mode<synchronous>, transform_indices = @transform_13, window_bounds = array<i64: 1, 32>}, {transform_indices = @transform_14, window_bounds = array<i64: 1, 8, 32>}]} {
    %c0 = arith.constant 0 : index
    %c0_0 = arith.constant 0 : index
    %0 = vector.load %arg8[%c0, %c0_0] : memref<1x32xf32, #tpu.memory_space<vmem>>, vector<1x32xf32>
    %c0_1 = arith.constant 0 : index
    %c0_2 = arith.constant 0 : index
    %1 = vector.load %arg9[%c0_1, %c0_2] : memref<1x32xf32, #tpu.memory_space<vmem>>, vector<1x32xf32>
    %c0_i32 = arith.constant 0 : i32
    %2 = arith.cmpi eq, %arg1, %c0_i32 : i32
    %3 = arith.extui %2 : i1 to i32
    %c0_i32_3 = arith.constant 0 : i32
    %4 = arith.cmpi ne, %3, %c0_i32_3 : i32
    scf.if %4 {
      %c0_38 = arith.constant 0 : index
      %c0_39 = arith.constant 0 : index
      %c0_40 = arith.constant 0 : index
      %82 = vector.load %arg2[%c0_38, %c0_39, %c0_40] : memref<1x8x32xf32, #tpu.memory_space<vmem>>, vector<1x8x32xf32>
      %83 = vector.shape_cast %82 : vector<1x8x32xf32> to vector<8x32xf32>
      %cst_41 = arith.constant dense<0.000000e+00> : vector<8xf32>
      %84 = vector.multi_reduction <add>, %83, %cst_41 [1] : vector<8x32xf32> to vector<8xf32>
      %85 = vector.shape_cast %84 : vector<8xf32> to vector<8x1xf32>
      %cst_42 = arith.constant 3.200000e+01 : f32
      %86 = vector.broadcast %cst_42 : f32 to vector<8x1xf32>
      %87 = arith.divf %85, %86 : vector<8x1xf32>
      %88 = vector.broadcast %87 : vector<8x1xf32> to vector<8x32xf32>
      %89 = arith.subf %83, %88 : vector<8x32xf32>
      %90 = arith.mulf %89, %89 : vector<8x32xf32>
      %cst_43 = arith.constant dense<0.000000e+00> : vector<8xf32>
      %91 = vector.multi_reduction <add>, %90, %cst_43 [1] : vector<8x32xf32> to vector<8xf32>
      %92 = vector.shape_cast %91 : vector<8xf32> to vector<8x1xf32>
      %cst_44 = arith.constant 3.200000e+01 : f32
      %93 = vector.broadcast %cst_44 : f32 to vector<8x1xf32>
      %94 = arith.divf %92, %93 : vector<8x1xf32>
      %95 = vector.broadcast %87 : vector<8x1xf32> to vector<8x32xf32>
      %96 = arith.subf %83, %95 : vector<8x32xf32>
      %cst_45 = arith.constant 9.99999974E-6 : f32
      %97 = vector.broadcast %cst_45 : f32 to vector<8x1xf32>
      %98 = arith.addf %94, %97 : vector<8x1xf32>
      %99 = math.rsqrt %98 : vector<8x1xf32>
      %100 = vector.broadcast %99 : vector<8x1xf32> to vector<8x32xf32>
      %101 = arith.mulf %96, %100 : vector<8x32xf32>
      %102 = vector.broadcast %0 : vector<1x32xf32> to vector<8x32xf32>
      %103 = arith.mulf %101, %102 : vector<8x32xf32>
      %104 = vector.broadcast %1 : vector<1x32xf32> to vector<8x32xf32>
      %105 = arith.addf %103, %104 : vector<8x32xf32>
      %106 = arith.truncf %105 : vector<8x32xf32> to vector<8x32xbf16>
      %c0_i32_46 = arith.constant 0 : i32
      %c4_i32_47 = arith.constant 4 : i32
      %107 = arith.addi %c0_i32_46, %c4_i32_47 : i32
      %c1_i32_48 = arith.constant 1 : i32
      scf.for %arg19 = %c0_i32_46 to %107 step %c1_i32_48  : i32 {
        %108 = arith.index_cast %arg19 : i32 to index
        %c0_50 = arith.constant 0 : index
        %c0_51 = arith.constant 0 : index
        %109 = vector.load %arg4[%108, %c0_50, %c0_51] : memref<4x32x8xbf16, #tpu.memory_space<vmem>>, vector<1x32x8xbf16>
        %110 = vector.shape_cast %109 : vector<1x32x8xbf16> to vector<32x8xbf16>
        %cst_52 = arith.constant dense<0.000000e+00> : vector<8x8xf32>
        %111 = tpu.matmul %106, %110, %cst_52 {dimension_numbers = #tpu.dot_dimension_numbers<[1], [0], [0], [1], [0, 0, 1, 1], [], []>} : vector<8x32xbf16>, vector<32x8xbf16>, vector<8x8xf32> -> vector<8x8xf32>
        %112 = arith.truncf %111 : vector<8x8xf32> to vector<8x8xbf16>
        %113 = arith.index_cast %arg19 : i32 to index
        %c0_53 = arith.constant 0 : index
        %c0_54 = arith.constant 0 : index
        %114 = vector.load %arg17[%113, %c0_53, %c0_54] : memref<4x8x8xbf16, #tpu.memory_space<vmem>>, vector<1x8x8xbf16>
        %115 = vector.shape_cast %114 : vector<1x8x8xbf16> to vector<8x8xbf16>
        %116 = vector.shape_cast %112 : vector<8x8xbf16> to vector<1x8x8xbf16>
        tpu.vector_store %arg17[%113, %c0_53, %c0_54], %116 {strides = array<i32>} : memref<4x8x8xbf16, #tpu.memory_space<vmem>>, vector<1x8x8xbf16>,
        %117 = arith.index_cast %arg19 : i32 to index
        %c0_55 = arith.constant 0 : index
        %c0_56 = arith.constant 0 : index
        %118 = vector.load %arg5[%117, %c0_55, %c0_56] : memref<4x32x8xbf16, #tpu.memory_space<vmem>>, vector<1x32x8xbf16>
        %119 = vector.shape_cast %118 : vector<1x32x8xbf16> to vector<32x8xbf16>
        %cst_57 = arith.constant dense<0.000000e+00> : vector<8x8xf32>
        %120 = tpu.matmul %106, %119, %cst_57 {dimension_numbers = #tpu.dot_dimension_numbers<[1], [0], [0], [1], [0, 0, 1, 1], [], []>} : vector<8x32xbf16>, vector<32x8xbf16>, vector<8x8xf32> -> vector<8x8xf32>
        %121 = arith.truncf %120 : vector<8x8xf32> to vector<8x8xbf16>
        %122 = arith.index_cast %arg19 : i32 to index
        %c0_58 = arith.constant 0 : index
        %c0_59 = arith.constant 0 : index
        %123 = vector.load %arg18[%122, %c0_58, %c0_59] : memref<4x8x8xbf16, #tpu.memory_space<vmem>>, vector<1x8x8xbf16>
        %124 = vector.shape_cast %123 : vector<1x8x8xbf16> to vector<8x8xbf16>
        %125 = vector.shape_cast %121 : vector<8x8xbf16> to vector<1x8x8xbf16>
        tpu.vector_store %arg18[%122, %c0_58, %c0_59], %125 {strides = array<i32>} : memref<4x8x8xbf16, #tpu.memory_space<vmem>>, vector<1x8x8xbf16>,
      }
      %c4_i32_49 = arith.constant 4 : i32
    } else {
    }
    %c8_i32 = arith.constant 8 : i32
    %5 = arith.muli %arg1, %c8_i32 : i32
    %6 = tpu.assume_multiple %5, 8 : i32
    %c0_4 = arith.constant 0 : index
    %7 = arith.index_cast %6 : i32 to index
    %c0_5 = arith.constant 0 : index
    %8 = vector.load %arg2[%c0_4, %7, %c0_5] : memref<1x8x32xf32, #tpu.memory_space<vmem>>, vector<1x8x32xf32>
    %9 = vector.shape_cast %8 : vector<1x8x32xf32> to vector<8x32xf32>
    %cst = arith.constant dense<0.000000e+00> : vector<8xf32>
    %10 = vector.multi_reduction <add>, %9, %cst [1] : vector<8x32xf32> to vector<8xf32>
    %11 = vector.shape_cast %10 : vector<8xf32> to vector<8x1xf32>
    %cst_6 = arith.constant 3.200000e+01 : f32
    %12 = vector.broadcast %cst_6 : f32 to vector<8x1xf32>
    %13 = arith.divf %11, %12 : vector<8x1xf32>
    %14 = vector.broadcast %13 : vector<8x1xf32> to vector<8x32xf32>
    %15 = arith.subf %9, %14 : vector<8x32xf32>
    %16 = arith.mulf %15, %15 : vector<8x32xf32>
    %cst_7 = arith.constant dense<0.000000e+00> : vector<8xf32>
    %17 = vector.multi_reduction <add>, %16, %cst_7 [1] : vector<8x32xf32> to vector<8xf32>
    %18 = vector.shape_cast %17 : vector<8xf32> to vector<8x1xf32>
    %cst_8 = arith.constant 3.200000e+01 : f32
    %19 = vector.broadcast %cst_8 : f32 to vector<8x1xf32>
    %20 = arith.divf %18, %19 : vector<8x1xf32>
    %21 = vector.broadcast %13 : vector<8x1xf32> to vector<8x32xf32>
    %22 = arith.subf %9, %21 : vector<8x32xf32>
    %cst_9 = arith.constant 9.99999974E-6 : f32
    %23 = vector.broadcast %cst_9 : f32 to vector<8x1xf32>
    %24 = arith.addf %20, %23 : vector<8x1xf32>
    %25 = math.rsqrt %24 : vector<8x1xf32>
    %26 = vector.broadcast %25 : vector<8x1xf32> to vector<8x32xf32>
    %27 = arith.mulf %22, %26 : vector<8x32xf32>
    %28 = vector.broadcast %0 : vector<1x32xf32> to vector<8x32xf32>
    %29 = arith.mulf %27, %28 : vector<8x32xf32>
    %30 = vector.broadcast %1 : vector<1x32xf32> to vector<8x32xf32>
    %31 = arith.addf %29, %30 : vector<8x32xf32>
    %32 = arith.truncf %31 : vector<8x32xf32> to vector<8x32xbf16>
    %cst_10 = arith.constant 0.000000e+00 : f32
    %33 = vector.broadcast %cst_10 : f32 to vector<8x32xf32>
    %c0_i32_11 = arith.constant 0 : i32
    %c4_i32 = arith.constant 4 : i32
    %34 = arith.addi %c0_i32_11, %c4_i32 : i32
    %c1_i32 = arith.constant 1 : i32
    %35 = scf.for %arg19 = %c0_i32_11 to %34 step %c1_i32 iter_args(%arg20 = %33) -> (vector<8x32xf32>)  : i32 {
      %82 = arith.index_cast %arg19 : i32 to index
      %c0_38 = arith.constant 0 : index
      %c0_39 = arith.constant 0 : index
      %83 = vector.load %arg3[%82, %c0_38, %c0_39] : memref<4x32x8xbf16, #tpu.memory_space<vmem>>, vector<1x32x8xbf16>
      %84 = vector.shape_cast %83 : vector<1x32x8xbf16> to vector<32x8xbf16>
      %cst_40 = arith.constant dense<0.000000e+00> : vector<8x8xf32>
      %85 = tpu.matmul %32, %84, %cst_40 {dimension_numbers = #tpu.dot_dimension_numbers<[1], [0], [0], [1], [0, 0, 1, 1], [], []>} : vector<8x32xbf16>, vector<32x8xbf16>, vector<8x8xf32> -> vector<8x8xf32>
      %cst_41 = arith.constant 0.353553385 : f32
      %86 = vector.broadcast %cst_41 : f32 to vector<8x8xf32>
      %87 = arith.mulf %85, %86 : vector<8x8xf32>
      %88 = arith.truncf %87 : vector<8x8xf32> to vector<8x8xbf16>
      %89 = arith.index_cast %arg19 : i32 to index
      %c0_42 = arith.constant 0 : index
      %c0_43 = arith.constant 0 : index
      %90 = vector.load %arg17[%89, %c0_42, %c0_43] : memref<4x8x8xbf16, #tpu.memory_space<vmem>>, vector<1x8x8xbf16>
      %91 = vector.shape_cast %90 : vector<1x8x8xbf16> to vector<8x8xbf16>
      %92 = arith.index_cast %arg19 : i32 to index
      %c0_44 = arith.constant 0 : index
      %c0_45 = arith.constant 0 : index
      %93 = vector.load %arg18[%92, %c0_44, %c0_45] : memref<4x8x8xbf16, #tpu.memory_space<vmem>>, vector<1x8x8xbf16>
      %94 = vector.shape_cast %93 : vector<1x8x8xbf16> to vector<8x8xbf16>
      %cst_46 = arith.constant dense<0.000000e+00> : vector<8x8xf32>
      %95 = tpu.matmul %88, %91, %cst_46 {dimension_numbers = #tpu.dot_dimension_numbers<[1], [1], [0], [0], [0, 0, 1, 0], [], []>} : vector<8x8xbf16>, vector<8x8xbf16>, vector<8x8xf32> -> vector<8x8xf32>
      %cst_47 = arith.constant dense<0xFF800000> : vector<8xf32>
      %96 = vector.multi_reduction <maximumf>, %95, %cst_47 [1] : vector<8x8xf32> to vector<8xf32>
      %97 = vector.shape_cast %96 : vector<8xf32> to vector<8x1xf32>
      %98 = vector.broadcast %97 : vector<8x1xf32> to vector<8x8xf32>
      %99 = arith.subf %95, %98 : vector<8x8xf32>
      %100 = math.exp %99 : vector<8x8xf32>
      %cst_48 = arith.constant dense<0.000000e+00> : vector<8xf32>
      %101 = vector.multi_reduction <add>, %100, %cst_48 [1] : vector<8x8xf32> to vector<8xf32>
      %102 = vector.shape_cast %101 : vector<8xf32> to vector<8x1xf32>
      %103 = arith.truncf %100 : vector<8x8xf32> to vector<8x8xbf16>
      %cst_49 = arith.constant dense<0.000000e+00> : vector<8x8xf32>
      %104 = tpu.matmul %103, %94, %cst_49 {dimension_numbers = #tpu.dot_dimension_numbers<[1], [0], [0], [1], [0, 0, 1, 1], [], []>} : vector<8x8xbf16>, vector<8x8xbf16>, vector<8x8xf32> -> vector<8x8xf32>
      %105 = tpu.reciprocal %102 {approx = true} : vector<8x1xf32> -> vector<8x1xf32>
      %106 = vector.broadcast %105 : vector<8x1xf32> to vector<8x8xf32>
      %107 = arith.mulf %104, %106 : vector<8x8xf32>
      %108 = arith.truncf %107 : vector<8x8xf32> to vector<8x8xbf16>
      %109 = arith.index_cast %arg19 : i32 to index
      %c0_50 = arith.constant 0 : index
      %c0_51 = arith.constant 0 : index
      %110 = vector.load %arg6[%109, %c0_50, %c0_51] : memref<4x8x32xbf16, #tpu.memory_space<vmem>>, vector<1x8x32xbf16>
      %111 = vector.shape_cast %110 : vector<1x8x32xbf16> to vector<8x32xbf16>
      %cst_52 = arith.constant dense<0.000000e+00> : vector<8x32xf32>
      %112 = tpu.matmul %108, %111, %cst_52 {dimension_numbers = #tpu.dot_dimension_numbers<[1], [0], [0], [1], [0, 0, 1, 1], [], []>} : vector<8x8xbf16>, vector<8x32xbf16>, vector<8x32xf32> -> vector<8x32xf32>
      %113 = arith.addf %arg20, %112 : vector<8x32xf32>
      scf.yield %113 : vector<8x32xf32>
    }
    %c4_i32_12 = arith.constant 4 : i32
    %c0_13 = arith.constant 0 : index
    %c0_14 = arith.constant 0 : index
    %36 = vector.load %arg7[%c0_13, %c0_14] : memref<1x32xf32, #tpu.memory_space<vmem>>, vector<1x32xf32>
    %37 = vector.broadcast %36 : vector<1x32xf32> to vector<8x32xf32>
    %38 = arith.addf %35, %37 : vector<8x32xf32>
    %39 = arith.addf %9, %38 : vector<8x32xf32>
    %c0_15 = arith.constant 0 : index
    %c0_16 = arith.constant 0 : index
    %40 = vector.load %arg10[%c0_15, %c0_16] : memref<1x32xf32, #tpu.memory_space<vmem>>, vector<1x32xf32>
    %c0_17 = arith.constant 0 : index
    %c0_18 = arith.constant 0 : index
    %41 = vector.load %arg11[%c0_17, %c0_18] : memref<1x32xf32, #tpu.memory_space<vmem>>, vector<1x32xf32>
    %cst_19 = arith.constant dense<0.000000e+00> : vector<8xf32>
    %42 = vector.multi_reduction <add>, %39, %cst_19 [1] : vector<8x32xf32> to vector<8xf32>
    %43 = vector.shape_cast %42 : vector<8xf32> to vector<8x1xf32>
    %cst_20 = arith.constant 3.200000e+01 : f32
    %44 = vector.broadcast %cst_20 : f32 to vector<8x1xf32>
    %45 = arith.divf %43, %44 : vector<8x1xf32>
    %46 = vector.broadcast %45 : vector<8x1xf32> to vector<8x32xf32>
    %47 = arith.subf %39, %46 : vector<8x32xf32>
    %48 = arith.mulf %47, %47 : vector<8x32xf32>
    %cst_21 = arith.constant dense<0.000000e+00> : vector<8xf32>
    %49 = vector.multi_reduction <add>, %48, %cst_21 [1] : vector<8x32xf32> to vector<8xf32>
    %50 = vector.shape_cast %49 : vector<8xf32> to vector<8x1xf32>
    %cst_22 = arith.constant 3.200000e+01 : f32
    %51 = vector.broadcast %cst_22 : f32 to vector<8x1xf32>
    %52 = arith.divf %50, %51 : vector<8x1xf32>
    %53 = vector.broadcast %45 : vector<8x1xf32> to vector<8x32xf32>
    %54 = arith.subf %39, %53 : vector<8x32xf32>
    %cst_23 = arith.constant 9.99999974E-6 : f32
    %55 = vector.broadcast %cst_23 : f32 to vector<8x1xf32>
    %56 = arith.addf %52, %55 : vector<8x1xf32>
    %57 = math.rsqrt %56 : vector<8x1xf32>
    %58 = vector.broadcast %57 : vector<8x1xf32> to vector<8x32xf32>
    %59 = arith.mulf %54, %58 : vector<8x32xf32>
    %60 = vector.broadcast %40 : vector<1x32xf32> to vector<8x32xf32>
    %61 = arith.mulf %59, %60 : vector<8x32xf32>
    %62 = vector.broadcast %41 : vector<1x32xf32> to vector<8x32xf32>
    %63 = arith.addf %61, %62 : vector<8x32xf32>
    %64 = arith.truncf %63 : vector<8x32xf32> to vector<8x32xbf16>
    %c0_24 = arith.constant 0 : index
    %c0_25 = arith.constant 0 : index
    %65 = vector.load %arg12[%c0_24, %c0_25] : memref<32x128xbf16, #tpu.memory_space<vmem>>, vector<32x128xbf16>
    %cst_26 = arith.constant dense<0.000000e+00> : vector<8x128xf32>
    %66 = tpu.matmul %64, %65, %cst_26 {dimension_numbers = #tpu.dot_dimension_numbers<[1], [0], [0], [1], [0, 0, 1, 1], [], []>} : vector<8x32xbf16>, vector<32x128xbf16>, vector<8x128xf32> -> vector<8x128xf32>
    %c0_27 = arith.constant 0 : index
    %c0_28 = arith.constant 0 : index
    %67 = vector.load %arg13[%c0_27, %c0_28] : memref<1x128xf32, #tpu.memory_space<vmem>>, vector<1x128xf32>
    %68 = vector.broadcast %67 : vector<1x128xf32> to vector<8x128xf32>
    %69 = arith.addf %66, %68 : vector<8x128xf32>
    %cst_29 = arith.constant 0.000000e+00 : f32
    %70 = vector.broadcast %cst_29 : f32 to vector<8x128xf32>
    %71 = arith.maximumf %69, %70 : vector<8x128xf32>
    %72 = arith.truncf %71 : vector<8x128xf32> to vector<8x128xbf16>
    %c0_30 = arith.constant 0 : index
    %c0_31 = arith.constant 0 : index
    %73 = vector.load %arg14[%c0_30, %c0_31] : memref<128x32xbf16, #tpu.memory_space<vmem>>, vector<128x32xbf16>
    %cst_32 = arith.constant dense<0.000000e+00> : vector<8x32xf32>
    %74 = tpu.matmul %72, %73, %cst_32 {dimension_numbers = #tpu.dot_dimension_numbers<[1], [0], [0], [1], [0, 0, 1, 1], [], []>} : vector<8x128xbf16>, vector<128x32xbf16>, vector<8x32xf32> -> vector<8x32xf32>
    %c0_33 = arith.constant 0 : index
    %c0_34 = arith.constant 0 : index
    %75 = vector.load %arg15[%c0_33, %c0_34] : memref<1x32xf32, #tpu.memory_space<vmem>>, vector<1x32xf32>
    %76 = vector.broadcast %75 : vector<1x32xf32> to vector<8x32xf32>
    %77 = arith.addf %74, %76 : vector<8x32xf32>
    %78 = arith.addf %39, %77 : vector<8x32xf32>
    %c0_35 = arith.constant 0 : index
    %c0_36 = arith.constant 0 : index
    %c0_37 = arith.constant 0 : index
    %79 = vector.load %arg16[%c0_35, %c0_36, %c0_37] : memref<1x8x32xf32, #tpu.memory_space<vmem>>, vector<1x8x32xf32>
    %80 = vector.shape_cast %79 : vector<1x8x32xf32> to vector<8x32xf32>
    %81 = vector.shape_cast %78 : vector<8x32xf32> to vector<1x8x32xf32>
    tpu.vector_store %arg16[%c0_35, %c0_36, %c0_37], %81 {strides = array<i32>} : memref<1x8x32xf32, #tpu.memory_space<vmem>>, vector<1x8x32xf32>,
    return
  }
  func.func @transform_0(%arg0: i32, %arg1: i32) -> (i32, i32, i32) {
    %c0_i32 = arith.constant 0 : i32
    %c0_i32_0 = arith.constant 0 : i32
    %c0_i32_1 = arith.constant 0 : i32
    return %arg0, %c0_i32, %c0_i32_0 : i32, i32, i32
  }
  func.func @transform_1(%arg0: i32, %arg1: i32) -> (i32, i32, i32) {
    %c0_i32 = arith.constant 0 : i32
    %c0_i32_0 = arith.constant 0 : i32
    %c0_i32_1 = arith.constant 0 : i32
    %c0_i32_2 = arith.constant 0 : i32
    return %c0_i32, %c0_i32_0, %c0_i32_1 : i32, i32, i32
  }
  func.func @transform_2(%arg0: i32, %arg1: i32) -> (i32, i32, i32) {
    %c0_i32 = arith.constant 0 : i32
    %c0_i32_0 = arith.constant 0 : i32
    %c0_i32_1 = arith.constant 0 : i32
    %c0_i32_2 = arith.constant 0 : i32
    return %c0_i32, %c0_i32_0, %c0_i32_1 : i32, i32, i32
  }
  func.func @transform_3(%arg0: i32, %arg1: i32) -> (i32, i32, i32) {
    %c0_i32 = arith.constant 0 : i32
    %c0_i32_0 = arith.constant 0 : i32
    %c0_i32_1 = arith.constant 0 : i32
    %c0_i32_2 = arith.constant 0 : i32
    return %c0_i32, %c0_i32_0, %c0_i32_1 : i32, i32, i32
  }
  func.func @transform_4(%arg0: i32, %arg1: i32) -> (i32, i32, i32) {
    %c0_i32 = arith.constant 0 : i32
    %c0_i32_0 = arith.constant 0 : i32
    %c0_i32_1 = arith.constant 0 : i32
    %c0_i32_2 = arith.constant 0 : i32
    return %c0_i32, %c0_i32_0, %c0_i32_1 : i32, i32, i32
  }
  func.func @transform_5(%arg0: i32, %arg1: i32) -> (i32, i32) {
    %c0_i32 = arith.constant 0 : i32
    %c0_i32_0 = arith.constant 0 : i32
    %c0_i32_1 = arith.constant 0 : i32
    return %c0_i32, %c0_i32_0 : i32, i32
  }
  func.func @transform_6(%arg0: i32, %arg1: i32) -> (i32, i32) {
    %c0_i32 = arith.constant 0 : i32
    %c0_i32_0 = arith.constant 0 : i32
    %c0_i32_1 = arith.constant 0 : i32
    return %c0_i32, %c0_i32_0 : i32, i32
  }
  func.func @transform_7(%arg0: i32, %arg1: i32) -> (i32, i32) {
    %c0_i32 = arith.constant 0 : i32
    %c0_i32_0 = arith.constant 0 : i32
    %c0_i32_1 = arith.constant 0 : i32
    return %c0_i32, %c0_i32_0 : i32, i32
  }
  func.func @transform_8(%arg0: i32, %arg1: i32) -> (i32, i32) {
    %c0_i32 = arith.constant 0 : i32
    %c0_i32_0 = arith.constant 0 : i32
    %c0_i32_1 = arith.constant 0 : i32
    return %c0_i32, %c0_i32_0 : i32, i32
  }
  func.func @transform_9(%arg0: i32, %arg1: i32) -> (i32, i32) {
    %c0_i32 = arith.constant 0 : i32
    %c0_i32_0 = arith.constant 0 : i32
    %c0_i32_1 = arith.constant 0 : i32
    return %c0_i32, %c0_i32_0 : i32, i32
  }
  func.func @transform_10(%arg0: i32, %arg1: i32) -> (i32, i32) {
    %c0_i32 = arith.constant 0 : i32
    %c0_i32_0 = arith.constant 0 : i32
    %c0_i32_1 = arith.constant 0 : i32
    return %c0_i32, %c0_i32_0 : i32, i32
  }
  func.func @transform_11(%arg0: i32, %arg1: i32) -> (i32, i32) {
    %c0_i32 = arith.constant 0 : i32
    %c0_i32_0 = arith.constant 0 : i32
    %c0_i32_1 = arith.constant 0 : i32
    return %c0_i32, %c0_i32_0 : i32, i32
  }
  func.func @transform_12(%arg0: i32, %arg1: i32) -> (i32, i32) {
    %c0_i32 = arith.constant 0 : i32
    %c0_i32_0 = arith.constant 0 : i32
    %c0_i32_1 = arith.constant 0 : i32
    return %c0_i32, %c0_i32_0 : i32, i32
  }
  func.func @transform_13(%arg0: i32, %arg1: i32) -> (i32, i32) {
    %c0_i32 = arith.constant 0 : i32
    %c0_i32_0 = arith.constant 0 : i32
    %c0_i32_1 = arith.constant 0 : i32
    return %c0_i32, %c0_i32_0 : i32, i32
  }
  func.func @transform_14(%arg0: i32, %arg1: i32) -> (i32, i32, i32) {
    %c0_i32 = arith.constant 0 : i32
    %c0_i32_0 = arith.constant 0 : i32
    return %arg0, %arg1, %c0_i32 : i32, i32, i32
  }
}

</mosaic_0001>

<llo_original>
// kernel: tpu_custom_call.1
$region0: #{tpu_custom_call.1}
  #allocation0 [shape = 'u32[]', space=smem, size = 0x4, offset = 0x4, fixed_abs, tag = 'smem constant byte address 0x4 - core index']
  #allocation1 [shape = 'u32[144,128]{1,0:T(1,128)}', space=vmem, size = 0x12000, scoped, tag = 'internal scratch']
  #allocation2 [shape = 'bf16[4,8,8]{2,1,0:T(8,128)(2,1)}', space=vmem, size = 0x2000, scoped, tag = 'scratch operand']
  #allocation3 [shape = 'bf16[4,8,8]{2,1,0:T(8,128)(2,1)}', space=vmem, size = 0x2000, scoped, tag = 'scratch operand']
  %s0 = inlined_call_operand.vmem [shape: f32[2,8,32], index: 0, kind: input, shape index: {}]
  %s1 = inlined_call_operand.vmem [shape: bf16[4,32,8], index: 1, kind: input, shape index: {}]
  %s2 = inlined_call_operand.vmem [shape: bf16[4,32,8], index: 2, kind: input, shape index: {}]
  %s3 = inlined_call_operand.vmem [shape: bf16[4,32,8], index: 3, kind: input, shape index: {}]
  %s4 = inlined_call_operand.vmem [shape: bf16[4,8,32], index: 4, kind: input, shape index: {}]
  %s5 = inlined_call_operand.vmem [shape: f32[1,32], index: 5, kind: input, shape index: {}]
  %s6 = inlined_call_operand.vmem [shape: f32[1,32], index: 6, kind: input, shape index: {}]
  %s7 = inlined_call_operand.vmem [shape: f32[1,32], index: 7, kind: input, shape index: {}]
  %s8 = inlined_call_operand.vmem [shape: f32[1,32], index: 8, kind: input, shape index: {}]
  %s9 = inlined_call_operand.vmem [shape: f32[1,32], index: 9, kind: input, shape index: {}]
  %s10 = inlined_call_operand.vmem [shape: bf16[32,128], index: 10, kind: input, shape index: {}]
  %s11 = inlined_call_operand.vmem [shape: f32[1,128], index: 11, kind: input, shape index: {}]
  %s12 = inlined_call_operand.vmem [shape: bf16[128,32], index: 12, kind: input, shape index: {}]
  %s13 = inlined_call_operand.vmem [shape: f32[1,32], index: 13, kind: input, shape index: {}]
  %s14 = inlined_call_operand.hbm [shape: f32[2,8,32], index: 14, kind: output, shape index: {}]
  %s15 = sld [smem:[#allocation0]]
  $region107: #{tpu_custom_call.1} parent=0
    _
  %s17 = ssub.s32 1, %s15
  %s18 = scalar_select 0, %s17, %s15
  $region1: #{tpu_custom_call.1} parent=0
    #allocation4 [shape = 'u8[8192]{0}', space=vmem, size = 0x2000, scoped, tag = 'output window, operand 0']
    #allocation5 [shape = 's32[2]{0}', space=sflag, size = 0x8, scoped, tag = 'scoped memory for tpu_custom_call.1']
    %19 = vsyncpa [#allocation5], 0
    %s20 = scalar_lea.sflag [#allocation5], 1
    %21 = vsyncpa %s20, 0
    loop: start=0, step=1, limit=4
    $region2: #{tpu_custom_call.1} parent=1 // loop_pre_header
      _
    $region3: #{tpu_custom_call.1} parent=1 // loop_header
      %s23 = sphi 0, %s27
      %p24 = scmp.ge.s32.totalorder %s23, 4
      %s30 = sphi 0, %s42
      %s31 = sphi 0, %s38
      %s32 = sphi 0, %s30
      %s33 = sphi 0, %s31
      %s34 = sphi 0, %s32
      %s35 = sphi 0, %s33
      %s45 = sphi 0, %s47
      %s48 = sphi 0, %s45
      %s49 = sphi 0, %s48
      %s65 = sphi 0, %s49
      %s69 = sphi 0, %s69
      %s71 = sphi 0, %s69
      %s72 = sphi 0, %s71
      %s86 = sphi 0, %s72
      %s90 = sphi 0, %s90
      %s92 = sphi 0, %s90
      %s93 = sphi 0, %s92
      %s107 = sphi 0, %s93
      %s111 = sphi 0, %s111
      %s113 = sphi 0, %s111
      %s114 = sphi 0, %s113
      %s128 = sphi 0, %s114
      %s132 = sphi 0, %s132
      %s134 = sphi 0, %s132
      %s135 = sphi 0, %s134
      %s149 = sphi 0, %s135
      %s153 = sphi 0, %s153
      %s155 = sphi 0, %s153
      %s156 = sphi 0, %s155
      %s170 = sphi 0, %s156
      %s174 = sphi 0, %s174
      %s176 = sphi 0, %s174
      %s177 = sphi 0, %s176
      %s191 = sphi 0, %s177
      %s195 = sphi 0, %s195
      %s197 = sphi 0, %s195
      %s198 = sphi 0, %s197
      %s212 = sphi 0, %s198
      %s216 = sphi 0, %s216
      %s218 = sphi 0, %s216
      %s219 = sphi 0, %s218
      %s233 = sphi 0, %s219
      %s237 = sphi 0, %s237
      %s239 = sphi 0, %s237
      %s240 = sphi 0, %s239
      %s254 = sphi 0, %s240
      %s258 = sphi 0, %s258
      %s260 = sphi 0, %s258
      %s261 = sphi 0, %s260
      %s275 = sphi 0, %s261
      %s279 = sphi 0, %s279
      %s281 = sphi 0, %s279
      %s282 = sphi 0, %s281
      %s296 = sphi 0, %s282
      %s300 = sphi 0, %s300
      %s302 = sphi 0, %s300
      %s303 = sphi 0, %s302
      %s317 = sphi 0, %s303
      %s321 = sphi 0, %s321
      %s323 = sphi 0, %s321
      %s324 = sphi 0, %s323
      %s338 = sphi 0, %s324
      %s346 = sphi 0, %s348
      %s349 = sphi 0, %s346
      %s350 = sphi 0, %s349
      %s366 = sphi 0, %s350
    $region4: #{tpu_custom_call.1} parent=1 // loop_header_branch
      %26 = sbr.rel (%p24) target = $region8
    $region5: #{tpu_custom_call.1} parent=1 // loop_body
      %s28 = ssub.s32 %s23, 1
      %s29 = ssub.s32 %s23, 2
      %s36 = sadd.s32 1, %s31
      %p37 = scmp.ge.s32.totalorder %s36, 1
      %s38 = scalar_select %p37, 0, %s36
      %s39 = sadd.s32 1, %s30
      %s40 = scalar_select %p37, %s39, %s30
      %p41 = scmp.ge.s32.totalorder %s40, 2
      %s42 = scalar_select %p41, 0, %s40
      %s43 = ssub.s32 %s30, %s42
      %p44 = scmp.eq.s32.totalorder %s43, 0
      %s46 = sadd.s32 %s45, 1
      %s47 = scalar_select %p44, %s45, %s46
      %p50 = pneg %p44
      %p51 = scmp.eq.s32.totalorder %s23, 1
      %p52 = por %p50, %p51
      %p53 = scmp.ne.s32.totalorder %s45, %s48
      %p54 = scmp.eq.s32.totalorder %s23, 0
      %p55 = por %p53, %p54
      %p56 = scmp.ne.s32.totalorder %s45, %s48
      %p57 = scmp.eq.s32.totalorder %s28, 1
      %p58 = por %p56, %p57
      %p59 = scmp.ne.s32.totalorder %s48, %s49
      %p60 = scmp.eq.s32.totalorder %s28, 0
      %p61 = por %p59, %p60
      %p62 = scmp.ne.s32.totalorder %s48, %s49
      %p63 = scmp.eq.s32.totalorder %s29, 1
      %p64 = por %p62, %p63
      %p66 = scmp.ne.s32.totalorder %s49, %s65
      %p67 = scmp.eq.s32.totalorder %s29, 0
      %p68 = por %p66, %p67
      %s70 = sadd.s32 %s69, 1
      %p73 = scmp.eq.s32.totalorder %s23, 1
      %p74 = scmp.ne.s32.totalorder %s69, %s71
      %p75 = scmp.eq.s32.totalorder %s23, 0
      %p76 = por %p74, %p75
      %p77 = scmp.ne.s32.totalorder %s69, %s71
      %p78 = scmp.eq.s32.totalorder %s28, 1
      %p79 = por %p77, %p78
      %p80 = scmp.ne.s32.totalorder %s71, %s72
      %p81 = scmp.eq.s32.totalorder %s28, 0
      %p82 = por %p80, %p81
      %p83 = scmp.ne.s32.totalorder %s71, %s72
      %p84 = scmp.eq.s32.totalorder %s29, 1
      %p85 = por %p83, %p84
      %p87 = scmp.ne.s32.totalorder %s72, %s86
      %p88 = scmp.eq.s32.totalorder %s29, 0
      %p89 = por %p87, %p88
      %s91 = sadd.s32 %s90, 1
      %p94 = scmp.eq.s32.totalorder %s23, 1
      %p95 = scmp.ne.s32.totalorder %s90, %s92
      %p96 = scmp.eq.s32.totalorder %s23, 0
      %p97 = por %p95, %p96
      %p98 = scmp.ne.s32.totalorder %s90, %s92
      %p99 = scmp.eq.s32.totalorder %s28, 1
      %p100 = por %p98, %p99
      %p101 = scmp.ne.s32.totalorder %s92, %s93
      %p102 = scmp.eq.s32.totalorder %s28, 0
      %p103 = por %p101, %p102
      %p104 = scmp.ne.s32.totalorder %s92, %s93
      %p105 = scmp.eq.s32.totalorder %s29, 1
      %p106 = por %p104, %p105
      %p108 = scmp.ne.s32.totalorder %s93, %s107
      %p109 = scmp.eq.s32.totalorder %s29, 0
      %p110 = por %p108, %p109
      %s112 = sadd.s32 %s111, 1
      %p115 = scmp.eq.s32.totalorder %s23, 1
      %p116 = scmp.ne.s32.totalorder %s111, %s113
      %p117 = scmp.eq.s32.totalorder %s23, 0
      %p118 = por %p116, %p117
      %p119 = scmp.ne.s32.totalorder %s111, %s113
      %p120 = scmp.eq.s32.totalorder %s28, 1
      %p121 = por %p119, %p120
      %p122 = scmp.ne.s32.totalorder %s113, %s114
      %p123 = scmp.eq.s32.totalorder %s28, 0
      %p124 = por %p122, %p123
      %p125 = scmp.ne.s32.totalorder %s113, %s114
      %p126 = scmp.eq.s32.totalorder %s29, 1
      %p127 = por %p125, %p126
      %p129 = scmp.ne.s32.totalorder %s114, %s128
      %p130 = scmp.eq.s32.totalorder %s29, 0
      %p131 = por %p129, %p130
      %s133 = sadd.s32 %s132, 1
      %p136 = scmp.eq.s32.totalorder %s23, 1
      %p137 = scmp.ne.s32.totalorder %s132, %s134
      %p138 = scmp.eq.s32.totalorder %s23, 0
      %p139 = por %p137, %p138
      %p140 = scmp.ne.s32.totalorder %s132, %s134
      %p141 = scmp.eq.s32.totalorder %s28, 1
      %p142 = por %p140, %p141
      %p143 = scmp.ne.s32.totalorder %s134, %s135
      %p144 = scmp.eq.s32.totalorder %s28, 0
      %p145 = por %p143, %p144
      %p146 = scmp.ne.s32.totalorder %s134, %s135
      %p147 = scmp.eq.s32.totalorder %s29, 1
      %p148 = por %p146, %p147
      %p150 = scmp.ne.s32.totalorder %s135, %s149
      %p151 = scmp.eq.s32.totalorder %s29, 0
      %p152 = por %p150, %p151
      %s154 = sadd.s32 %s153, 1
      %p157 = scmp.eq.s32.totalorder %s23, 1
      %p158 = scmp.ne.s32.totalorder %s153, %s155
      %p159 = scmp.eq.s32.totalorder %s23, 0
      %p160 = por %p158, %p159
      %p161 = scmp.ne.s32.totalorder %s153, %s155
      %p162 = scmp.eq.s32.totalorder %s28, 1
      %p163 = por %p161, %p162
      %p164 = scmp.ne.s32.totalorder %s155, %s156
      %p165 = scmp.eq.s32.totalorder %s28, 0
      %p166 = por %p164, %p165
      %p167 = scmp.ne.s32.totalorder %s155, %s156
      %p168 = scmp.eq.s32.totalorder %s29, 1
      %p169 = por %p167, %p168
      %p171 = scmp.ne.s32.totalorder %s156, %s170
      %p172 = scmp.eq.s32.totalorder %s29, 0
      %p173 = por %p171, %p172
      %s175 = sadd.s32 %s174, 1
      %p178 = scmp.eq.s32.totalorder %s23, 1
      %p179 = scmp.ne.s32.totalorder %s174, %s176
      %p180 = scmp.eq.s32.totalorder %s23, 0
      %p181 = por %p179, %p180
      %p182 = scmp.ne.s32.totalorder %s174, %s176
      %p183 = scmp.eq.s32.totalorder %s28, 1
      %p184 = por %p182, %p183
      %p185 = scmp.ne.s32.totalorder %s176, %s177
      %p186 = scmp.eq.s32.totalorder %s28, 0
      %p187 = por %p185, %p186
      %p188 = scmp.ne.s32.totalorder %s176, %s177
      %p189 = scmp.eq.s32.totalorder %s29, 1
      %p190 = por %p188, %p189
      %p192 = scmp.ne.s32.totalorder %s177, %s191
      %p193 = scmp.eq.s32.totalorder %s29, 0
      %p194 = por %p192, %p193
      %s196 = sadd.s32 %s195, 1
      %p199 = scmp.eq.s32.totalorder %s23, 1
      %p200 = scmp.ne.s32.totalorder %s195, %s197
      %p201 = scmp.eq.s32.totalorder %s23, 0
      %p202 = por %p200, %p201
      %p203 = scmp.ne.s32.totalorder %s195, %s197
      %p204 = scmp.eq.s32.totalorder %s28, 1
      %p205 = por %p203, %p204
      %p206 = scmp.ne.s32.totalorder %s197, %s198
      %p207 = scmp.eq.s32.totalorder %s28, 0
      %p208 = por %p206, %p207
      %p209 = scmp.ne.s32.totalorder %s197, %s198
      %p210 = scmp.eq.s32.totalorder %s29, 1
      %p211 = por %p209, %p210
      %p213 = scmp.ne.s32.totalorder %s198, %s212
      %p214 = scmp.eq.s32.totalorder %s29, 0
      %p215 = por %p213, %p214
      %s217 = sadd.s32 %s216, 1
      %p220 = scmp.eq.s32.totalorder %s23, 1
      %p221 = scmp.ne.s32.totalorder %s216, %s218
      %p222 = scmp.eq.s32.totalorder %s23, 0
      %p223 = por %p221, %p222
      %p224 = scmp.ne.s32.totalorder %s216, %s218
      %p225 = scmp.eq.s32.totalorder %s28, 1
      %p226 = por %p224, %p225
      %p227 = scmp.ne.s32.totalorder %s218, %s219
      %p228 = scmp.eq.s32.totalorder %s28, 0
      %p229 = por %p227, %p228
      %p230 = scmp.ne.s32.totalorder %s218, %s219
      %p231 = scmp.eq.s32.totalorder %s29, 1
      %p232 = por %p230, %p231
      %p234 = scmp.ne.s32.totalorder %s219, %s233
      %p235 = scmp.eq.s32.totalorder %s29, 0
      %p236 = por %p234, %p235
      %s238 = sadd.s32 %s237, 1
      %p241 = scmp.eq.s32.totalorder %s23, 1
      %p242 = scmp.ne.s32.totalorder %s237, %s239
      %p243 = scmp.eq.s32.totalorder %s23, 0
      %p244 = por %p242, %p243
      %p245 = scmp.ne.s32.totalorder %s237, %s239
      %p246 = scmp.eq.s32.totalorder %s28, 1
      %p247 = por %p245, %p246
      %p248 = scmp.ne.s32.totalorder %s239, %s240
      %p249 = scmp.eq.s32.totalorder %s28, 0
      %p250 = por %p248, %p249
      %p251 = scmp.ne.s32.totalorder %s239, %s240
      %p252 = scmp.eq.s32.totalorder %s29, 1
      %p253 = por %p251, %p252
      %p255 = scmp.ne.s32.totalorder %s240, %s254
      %p256 = scmp.eq.s32.totalorder %s29, 0
      %p257 = por %p255, %p256
      %s259 = sadd.s32 %s258, 1
      %p262 = scmp.eq.s32.totalorder %s23, 1
      %p263 = scmp.ne.s32.totalorder %s258, %s260
      %p264 = scmp.eq.s32.totalorder %s23, 0
      %p265 = por %p263, %p264
      %p266 = scmp.ne.s32.totalorder %s258, %s260
      %p267 = scmp.eq.s32.totalorder %s28, 1
      %p268 = por %p266, %p267
      %p269 = scmp.ne.s32.totalorder %s260, %s261
      %p270 = scmp.eq.s32.totalorder %s28, 0
      %p271 = por %p269, %p270
      %p272 = scmp.ne.s32.totalorder %s260, %s261
      %p273 = scmp.eq.s32.totalorder %s29, 1
      %p274 = por %p272, %p273
      %p276 = scmp.ne.s32.totalorder %s261, %s275
      %p277 = scmp.eq.s32.totalorder %s29, 0
      %p278 = por %p276, %p277
      %s280 = sadd.s32 %s279, 1
      %p283 = scmp.eq.s32.totalorder %s23, 1
      %p284 = scmp.ne.s32.totalorder %s279, %s281
      %p285 = scmp.eq.s32.totalorder %s23, 0
      %p286 = por %p284, %p285
      %p287 = scmp.ne.s32.totalorder %s279, %s281
      %p288 = scmp.eq.s32.totalorder %s28, 1
      %p289 = por %p287, %p288
      %p290 = scmp.ne.s32.totalorder %s281, %s282
      %p291 = scmp.eq.s32.totalorder %s28, 0
      %p292 = por %p290, %p291
      %p293 = scmp.ne.s32.totalorder %s281, %s282
      %p294 = scmp.eq.s32.totalorder %s29, 1
      %p295 = por %p293, %p294
      %p297 = scmp.ne.s32.totalorder %s282, %s296
      %p298 = scmp.eq.s32.totalorder %s29, 0
      %p299 = por %p297, %p298
      %s301 = sadd.s32 %s300, 1
      %p304 = scmp.eq.s32.totalorder %s23, 1
      %p305 = scmp.ne.s32.totalorder %s300, %s302
      %p306 = scmp.eq.s32.totalorder %s23, 0
      %p307 = por %p305, %p306
      %p308 = scmp.ne.s32.totalorder %s300, %s302
      %p309 = scmp.eq.s32.totalorder %s28, 1
      %p310 = por %p308, %p309
      %p311 = scmp.ne.s32.totalorder %s302, %s303
      %p312 = scmp.eq.s32.totalorder %s28, 0
      %p313 = por %p311, %p312
      %p314 = scmp.ne.s32.totalorder %s302, %s303
      %p315 = scmp.eq.s32.totalorder %s29, 1
      %p316 = por %p314, %p315
      %p318 = scmp.ne.s32.totalorder %s303, %s317
      %p319 = scmp.eq.s32.totalorder %s29, 0
      %p320 = por %p318, %p319
      %s322 = sadd.s32 %s321, 1
      %p325 = scmp.eq.s32.totalorder %s23, 1
      %p326 = scmp.ne.s32.totalorder %s321, %s323
      %p327 = scmp.eq.s32.totalorder %s23, 0
      %p328 = por %p326, %p327
      %p329 = scmp.ne.s32.totalorder %s321, %s323
      %p330 = scmp.eq.s32.totalorder %s28, 1
      %p331 = por %p329, %p330
      %p332 = scmp.ne.s32.totalorder %s323, %s324
      %p333 = scmp.eq.s32.totalorder %s28, 0
      %p334 = por %p332, %p333
      %p335 = scmp.ne.s32.totalorder %s323, %s324
      %p336 = scmp.eq.s32.totalorder %s29, 1
      %p337 = por %p335, %p336
      %p339 = scmp.ne.s32.totalorder %s324, %s338
      %p340 = scmp.eq.s32.totalorder %s29, 0
      %p341 = por %p339, %p340
      %s342 = ssub.s32 %s30, %s42
      %s343 = ssub.s32 %s31, %s38
      %s344 = sor.u32 %s342, %s343
      %p345 = scmp.eq.s32.totalorder %s344, 0
      %s347 = sadd.s32 %s346, 1
      %s348 = scalar_select %p345, %s346, %s347
      %p351 = pneg %p345
      %p352 = scmp.eq.s32.totalorder %s23, 1
      %p353 = por %p351, %p352
      %p354 = scmp.ne.s32.totalorder %s346, %s349
      %p355 = scmp.eq.s32.totalorder %s23, 0
      %p356 = por %p354, %p355
      %p357 = scmp.ne.s32.totalorder %s346, %s349
      %p358 = scmp.eq.s32.totalorder %s28, 1
      %p359 = por %p357, %p358
      %p360 = scmp.ne.s32.totalorder %s349, %s350
      %p361 = scmp.eq.s32.totalorder %s28, 0
      %p362 = por %p360, %p361
      %p363 = scmp.ne.s32.totalorder %s349, %s350
      %p364 = scmp.eq.s32.totalorder %s29, 1
      %p365 = por %p363, %p364
      %p367 = scmp.ne.s32.totalorder %s350, %s366
      %p368 = scmp.eq.s32.totalorder %s29, 0
      %p369 = por %p367, %p368
      %p370 = scmp.le.s32.totalorder 1, %s23
      %p371 = scmp.lt.s32.totalorder %s23, 3
      %p372 = pnand %p370, %p371
      %p373 = pneg %p372
      // Predicated region
      $region9: #{tpu_custom_call.1} parent=5 // pred_check
        _
      $region10: #{tpu_custom_call.1} parent=5 // pred_check_branch
        %375 = sbr.rel (%p372) target = $region12
      $region11: #{tpu_custom_call.1} parent=5 // pred_region
        %s376 = ssub.s32 %s23, 1
        // Predicated region
        $region13: #{tpu_custom_call.1} parent=11 // pred_check
          %p377 = pneg %p61
        $region14: #{tpu_custom_call.1} parent=11 // pred_check_branch
          %379 = sbr.rel (%p377) target = $region16
        $region15: #{tpu_custom_call.1} parent=11 // pred_region
          %p380 = scmp.lt.s32.totalorder %s32, 1
          %s381 = scalar_select %p380, %s32, 1
          %s382 = smul.addr %s381, 8
          %s383 = scalar_lea.vmem %s0, %s382
        $region16: #{tpu_custom_call.1} parent=11 // pred_fallthru
          _
        // Predicated region
        $region17: #{tpu_custom_call.1} parent=11 // pred_check
          %p384 = pneg %p82
        $region18: #{tpu_custom_call.1} parent=11 // pred_check_branch
          %386 = sbr.rel (%p384) target = $region20
        $region19: #{tpu_custom_call.1} parent=11 // pred_region
          _
        $region20: #{tpu_custom_call.1} parent=11 // pred_fallthru
          _
        // Predicated region
        $region21: #{tpu_custom_call.1} parent=11 // pred_check
          %p387 = pneg %p103
        $region22: #{tpu_custom_call.1} parent=11 // pred_check_branch
          %389 = sbr.rel (%p387) target = $region24
        $region23: #{tpu_custom_call.1} parent=11 // pred_region
          _
        $region24: #{tpu_custom_call.1} parent=11 // pred_fallthru
          _
        // Predicated region
        $region25: #{tpu_custom_call.1} parent=11 // pred_check
          %p390 = pneg %p124
        $region26: #{tpu_custom_call.1} parent=11 // pred_check_branch
          %392 = sbr.rel (%p390) target = $region28
        $region27: #{tpu_custom_call.1} parent=11 // pred_region
          _
        $region28: #{tpu_custom_call.1} parent=11 // pred_fallthru
          _
        // Predicated region
        $region29: #{tpu_custom_call.1} parent=11 // pred_check
          %p393 = pneg %p145
        $region30: #{tpu_custom_call.1} parent=11 // pred_check_branch
          %395 = sbr.rel (%p393) target = $region32
        $region31: #{tpu_custom_call.1} parent=11 // pred_region
          _
        $region32: #{tpu_custom_call.1} parent=11 // pred_fallthru
          _
        // Predicated region
        $region33: #{tpu_custom_call.1} parent=11 // pred_check
          %p396 = pneg %p166
        $region34: #{tpu_custom_call.1} parent=11 // pred_check_branch
          %398 = sbr.rel (%p396) target = $region36
        $region35: #{tpu_custom_call.1} parent=11 // pred_region
          _
        $region36: #{tpu_custom_call.1} parent=11 // pred_fallthru
          _
        // Predicated region
        $region37: #{tpu_custom_call.1} parent=11 // pred_check
          %p399 = pneg %p187
        $region38: #{tpu_custom_call.1} parent=11 // pred_check_branch
          %401 = sbr.rel (%p399) target = $region40
        $region39: #{tpu_custom_call.1} parent=11 // pred_region
          _
        $region40: #{tpu_custom_call.1} parent=11 // pred_fallthru
          _
        // Predicated region
        $region41: #{tpu_custom_call.1} parent=11 // pred_check
          %p402 = pneg %p208
        $region42: #{tpu_custom_call.1} parent=11 // pred_check_branch
          %404 = sbr.rel (%p402) target = $region44
        $region43: #{tpu_custom_call.1} parent=11 // pred_region
          _
        $region44: #{tpu_custom_call.1} parent=11 // pred_fallthru
          _
        // Predicated region
        $region45: #{tpu_custom_call.1} parent=11 // pred_check
          %p405 = pneg %p229
        $region46: #{tpu_custom_call.1} parent=11 // pred_check_branch
          %407 = sbr.rel (%p405) target = $region48
        $region47: #{tpu_custom_call.1} parent=11 // pred_region
          _
        $region48: #{tpu_custom_call.1} parent=11 // pred_fallthru
          _
        // Predicated region
        $region49: #{tpu_custom_call.1} parent=11 // pred_check
          %p408 = pneg %p250
        $region50: #{tpu_custom_call.1} parent=11 // pred_check_branch
          %410 = sbr.rel (%p408) target = $region52
        $region51: #{tpu_custom_call.1} parent=11 // pred_region
          _
        $region52: #{tpu_custom_call.1} parent=11 // pred_fallthru
          _
        // Predicated region
        $region53: #{tpu_custom_call.1} parent=11 // pred_check
          %p411 = pneg %p271
        $region54: #{tpu_custom_call.1} parent=11 // pred_check_branch
          %413 = sbr.rel (%p411) target = $region56
        $region55: #{tpu_custom_call.1} parent=11 // pred_region
          _
        $region56: #{tpu_custom_call.1} parent=11 // pred_fallthru
          _
        // Predicated region
        $region57: #{tpu_custom_call.1} parent=11 // pred_check
          %p414 = pneg %p292
        $region58: #{tpu_custom_call.1} parent=11 // pred_check_branch
          %416 = sbr.rel (%p414) target = $region60
        $region59: #{tpu_custom_call.1} parent=11 // pred_region
          _
        $region60: #{tpu_custom_call.1} parent=11 // pred_fallthru
          _
        // Predicated region
        $region61: #{tpu_custom_call.1} parent=11 // pred_check
          %p417 = pneg %p313
        $region62: #{tpu_custom_call.1} parent=11 // pred_check_branch
          %419 = sbr.rel (%p417) target = $region64
        $region63: #{tpu_custom_call.1} parent=11 // pred_region
          _
        $region64: #{tpu_custom_call.1} parent=11 // pred_fallthru
          _
        // Predicated region
        $region65: #{tpu_custom_call.1} parent=11 // pred_check
          %p420 = pneg %p334
        $region66: #{tpu_custom_call.1} parent=11 // pred_check_branch
          %422 = sbr.rel (%p420) target = $region68
        $region67: #{tpu_custom_call.1} parent=11 // pred_region
          _
        $region68: #{tpu_custom_call.1} parent=11 // pred_fallthru
          _
      $region12: #{tpu_custom_call.1} parent=5 // pred_fallthru
        _
      %p423 = scmp.lt.s32.totalorder %s23, 2
      // Predicated region
      $region69: #{tpu_custom_call.1} parent=5 // pred_check
        %p424 = pneg %p423
      $region70: #{tpu_custom_call.1} parent=5 // pred_check_branch
        %426 = sbr.rel (%p424) target = $region72
      $region71: #{tpu_custom_call.1} parent=5 // pred_region
        _
      $region72: #{tpu_custom_call.1} parent=5 // pred_fallthru
        _
      %p427 = scmp.le.s32.totalorder 1, %s23
      %p428 = scmp.lt.s32.totalorder %s23, 3
      %p429 = pnand %p427, %p428
      %p430 = pneg %p429
      // Predicated region
      $region73: #{tpu_custom_call.1} parent=5 // pred_check
        _
      $region74: #{tpu_custom_call.1} parent=5 // pred_check_branch
        %432 = sbr.rel (%p429) target = $region76
      $region75: #{tpu_custom_call.1} parent=5 // pred_region
        %s433 = ssub.s32 %s23, 1
        %p434 = scmp.lt.s32.totalorder %s32, 1
        %s435 = scalar_select %p434, %s32, 1
        %s436 = smul.addr %s435, 8
        %s437 = scalar_lea.vmem %s0, %s436
        %p438 = pneg %p61
        %p439 = pneg %p58
        %p440 = pneg %p82
        %p441 = pneg %p79
        %p442 = pneg %p103
        %p443 = pneg %p100
        %p444 = pneg %p124
        %p445 = pneg %p121
        %p446 = pneg %p145
        %p447 = pneg %p142
        %p448 = pneg %p166
        %p449 = pneg %p163
        %p450 = pneg %p187
        %p451 = pneg %p184
        %p452 = pneg %p208
        %p453 = pneg %p205
        %p454 = pneg %p229
        %p455 = pneg %p226
        %p456 = pneg %p250
        %p457 = pneg %p247
        %p458 = pneg %p271
        %p459 = pneg %p268
        %p460 = pneg %p292
        %p461 = pneg %p289
        %p462 = pneg %p313
        %p463 = pneg %p310
        %p464 = pneg %p334
        %p465 = pneg %p331
        %p466 = pneg %p362
        %p467 = pneg %p359
        %s468 = sand.u32 %s349, 1
        %s469 = scalar_lea.sflag [#allocation5], %s468
        %s470 = sand.u32 %s349, 1
        %s471 = smul.addr %s470, 8
        %s472 = scalar_lea.vmem [#allocation4], %s471
        %p473 = scmp.lt.s32.totalorder %s32, 1
        %s474 = scalar_select %p473, %s32, 1
        %s475 = smul.addr %s474, 8
        %s476 = scalar_lea.vmem %s0, %s475
        %v478 = vld [vmem:[%s6] sm:$0x1]
        %v479 = vld [vmem:[%s7] sm:$0x1]
        %p480 = scmp.eq.s32.totalorder %s33, 0
        // Predicated region
        $region77: #{tpu_custom_call.1} parent=75 // pred_check
          %p481 = pneg %p480
        $region78: #{tpu_custom_call.1} parent=75 // pred_check_branch
          %483 = sbr.rel (%p481) target = $region80
        $region79: #{tpu_custom_call.1} parent=75 // pred_region
          %v484 = vld [vmem:[%s476] sm:$0xff]
          %vm485 = vcmask 261120
          %v486 = vsel %vm485, %v484, 0.0
          %487 = vadd.xlane.f32.xlu0 %v486
          %v488 = vpop.xlane.xlu0 %487
          %v489 = vrcp.pop 32.0
          %v490 = vmul.f32 %v488, %v489
          %v491 = vsub.f32 %v484, %v490
          %v492 = vmul.f32 %v491, %v491
          %v493 = vsel %vm485, %v492, 0.0
          %494 = vadd.xlane.f32.xlu0 %v493
          %v495 = vpop.xlane.xlu0 %494
          %v496 = vmul.f32 %v495, %v489
          %v497 = vadd.f32 %v496, 1e-05
          %v498 = vrsqrt.pop %v497
          %v499 = vmul.f32 %v491, %v498
          %v501 = vlaneseq
          %v502 = vshrl.u32 %v501, 7
          %v503 = vsub.s32 0, %v502
          %v504 = vrot.slane %v478, %v503
          %v506 = vmul.f32 %v499, %v504
          %v508 = vlaneseq
          %v509 = vshrl.u32 %v508, 7
          %v510 = vsub.s32 0, %v509
          %v511 = vrot.slane %v479, %v510
          %v513 = vadd.f32 %v506, %v511
          %v514 = vpack.c.bf16 %v513, %v513
          loop: start=0, step=1, limit=4
          $region81: #{tpu_custom_call.1} parent=79 // loop_pre_header
            _
          $region82: #{tpu_custom_call.1} parent=79 // loop_header
            %s516 = sphi 0, %s520
            %p517 = scmp.ge.s32.totalorder %s516, 4
          $region83: #{tpu_custom_call.1} parent=79 // loop_header_branch
            %519 = sbr.rel (%p517) target = $region87
          $region84: #{tpu_custom_call.1} parent=79 // loop_body
            %s521 = smul.u32 %s516, 4
            %s522 = smul.addr %s521, 4
            %s523 = scalar_lea.vmem %s2, %s522
            %v524 = vld [vmem:[%s523] sm:$0xf]
            %v525 = vld [vmem:[%s523 + $0x4] sm:$0xf]
            %v526 = vld [vmem:[%s523 + $0x8] sm:$0xf]
            %v527 = vld [vmem:[%s523 + $0xc] sm:$0xf]
            %v532 = vunpack.c.l.b16 %v524
            %v533 = vunpack.c.l.b16 %v525
            %v534 = vunpack.c.l.b16 %v526
            %v535 = vunpack.c.l.b16 %v527
            %v536 = vpack.c.b16 %v533, %v532
            %v537 = vpack.c.b16 %v535, %v534
            %v541 = vsel %vm485, %v514, 0
            %543 = vmatprep.subr.bf16.mxu0 0
            %544 = vmatpush1.bf16.msra.mxu0 %v536
            %545 = vmatprep.subr.bf16.mxu0 0
            %546 = vmatpush1.bf16.msra.mxu0 %v537
            %547 = vmatprep.subr.bf16.mxu0 0
            %548 = vmatpush1.bf16.msra.mxu0 0
            %549 = vmatprep.subr.bf16.mxu0 0
            %550 = vmatpush1.bf16.msra.mxu0 0
            %551 = vmatprep.subr.bf16.mxu0 0
            %552 = vmatpush1.bf16.msra.mxu0 0
            %553 = vmatprep.subr.bf16.mxu0 0
            %554 = vmatpush1.bf16.msra.mxu0 0
            %555 = vmatprep.subr.bf16.mxu0 0
            %556 = vmatpush1.bf16.msra.mxu0 0
            %557 = vmatprep.subr.bf16.mxu0 0
            %558 = vmatpush1.bf16.msra.mxu0 0
            %559 = vmatprep.subr.bf16.mxu0 0
            %560 = vmatpush1.bf16.msra.mxu0 0
            %561 = vmatprep.subr.bf16.mxu0 0
            %562 = vmatpush1.bf16.msra.mxu0 0
            %563 = vmatprep.subr.bf16.mxu0 0
            %564 = vmatpush1.bf16.msra.mxu0 0
            %565 = vmatprep.subr.bf16.mxu0 0
            %566 = vmatpush1.bf16.msra.mxu0 0
            %567 = vmatprep.subr.bf16.mxu0 0
            %568 = vmatpush1.bf16.msra.mxu0 0
            %569 = vmatprep.subr.bf16.mxu0 0
            %570 = vmatpush1.bf16.msra.mxu0 0
            %571 = vmatprep.subr.bf16.mxu0 0
            %572 = vmatpush1.bf16.msra.mxu0 0
            %573 = vmatprep.subr.bf16.mxu0 0
            %574 = vmatpush1.bf16.msra.mxu0 0
            %575 = vmatprep.mubr.bf16.mxu0 0
            %576 = vmatmul.mubr.bf16.gmra.mrb[0].mxu0 %v541
            %v577 = vpop.f32.mrb[0].mxu0
            %v578 = vadd.f32 0.0, %v577
            %v579 = vpop.f32.mrb[0].mxu0
            %v580 = vpop.f32.mrb[0].mxu0
            %v581 = vpop.f32.mrb[0].mxu0
            %582 = vdwg.mxu0
            %v583 = vpack.c.bf16 %v578, %v578
            %s584 = smul.addr %s516, 4
            %s585 = scalar_lea.vmem [#allocation2], %s584
            %vm586 = vcmask 60416
            %587 = vst.msk [vmem:[%s585] sm:$0xf] %vm586, %v583
            %s588 = smul.addr %s521, 4
            %s589 = scalar_lea.vmem %s3, %s588
            %v590 = vld [vmem:[%s589] sm:$0xf]
            %v591 = vld [vmem:[%s589 + $0x4] sm:$0xf]
            %v592 = vld [vmem:[%s589 + $0x8] sm:$0xf]
            %v593 = vld [vmem:[%s589 + $0xc] sm:$0xf]
            %v598 = vunpack.c.l.b16 %v590
            %v599 = vunpack.c.l.b16 %v591
            %v600 = vunpack.c.l.b16 %v592
            %v601 = vunpack.c.l.b16 %v593
            %v602 = vpack.c.b16 %v599, %v598
            %v603 = vpack.c.b16 %v601, %v600
            %606 = vmatprep.subr.bf16.mxu0 0
            %607 = vmatpush1.bf16.msra.mxu0 %v602
            %608 = vmatprep.subr.bf16.mxu0 0
            %609 = vmatpush1.bf16.msra.mxu0 %v603
            %610 = vmatprep.subr.bf16.mxu0 0
            %611 = vmatpush1.bf16.msra.mxu0 0
            %612 = vmatprep.subr.bf16.mxu0 0
            %613 = vmatpush1.bf16.msra.mxu0 0
            %614 = vmatprep.subr.bf16.mxu0 0
            %615 = vmatpush1.bf16.msra.mxu0 0
            %616 = vmatprep.subr.bf16.mxu0 0
            %617 = vmatpush1.bf16.msra.mxu0 0
            %618 = vmatprep.subr.bf16.mxu0 0
            %619 = vmatpush1.bf16.msra.mxu0 0
            %620 = vmatprep.subr.bf16.mxu0 0
            %621 = vmatpush1.bf16.msra.mxu0 0
            %622 = vmatprep.subr.bf16.mxu0 0
            %623 = vmatpush1.bf16.msra.mxu0 0
            %624 = vmatprep.subr.bf16.mxu0 0
            %625 = vmatpush1.bf16.msra.mxu0 0
            %626 = vmatprep.subr.bf16.mxu0 0
            %627 = vmatpush1.bf16.msra.mxu0 0
            %628 = vmatprep.subr.bf16.mxu0 0
            %629 = vmatpush1.bf16.msra.mxu0 0
            %630 = vmatprep.subr.bf16.mxu0 0
            %631 = vmatpush1.bf16.msra.mxu0 0
            %632 = vmatprep.subr.bf16.mxu0 0
            %633 = vmatpush1.bf16.msra.mxu0 0
            %634 = vmatprep.subr.bf16.mxu0 0
            %635 = vmatpush1.bf16.msra.mxu0 0
            %636 = vmatprep.subr.bf16.mxu0 0
            %637 = vmatpush1.bf16.msra.mxu0 0
            %638 = vmatprep.mubr.bf16.mxu0 0
            %639 = vmatmul.mubr.bf16.gmra.mrb[0].mxu0 %v541
            %v640 = vpop.f32.mrb[0].mxu0
            %v641 = vadd.f32 0.0, %v640
            %v642 = vpop.f32.mrb[0].mxu0
            %v643 = vpop.f32.mrb[0].mxu0
            %v644 = vpop.f32.mrb[0].mxu0
            %645 = vdwg.mxu0
            %v646 = vpack.c.bf16 %v641, %v641
            %s647 = smul.addr %s516, 4
            %s648 = scalar_lea.vmem [#allocation3], %s647
            %649 = vst.msk [vmem:[%s648] sm:$0xf] %vm586, %v646
          $region85: #{tpu_custom_call.1} parent=79 // loop_footer
            %s520 = sadd.s32 1, %s516
          $region86: #{tpu_custom_call.1} parent=79 // loop_footer_branch
            %515 = sbr.rel target = $region82
          $region87: #{tpu_custom_call.1} parent=79 // loop_exit
            _
        $region80: #{tpu_custom_call.1} parent=75 // pred_fallthru
          _
        %s650 = smul.u32 %s33, 8
        %s651 = scalar_lea.vmem %s476, %s650
        %v652 = vld [vmem:[%s651] sm:$0xff]
        %vm653 = vcmask 261120
        %v654 = vsel %vm653, %v652, 0.0
        %655 = vadd.xlane.f32.xlu0 %v654
        %v656 = vpop.xlane.xlu0 %655
        %v657 = vrcp.pop 32.0
        %v658 = vmul.f32 %v656, %v657
        %v659 = vsub.f32 %v652, %v658
        %v660 = vmul.f32 %v659, %v659
        %v661 = vsel %vm653, %v660, 0.0
        %662 = vadd.xlane.f32.xlu0 %v661
        %v663 = vpop.xlane.xlu0 %662
        %v664 = vmul.f32 %v663, %v657
        %v665 = vadd.f32 %v664, 1e-05
        %v666 = vrsqrt.pop %v665
        %v667 = vmul.f32 %v659, %v666
        %v669 = vlaneseq
        %v670 = vshrl.u32 %v669, 7
        %v671 = vsub.s32 0, %v670
        %v672 = vrot.slane %v478, %v671
        %v674 = vmul.f32 %v667, %v672
        %v676 = vlaneseq
        %v677 = vshrl.u32 %v676, 7
        %v678 = vsub.s32 0, %v677
        %v679 = vrot.slane %v479, %v678
        %v681 = vadd.f32 %v674, %v679
        %v682 = vpack.c.bf16 %v681, %v681
        loop: start=0, step=1, limit=4
        $region88: #{tpu_custom_call.1} parent=75 // loop_pre_header
          _
        $region89: #{tpu_custom_call.1} parent=75 // loop_header
          %s684 = sphi 0, %s688
          %p685 = scmp.ge.s32.totalorder %s684, 4
          %v689 = vphi 0.0, %v916
        $region90: #{tpu_custom_call.1} parent=75 // loop_header_branch
          %687 = sbr.rel (%p685) target = $region94
        $region91: #{tpu_custom_call.1} parent=75 // loop_body
          %s690 = smul.u32 %s684, 4
          %s691 = smul.addr %s690, 4
          %s692 = scalar_lea.vmem %s1, %s691
          %v693 = vld [vmem:[%s692] sm:$0xf]
          %v694 = vld [vmem:[%s692 + $0x4] sm:$0xf]
          %v695 = vld [vmem:[%s692 + $0x8] sm:$0xf]
          %v696 = vld [vmem:[%s692 + $0xc] sm:$0xf]
          %v701 = vunpack.c.l.b16 %v693
          %v702 = vunpack.c.l.b16 %v694
          %v703 = vunpack.c.l.b16 %v695
          %v704 = vunpack.c.l.b16 %v696
          %v705 = vpack.c.b16 %v702, %v701
          %v706 = vpack.c.b16 %v704, %v703
          %v710 = vsel %vm653, %v682, 0
          %712 = vmatprep.subr.bf16.mxu0 0
          %713 = vmatpush1.bf16.msra.mxu0 %v705
          %714 = vmatprep.subr.bf16.mxu0 0
          %715 = vmatpush1.bf16.msra.mxu0 %v706
          %716 = vmatprep.subr.bf16.mxu0 0
          %717 = vmatpush1.bf16.msra.mxu0 0
          %718 = vmatprep.subr.bf16.mxu0 0
          %719 = vmatpush1.bf16.msra.mxu0 0
          %720 = vmatprep.subr.bf16.mxu0 0
          %721 = vmatpush1.bf16.msra.mxu0 0
          %722 = vmatprep.subr.bf16.mxu0 0
          %723 = vmatpush1.bf16.msra.mxu0 0
          %724 = vmatprep.subr.bf16.mxu0 0
          %725 = vmatpush1.bf16.msra.mxu0 0
          %726 = vmatprep.subr.bf16.mxu0 0
          %727 = vmatpush1.bf16.msra.mxu0 0
          %728 = vmatprep.subr.bf16.mxu0 0
          %729 = vmatpush1.bf16.msra.mxu0 0
          %730 = vmatprep.subr.bf16.mxu0 0
          %731 = vmatpush1.bf16.msra.mxu0 0
          %732 = vmatprep.subr.bf16.mxu0 0
          %733 = vmatpush1.bf16.msra.mxu0 0
          %734 = vmatprep.subr.bf16.mxu0 0
          %735 = vmatpush1.bf16.msra.mxu0 0
          %736 = vmatprep.subr.bf16.mxu0 0
          %737 = vmatpush1.bf16.msra.mxu0 0
          %738 = vmatprep.subr.bf16.mxu0 0
          %739 = vmatpush1.bf16.msra.mxu0 0
          %740 = vmatprep.subr.bf16.mxu0 0
          %741 = vmatpush1.bf16.msra.mxu0 0
          %742 = vmatprep.subr.bf16.mxu0 0
          %743 = vmatpush1.bf16.msra.mxu0 0
          %744 = vmatprep.mubr.bf16.mxu0 0
          %745 = vmatmul.mubr.bf16.gmra.mrb[0].mxu0 %v710
          %v746 = vpop.f32.mrb[0].mxu0
          %v747 = vadd.f32 0.0, %v746
          %v748 = vpop.f32.mrb[0].mxu0
          %v749 = vpop.f32.mrb[0].mxu0
          %v750 = vpop.f32.mrb[0].mxu0
          %751 = vdwg.mxu0
          %v752 = vmul.f32 %v747, 0.35355338
          %v753 = vpack.c.bf16 %v752, %v752
          %s754 = smul.addr %s684, 4
          %s755 = scalar_lea.vmem [#allocation2], %s754
          %v756 = vld [vmem:[%s755] sm:$0xf]
          %s757 = smul.addr %s684, 4
          %s758 = scalar_lea.vmem [#allocation3], %s757
          %v759 = vld [vmem:[%s758] sm:$0xf]
          %vm760 = vcmask 64512
          %v762 = vsel %vm760, %v753, 0
          %v765 = vsel %vm760, %v756, 0
          %767 = vmatprep.subr.bf16.mxu0 0
          %768 = vmatpush1.bf16.xpose.msra.mxu0 %v765
          %769 = vmatprep.subr.bf16.mxu0 0
          %770 = vmatpush1.bf16.xpose.msra.mxu0 0
          %771 = vmatprep.subr.bf16.mxu0 0
          %772 = vmatpush1.bf16.xpose.msra.mxu0 0
          %773 = vmatprep.subr.bf16.mxu0 0
          %774 = vmatpush1.bf16.xpose.msra.mxu0 0
          %775 = vmatprep.subr.bf16.mxu0 0
          %776 = vmatpush1.bf16.xpose.msra.mxu0 0
          %777 = vmatprep.subr.bf16.mxu0 0
          %778 = vmatpush1.bf16.xpose.msra.mxu0 0
          %779 = vmatprep.subr.bf16.mxu0 0
          %780 = vmatpush1.bf16.xpose.msra.mxu0 0
          %781 = vmatprep.subr.bf16.mxu0 0
          %782 = vmatpush1.bf16.xpose.msra.mxu0 0
          %783 = vmatprep.subr.bf16.mxu0 0
          %784 = vmatpush1.bf16.xpose.msra.mxu0 0
          %785 = vmatprep.subr.bf16.mxu0 0
          %786 = vmatpush1.bf16.xpose.msra.mxu0 0
          %787 = vmatprep.subr.bf16.mxu0 0
          %788 = vmatpush1.bf16.xpose.msra.mxu0 0
          %789 = vmatprep.subr.bf16.mxu0 0
          %790 = vmatpush1.bf16.xpose.msra.mxu0 0
          %791 = vmatprep.subr.bf16.mxu0 0
          %792 = vmatpush1.bf16.xpose.msra.mxu0 0
          %793 = vmatprep.subr.bf16.mxu0 0
          %794 = vmatpush1.bf16.xpose.msra.mxu0 0
          %795 = vmatprep.subr.bf16.mxu0 0
          %796 = vmatpush1.bf16.xpose.msra.mxu0 0
          %797 = vmatprep.subr.bf16.mxu0 0
          %798 = vmatpush1.bf16.xpose.msra.mxu0 0
          %799 = vmatprep.mubr.bf16.mxu0 0
          %800 = vmatmul.mubr.bf16.gmra.mrb[0].mxu0 %v762
          %v801 = vpop.f32.mrb[0].mxu0
          %v802 = vadd.f32 0.0, %v801
          %v803 = vpop.f32.mrb[0].mxu0
          %v804 = vpop.f32.mrb[0].mxu0
          %v805 = vpop.f32.mrb[0].mxu0
          %806 = vdwg.mxu0
          %v807 = vsel %vm760, %v802, -inf
          %808 = vmax.xlane.f32.xlu0 %v807
          %v809 = vpop.xlane.xlu0 %808
          %v810 = vsub.f32 %v802, %v809
          %v811 = vmul.f32 %v810, 1.442695
          %v812 = vpow.pop %v811
          %v813 = vsel %vm760, %v812, 0.0
          %814 = vadd.xlane.f32.xlu0 %v813
          %v815 = vpop.xlane.xlu0 %814
          %v816 = vpack.c.bf16 %v812, %v812
          %v818 = vsel %vm760, %v816, 0
          %vm820 = vcmask 1043456
          %v822 = vsel %vm820, %v759, 0
          %824 = vmatprep.subr.bf16.mxu0 0
          %825 = vmatpush1.bf16.msra.mxu0 %v822
          %826 = vmatprep.subr.bf16.mxu0 0
          %827 = vmatpush1.bf16.msra.mxu0 0
          %828 = vmatprep.subr.bf16.mxu0 0
          %829 = vmatpush1.bf16.msra.mxu0 0
          %830 = vmatprep.subr.bf16.mxu0 0
          %831 = vmatpush1.bf16.msra.mxu0 0
          %832 = vmatprep.subr.bf16.mxu0 0
          %833 = vmatpush1.bf16.msra.mxu0 0
          %834 = vmatprep.subr.bf16.mxu0 0
          %835 = vmatpush1.bf16.msra.mxu0 0
          %836 = vmatprep.subr.bf16.mxu0 0
          %837 = vmatpush1.bf16.msra.mxu0 0
          %838 = vmatprep.subr.bf16.mxu0 0
          %839 = vmatpush1.bf16.msra.mxu0 0
          %840 = vmatprep.subr.bf16.mxu0 0
          %841 = vmatpush1.bf16.msra.mxu0 0
          %842 = vmatprep.subr.bf16.mxu0 0
          %843 = vmatpush1.bf16.msra.mxu0 0
          %844 = vmatprep.subr.bf16.mxu0 0
          %845 = vmatpush1.bf16.msra.mxu0 0
          %846 = vmatprep.subr.bf16.mxu0 0
          %847 = vmatpush1.bf16.msra.mxu0 0
          %848 = vmatprep.subr.bf16.mxu0 0
          %849 = vmatpush1.bf16.msra.mxu0 0
          %850 = vmatprep.subr.bf16.mxu0 0
          %851 = vmatpush1.bf16.msra.mxu0 0
          %852 = vmatprep.subr.bf16.mxu0 0
          %853 = vmatpush1.bf16.msra.mxu0 0
          %854 = vmatprep.subr.bf16.mxu0 0
          %855 = vmatpush1.bf16.msra.mxu0 0
          %856 = vmatprep.mubr.bf16.mxu0 0
          %857 = vmatmul.mubr.bf16.gmra.mrb[0].mxu0 %v818
          %v858 = vpop.f32.mrb[0].mxu0
          %v859 = vadd.f32 0.0, %v858
          %v860 = vpop.f32.mrb[0].mxu0
          %v861 = vpop.f32.mrb[0].mxu0
          %v862 = vpop.f32.mrb[0].mxu0
          %863 = vdwg.mxu0
          %v864 = vrcp.pop %v815
          %v865 = vmul.f32 %v859, %v864
          %v866 = vpack.c.bf16 %v865, %v865
          %s867 = smul.addr %s684, 4
          %s868 = scalar_lea.vmem %s4, %s867
          %v869 = vld [vmem:[%s868] sm:$0xf]
          %v871 = vsel %vm760, %v866, 0
          %v874 = vsel %vm820, %v869, 0
          %876 = vmatprep.subr.bf16.mxu0 0
          %877 = vmatpush1.bf16.msra.mxu0 %v874
          %878 = vmatprep.subr.bf16.mxu0 0
          %879 = vmatpush1.bf16.msra.mxu0 0
          %880 = vmatprep.subr.bf16.mxu0 0
          %881 = vmatpush1.bf16.msra.mxu0 0
          %882 = vmatprep.subr.bf16.mxu0 0
          %883 = vmatpush1.bf16.msra.mxu0 0
          %884 = vmatprep.subr.bf16.mxu0 0
          %885 = vmatpush1.bf16.msra.mxu0 0
          %886 = vmatprep.subr.bf16.mxu0 0
          %887 = vmatpush1.bf16.msra.mxu0 0
          %888 = vmatprep.subr.bf16.mxu0 0
          %889 = vmatpush1.bf16.msra.mxu0 0
          %890 = vmatprep.subr.bf16.mxu0 0
          %891 = vmatpush1.bf16.msra.mxu0 0
          %892 = vmatprep.subr.bf16.mxu0 0
          %893 = vmatpush1.bf16.msra.mxu0 0
          %894 = vmatprep.subr.bf16.mxu0 0
          %895 = vmatpush1.bf16.msra.mxu0 0
          %896 = vmatprep.subr.bf16.mxu0 0
          %897 = vmatpush1.bf16.msra.mxu0 0
          %898 = vmatprep.subr.bf16.mxu0 0
          %899 = vmatpush1.bf16.msra.mxu0 0
          %900 = vmatprep.subr.bf16.mxu0 0
          %901 = vmatpush1.bf16.msra.mxu0 0
          %902 = vmatprep.subr.bf16.mxu0 0
          %903 = vmatpush1.bf16.msra.mxu0 0
          %904 = vmatprep.subr.bf16.mxu0 0
          %905 = vmatpush1.bf16.msra.mxu0 0
          %906 = vmatprep.subr.bf16.mxu0 0
          %907 = vmatpush1.bf16.msra.mxu0 0
          %908 = vmatprep.mubr.bf16.mxu0 0
          %909 = vmatmul.mubr.bf16.gmra.mrb[0].mxu0 %v871
          %v910 = vpop.f32.mrb[0].mxu0
          %v911 = vadd.f32 0.0, %v910
          %v912 = vpop.f32.mrb[0].mxu0
          %v913 = vpop.f32.mrb[0].mxu0
          %v914 = vpop.f32.mrb[0].mxu0
          %915 = vdwg.mxu0
          %v916 = vadd.f32 %v689, %v911
        $region92: #{tpu_custom_call.1} parent=75 // loop_footer
          %s688 = sadd.s32 1, %s684
        $region93: #{tpu_custom_call.1} parent=75 // loop_footer_branch
          %683 = sbr.rel target = $region89
        $region94: #{tpu_custom_call.1} parent=75 // loop_exit
          _
        %v917 = vld [vmem:[%s5] sm:$0x1]
        %v919 = vlaneseq
        %v920 = vshrl.u32 %v919, 7
        %v921 = vsub.s32 0, %v920
        %v922 = vrot.slane %v917, %v921
        %v924 = vadd.f32 %v689, %v922
        %v925 = vadd.f32 %v652, %v924
        %v926 = vld [vmem:[%s8] sm:$0x1]
        %v927 = vld [vmem:[%s9] sm:$0x1]
        %v928 = vsel %vm653, %v925, 0.0
        %929 = vadd.xlane.f32.xlu0 %v928
        %v930 = vpop.xlane.xlu0 %929
        %v931 = vmul.f32 %v930, %v657
        %v932 = vsub.f32 %v925, %v931
        %v933 = vmul.f32 %v932, %v932
        %v934 = vsel %vm653, %v933, 0.0
        %935 = vadd.xlane.f32.xlu0 %v934
        %v936 = vpop.xlane.xlu0 %935
        %v937 = vmul.f32 %v936, %v657
        %v938 = vadd.f32 %v937, 1e-05
        %v939 = vrsqrt.pop %v938
        %v940 = vmul.f32 %v932, %v939
        %v942 = vlaneseq
        %v943 = vshrl.u32 %v942, 7
        %v944 = vsub.s32 0, %v943
        %v945 = vrot.slane %v926, %v944
        %v947 = vmul.f32 %v940, %v945
        %v949 = vlaneseq
        %v950 = vshrl.u32 %v949, 7
        %v951 = vsub.s32 0, %v950
        %v952 = vrot.slane %v927, %v951
        %v954 = vadd.f32 %v947, %v952
        %v955 = vpack.c.bf16 %v954, %v954
        %v956 = vld [vmem:[%s10] sm:$0xf]
        %v957 = vld [vmem:[%s10 + $0x4] sm:$0xf]
        %v958 = vld [vmem:[%s10 + $0x8] sm:$0xf]
        %v959 = vld [vmem:[%s10 + $0xc] sm:$0xf]
        %v960 = vld [vmem:[%s11] sm:$0x1]
        %v962 = vlaneseq
        %v963 = vshrl.u32 %v962, 7
        %v964 = vsub.s32 0, %v963
        %v965 = vrot.slane %v960, %v964
        %v971 = vunpack.c.l.b16 %v956
        %v972 = vunpack.c.l.b16 %v957
        %v973 = vunpack.c.l.b16 %v958
        %v974 = vunpack.c.l.b16 %v959
        %v975 = vpack.c.b16 %v972, %v971
        %v976 = vpack.c.b16 %v974, %v973
        %v980 = vsel %vm653, %v955, 0
        %982 = vmatprep.subr.bf16.mxu0 0
        %983 = vmatpush1.bf16.msra.mxu0 %v975
        %984 = vmatprep.subr.bf16.mxu0 0
        %985 = vmatpush1.bf16.msra.mxu0 %v976
        %986 = vmatprep.subr.bf16.mxu0 0
        %987 = vmatpush1.bf16.msra.mxu0 0
        %988 = vmatprep.subr.bf16.mxu0 0
        %989 = vmatpush1.bf16.msra.mxu0 0
        %990 = vmatprep.subr.bf16.mxu0 0
        %991 = vmatpush1.bf16.msra.mxu0 0
        %992 = vmatprep.subr.bf16.mxu0 0
        %993 = vmatpush1.bf16.msra.mxu0 0
        %994 = vmatprep.subr.bf16.mxu0 0
        %995 = vmatpush1.bf16.msra.mxu0 0
        %996 = vmatprep.subr.bf16.mxu0 0
        %997 = vmatpush1.bf16.msra.mxu0 0
        %998 = vmatprep.subr.bf16.mxu0 0
        %999 = vmatpush1.bf16.msra.mxu0 0
        %1000 = vmatprep.subr.bf16.mxu0 0
        %1001 = vmatpush1.bf16.msra.mxu0 0
        %1002 = vmatprep.subr.bf16.mxu0 0
        %1003 = vmatpush1.bf16.msra.mxu0 0
        %1004 = vmatprep.subr.bf16.mxu0 0
        %1005 = vmatpush1.bf16.msra.mxu0 0
        %1006 = vmatprep.subr.bf16.mxu0 0
        %1007 = vmatpush1.bf16.msra.mxu0 0
        %1008 = vmatprep.subr.bf16.mxu0 0
        %1009 = vmatpush1.bf16.msra.mxu0 0
        %1010 = vmatprep.subr.bf16.mxu0 0
        %1011 = vmatpush1.bf16.msra.mxu0 0
        %1012 = vmatprep.subr.bf16.mxu0 0
        %1013 = vmatpush1.bf16.msra.mxu0 0
        %1014 = vmatprep.mubr.bf16.mxu0 0
        %1015 = vmatmul.mubr.bf16.gmra.mrb[0].mxu0 %v980
        %v1016 = vpop.f32.mrb[0].mxu0
        %v1017 = vadd.f32 %v965, %v1016
        %v1018 = vpop.f32.mrb[0].mxu0
        %v1019 = vpop.f32.mrb[0].mxu0
        %v1020 = vpop.f32.mrb[0].mxu0
        %1021 = vdwg.mxu0
        %v1022 = vmax.f32 %v1017, 0.0
        %v1023 = vpack.c.bf16 %v1022, %v1022
        %v1024 = vld [vmem:[%s12] sm:$0xf]
        %v1025 = vld [vmem:[%s12 + $0x4] sm:$0xf]
        %v1026 = vld [vmem:[%s12 + $0x8] sm:$0xf]
        %v1027 = vld [vmem:[%s12 + $0xc] sm:$0xf]
        %v1028 = vld [vmem:[%s12 + $0x10] sm:$0xf]
        %v1029 = vld [vmem:[%s12 + $0x14] sm:$0xf]
        %v1030 = vld [vmem:[%s12 + $0x18] sm:$0xf]
        %v1031 = vld [vmem:[%s12 + $0x1c] sm:$0xf]
        %v1032 = vld [vmem:[%s12 + $0x20] sm:$0xf]
        %v1033 = vld [vmem:[%s12 + $0x24] sm:$0xf]
        %v1034 = vld [vmem:[%s12 + $0x28] sm:$0xf]
        %v1035 = vld [vmem:[%s12 + $0x2c] sm:$0xf]
        %v1036 = vld [vmem:[%s12 + $0x30] sm:$0xf]
        %v1037 = vld [vmem:[%s12 + $0x34] sm:$0xf]
        %v1038 = vld [vmem:[%s12 + $0x38] sm:$0xf]
        %v1039 = vld [vmem:[%s12 + $0x3c] sm:$0xf]
        %v1040 = vld [vmem:[%s13] sm:$0x1]
        %v1042 = vlaneseq
        %v1043 = vshrl.u32 %v1042, 7
        %v1044 = vsub.s32 0, %v1043
        %v1045 = vrot.slane %v1040, %v1044
        %v1063 = vunpack.c.l.b16 %v1024
        %v1064 = vunpack.c.l.b16 %v1025
        %v1065 = vunpack.c.l.b16 %v1026
        %v1066 = vunpack.c.l.b16 %v1027
        %v1067 = vunpack.c.l.b16 %v1028
        %v1068 = vunpack.c.l.b16 %v1029
        %v1069 = vunpack.c.l.b16 %v1030
        %v1070 = vunpack.c.l.b16 %v1031
        %v1071 = vunpack.c.l.b16 %v1032
        %v1072 = vunpack.c.l.b16 %v1033
        %v1073 = vunpack.c.l.b16 %v1034
        %v1074 = vunpack.c.l.b16 %v1035
        %v1075 = vunpack.c.l.b16 %v1036
        %v1076 = vunpack.c.l.b16 %v1037
        %v1077 = vunpack.c.l.b16 %v1038
        %v1078 = vunpack.c.l.b16 %v1039
        %v1079 = vpack.c.b16 %v1064, %v1063
        %v1080 = vpack.c.b16 %v1066, %v1065
        %v1081 = vpack.c.b16 %v1068, %v1067
        %v1082 = vpack.c.b16 %v1070, %v1069
        %v1083 = vpack.c.b16 %v1072, %v1071
        %v1084 = vpack.c.b16 %v1074, %v1073
        %v1085 = vpack.c.b16 %v1076, %v1075
        %v1086 = vpack.c.b16 %v1078, %v1077
        %1095 = vmatprep.subr.bf16.mxu0 0
        %1096 = vmatpush1.bf16.msra.mxu0 %v1079
        %1097 = vmatprep.subr.bf16.mxu0 0
        %1098 = vmatpush1.bf16.msra.mxu0 %v1080
        %1099 = vmatprep.subr.bf16.mxu0 0
        %1100 = vmatpush1.bf16.msra.mxu0 %v1081
        %1101 = vmatprep.subr.bf16.mxu0 0
        %1102 = vmatpush1.bf16.msra.mxu0 %v1082
        %1103 = vmatprep.subr.bf16.mxu0 0
        %1104 = vmatpush1.bf16.msra.mxu0 %v1083
        %1105 = vmatprep.subr.bf16.mxu0 0
        %1106 = vmatpush1.bf16.msra.mxu0 %v1084
        %1107 = vmatprep.subr.bf16.mxu0 0
        %1108 = vmatpush1.bf16.msra.mxu0 %v1085
        %1109 = vmatprep.subr.bf16.mxu0 0
        %1110 = vmatpush1.bf16.msra.mxu0 %v1086
        %1111 = vmatprep.subr.bf16.mxu0 0
        %1112 = vmatpush1.bf16.msra.mxu0 0
        %1113 = vmatprep.subr.bf16.mxu0 0
        %1114 = vmatpush1.bf16.msra.mxu0 0
        %1115 = vmatprep.subr.bf16.mxu0 0
        %1116 = vmatpush1.bf16.msra.mxu0 0
        %1117 = vmatprep.subr.bf16.mxu0 0
        %1118 = vmatpush1.bf16.msra.mxu0 0
        %1119 = vmatprep.subr.bf16.mxu0 0
        %1120 = vmatpush1.bf16.msra.mxu0 0
        %1121 = vmatprep.subr.bf16.mxu0 0
        %1122 = vmatpush1.bf16.msra.mxu0 0
        %1123 = vmatprep.subr.bf16.mxu0 0
        %1124 = vmatpush1.bf16.msra.mxu0 0
        %1125 = vmatprep.subr.bf16.mxu0 0
        %1126 = vmatpush1.bf16.msra.mxu0 0
        %1127 = vmatprep.mubr.bf16.mxu0 0
        %1128 = vmatmul.mubr.bf16.gmra.mrb[0].mxu0 %v1023
        %v1129 = vpop.f32.mrb[0].mxu0
        %v1130 = vadd.f32 %v1045, %v1129
        %v1131 = vpop.f32.mrb[0].mxu0
        %v1132 = vpop.f32.mrb[0].mxu0
        %v1133 = vpop.f32.mrb[0].mxu0
        %1134 = vdwg.mxu0
        %v1135 = vadd.f32 %v925, %v1130
        %1136 = vst.msk [vmem:[%s472] sm:$0xff] %vm653, %v1135
        %s1137 = sand.u32 %s349, 1
        %s1138 = scalar_lea.sflag [#allocation5], %s1137
        %s1139 = sand.u32 %s349, 1
        %s1140 = smul.addr %s1139, 8
        %s1141 = scalar_lea.vmem [#allocation4], %s1140
        // Predicated region
        $region95: #{tpu_custom_call.1} parent=75 // pred_check
          %p1142 = pneg %p359
        $region96: #{tpu_custom_call.1} parent=75 // pred_check_branch
          %1144 = sbr.rel (%p1142) target = $region98
        $region97: #{tpu_custom_call.1} parent=75 // pred_region
          %s1146 = ssub.s32 128, 128
          %1147 = vsyncadd %s1138, %s1146
          %s1148 = sadd.s32 %s33, %s32
          %s1149 = smul.addr %s1148, 128
          %s1150 = scalar_lea.hbm %s14, %s1149
          %s1152 = sshll.u32 %s1141, 4
          %s1153 = int_to_ptr.vmem [resolvable:$true] %s1152
          %1155 = dma.vmem_to_hbm [thread:$0]  %s1153, 128, %s1150, %s1138
        $region98: #{tpu_custom_call.1} parent=75 // pred_fallthru
          _
      $region76: #{tpu_custom_call.1} parent=5 // pred_fallthru
        _
      %p1156 = scmp.le.s32.totalorder 2, %s23
      // Predicated region
      $region99: #{tpu_custom_call.1} parent=5 // pred_check
        %p1157 = pneg %p1156
      $region100: #{tpu_custom_call.1} parent=5 // pred_check_branch
        %1159 = sbr.rel (%p1157) target = $region102
      $region101: #{tpu_custom_call.1} parent=5 // pred_region
        %s1160 = ssub.s32 %s23, 2
        // Predicated region
        $region103: #{tpu_custom_call.1} parent=101 // pred_check
          %p1161 = pneg %p365
        $region104: #{tpu_custom_call.1} parent=101 // pred_check_branch
          %1163 = sbr.rel (%p1161) target = $region106
        $region105: #{tpu_custom_call.1} parent=101 // pred_region
          %s1164 = sand.u32 %s350, 1
          %s1165 = scalar_lea.sflag [#allocation5], %s1164
          %s1166 = sand.u32 %s350, 1
          %s1167 = smul.addr %s1166, 8
          %s1168 = scalar_lea.vmem [#allocation4], %s1167
          %1169 = dma.done %s1165, 128
        $region106: #{tpu_custom_call.1} parent=101 // pred_fallthru
          _
      $region102: #{tpu_custom_call.1} parent=5 // pred_fallthru
        _
    $region6: #{tpu_custom_call.1} parent=1 // loop_footer
      %s27 = sadd.s32 1, %s23
    $region7: #{tpu_custom_call.1} parent=1 // loop_footer_branch
      %22 = sbr.rel target = $region3
    $region8: #{tpu_custom_call.1} parent=1 // loop_exit
      _
    %1170 = vsyncpa [#allocation5], 1
    %s1171 = scalar_lea.sflag [#allocation5], 1
    %1172 = vsyncpa %s1171, 1

// kernel: tpu_custom_call.1
$region0: #{tpu_custom_call.1}
  #allocation0 [shape = 'u32[]', space=smem, size = 0x4, offset = 0x4, fixed_abs, tag = 'smem constant byte address 0x4 - core index']
  #allocation1 [shape = 'u32[144,128]{1,0:T(1,128)}', space=vmem, size = 0x12000, scoped, tag = 'internal scratch']
  #allocation2 [shape = 'bf16[4,8,8]{2,1,0:T(8,128)(2,1)}', space=vmem, size = 0x2000, scoped, tag = 'scratch operand']
  #allocation3 [shape = 'bf16[4,8,8]{2,1,0:T(8,128)(2,1)}', space=vmem, size = 0x2000, scoped, tag = 'scratch operand']
  %s0 = inlined_call_operand.vmem [shape: f32[2,8,32], index: 0, kind: input, shape index: {}]
  %s1 = inlined_call_operand.vmem [shape: bf16[4,32,8], index: 1, kind: input, shape index: {}]
  %s2 = inlined_call_operand.vmem [shape: bf16[4,32,8], index: 2, kind: input, shape index: {}]
  %s3 = inlined_call_operand.vmem [shape: bf16[4,32,8], index: 3, kind: input, shape index: {}]
  %s4 = inlined_call_operand.vmem [shape: bf16[4,8,32], index: 4, kind: input, shape index: {}]
  %s5 = inlined_call_operand.vmem [shape: f32[1,32], index: 5, kind: input, shape index: {}]
  %s6 = inlined_call_operand.vmem [shape: f32[1,32], index: 6, kind: input, shape index: {}]
  %s7 = inlined_call_operand.vmem [shape: f32[1,32], index: 7, kind: input, shape index: {}]
  %s8 = inlined_call_operand.vmem [shape: f32[1,32], index: 8, kind: input, shape index: {}]
  %s9 = inlined_call_operand.vmem [shape: f32[1,32], index: 9, kind: input, shape index: {}]
  %s10 = inlined_call_operand.vmem [shape: bf16[32,128], index: 10, kind: input, shape index: {}]
  %s11 = inlined_call_operand.vmem [shape: f32[1,128], index: 11, kind: input, shape index: {}]
  %s12 = inlined_call_operand.vmem [shape: bf16[128,32], index: 12, kind: input, shape index: {}]
  %s13 = inlined_call_operand.vmem [shape: f32[1,32], index: 13, kind: input, shape index: {}]
  %s14 = inlined_call_operand.hbm [shape: f32[2,8,32], index: 14, kind: output, shape index: {}]
  %s15 = sld [smem:[#allocation0]]
  $region107: #{tpu_custom_call.1} parent=0
    _
  %s17 = ssub.s32 1, %s15
  %s18 = scalar_select 0, %s17, %s15
  $region1: #{tpu_custom_call.1} parent=0
    #allocation4 [shape = 'u8[8192]{0}', space=vmem, size = 0x2000, scoped, tag = 'output window, operand 0']
    #allocation5 [shape = 's32[2]{0}', space=sflag, size = 0x8, scoped, tag = 'scoped memory for tpu_custom_call.1']
    %19 = vsyncpa [#allocation5], 0
    %s20 = scalar_lea.sflag [#allocation5], 1
    %21 = vsyncpa %s20, 0
    loop: start=0, step=1, limit=4
    $region2: #{tpu_custom_call.1} parent=1 // loop_pre_header
      _
    $region3: #{tpu_custom_call.1} parent=1 // loop_header
      %s23 = sphi 0, %s27
      %p24 = scmp.ge.s32.totalorder %s23, 4
      %s30 = sphi 0, %s42
      %s31 = sphi 0, %s38
      %s32 = sphi 0, %s30
      %s33 = sphi 0, %s31
      %s34 = sphi 0, %s32
      %s35 = sphi 0, %s33
      %s45 = sphi 0, %s47
      %s48 = sphi 0, %s45
      %s49 = sphi 0, %s48
      %s65 = sphi 0, %s49
      %s69 = sphi 0, %s69
      %s71 = sphi 0, %s69
      %s72 = sphi 0, %s71
      %s86 = sphi 0, %s72
      %s90 = sphi 0, %s90
      %s92 = sphi 0, %s90
      %s93 = sphi 0, %s92
      %s107 = sphi 0, %s93
      %s111 = sphi 0, %s111
      %s113 = sphi 0, %s111
      %s114 = sphi 0, %s113
      %s128 = sphi 0, %s114
      %s132 = sphi 0, %s132
      %s134 = sphi 0, %s132
      %s135 = sphi 0, %s134
      %s149 = sphi 0, %s135
      %s153 = sphi 0, %s153
      %s155 = sphi 0, %s153
      %s156 = sphi 0, %s155
      %s170 = sphi 0, %s156
      %s174 = sphi 0, %s174
      %s176 = sphi 0, %s174
      %s177 = sphi 0, %s176
      %s191 = sphi 0, %s177
      %s195 = sphi 0, %s195
      %s197 = sphi 0, %s195
      %s198 = sphi 0, %s197
      %s212 = sphi 0, %s198
      %s216 = sphi 0, %s216
      %s218 = sphi 0, %s216
      %s219 = sphi 0, %s218
      %s233 = sphi 0, %s219
      %s237 = sphi 0, %s237
      %s239 = sphi 0, %s237
      %s240 = sphi 0, %s239
      %s254 = sphi 0, %s240
      %s258 = sphi 0, %s258
      %s260 = sphi 0, %s258
      %s261 = sphi 0, %s260
      %s275 = sphi 0, %s261
      %s279 = sphi 0, %s279
      %s281 = sphi 0, %s279
      %s282 = sphi 0, %s281
      %s296 = sphi 0, %s282
      %s300 = sphi 0, %s300
      %s302 = sphi 0, %s300
      %s303 = sphi 0, %s302
      %s317 = sphi 0, %s303
      %s321 = sphi 0, %s321
      %s323 = sphi 0, %s321
      %s324 = sphi 0, %s323
      %s338 = sphi 0, %s324
      %s346 = sphi 0, %s348
      %s349 = sphi 0, %s346
      %s350 = sphi 0, %s349
      %s366 = sphi 0, %s350
    $region4: #{tpu_custom_call.1} parent=1 // loop_header_branch
      %26 = sbr.rel (%p24) target = $region8
    $region5: #{tpu_custom_call.1} parent=1 // loop_body
      %s28 = ssub.s32 %s23, 1
      %s29 = ssub.s32 %s23, 2
      %s36 = sadd.s32 1, %s31
      %p37 = scmp.ge.s32.totalorder %s36, 1
      %s38 = scalar_select %p37, 0, %s36
      %s39 = sadd.s32 1, %s30
      %s40 = scalar_select %p37, %s39, %s30
      %p41 = scmp.ge.s32.totalorder %s40, 2
      %s42 = scalar_select %p41, 0, %s40
      %s43 = ssub.s32 %s30, %s42
      %p44 = scmp.eq.s32.totalorder %s43, 0
      %s46 = sadd.s32 %s45, 1
      %s47 = scalar_select %p44, %s45, %s46
      %p50 = pneg %p44
      %p51 = scmp.eq.s32.totalorder %s23, 1
      %p52 = por %p50, %p51
      %p53 = scmp.ne.s32.totalorder %s45, %s48
      %p54 = scmp.eq.s32.totalorder %s23, 0
      %p55 = por %p53, %p54
      %p56 = scmp.ne.s32.totalorder %s45, %s48
      %p57 = scmp.eq.s32.totalorder %s28, 1
      %p58 = por %p56, %p57
      %p59 = scmp.ne.s32.totalorder %s48, %s49
      %p60 = scmp.eq.s32.totalorder %s28, 0
      %p61 = por %p59, %p60
      %p62 = scmp.ne.s32.totalorder %s48, %s49
      %p63 = scmp.eq.s32.totalorder %s29, 1
      %p64 = por %p62, %p63
      %p66 = scmp.ne.s32.totalorder %s49, %s65
      %p67 = scmp.eq.s32.totalorder %s29, 0
      %p68 = por %p66, %p67
      %s70 = sadd.s32 %s69, 1
      %p73 = scmp.eq.s32.totalorder %s23, 1
      %p74 = scmp.ne.s32.totalorder %s69, %s71
      %p75 = scmp.eq.s32.totalorder %s23, 0
      %p76 = por %p74, %p75
      %p77 = scmp.ne.s32.totalorder %s69, %s71
      %p78 = scmp.eq.s32.totalorder %s28, 1
      %p79 = por %p77, %p78
      %p80 = scmp.ne.s32.totalorder %s71, %s72
      %p81 = scmp.eq.s32.totalorder %s28, 0
      %p82 = por %p80, %p81
      %p83 = scmp.ne.s32.totalorder %s71, %s72
      %p84 = scmp.eq.s32.totalorder %s29, 1
      %p85 = por %p83, %p84
      %p87 = scmp.ne.s32.totalorder %s72, %s86
      %p88 = scmp.eq.s32.totalorder %s29, 0
      %p89 = por %p87, %p88
      %s91 = sadd.s32 %s90, 1
      %p94 = scmp.eq.s32.totalorder %s23, 1
      %p95 = scmp.ne.s32.totalorder %s90, %s92
      %p96 = scmp.eq.s32.totalorder %s23, 0
      %p97 = por %p95, %p96
      %p98 = scmp.ne.s32.totalorder %s90, %s92
      %p99 = scmp.eq.s32.totalorder %s28, 1
      %p100 = por %p98, %p99
      %p101 = scmp.ne.s32.totalorder %s92, %s93
      %p102 = scmp.eq.s32.totalorder %s28, 0
      %p103 = por %p101, %p102
      %p104 = scmp.ne.s32.totalorder %s92, %s93
      %p105 = scmp.eq.s32.totalorder %s29, 1
      %p106 = por %p104, %p105
      %p108 = scmp.ne.s32.totalorder %s93, %s107
      %p109 = scmp.eq.s32.totalorder %s29, 0
      %p110 = por %p108, %p109
      %s112 = sadd.s32 %s111, 1
      %p115 = scmp.eq.s32.totalorder %s23, 1
      %p116 = scmp.ne.s32.totalorder %s111, %s113
      %p117 = scmp.eq.s32.totalorder %s23, 0
      %p118 = por %p116, %p117
      %p119 = scmp.ne.s32.totalorder %s111, %s113
      %p120 = scmp.eq.s32.totalorder %s28, 1
      %p121 = por %p119, %p120
      %p122 = scmp.ne.s32.totalorder %s113, %s114
      %p123 = scmp.eq.s32.totalorder %s28, 0
      %p124 = por %p122, %p123
      %p125 = scmp.ne.s32.totalorder %s113, %s114
      %p126 = scmp.eq.s32.totalorder %s29, 1
      %p127 = por %p125, %p126
      %p129 = scmp.ne.s32.totalorder %s114, %s128
      %p130 = scmp.eq.s32.totalorder %s29, 0
      %p131 = por %p129, %p130
      %s133 = sadd.s32 %s132, 1
      %p136 = scmp.eq.s32.totalorder %s23, 1
      %p137 = scmp.ne.s32.totalorder %s132, %s134
      %p138 = scmp.eq.s32.totalorder %s23, 0
      %p139 = por %p137, %p138
      %p140 = scmp.ne.s32.totalorder %s132, %s134
      %p141 = scmp.eq.s32.totalorder %s28, 1
      %p142 = por %p140, %p141
      %p143 = scmp.ne.s32.totalorder %s134, %s135
      %p144 = scmp.eq.s32.totalorder %s28, 0
      %p145 = por %p143, %p144
      %p146 = scmp.ne.s32.totalorder %s134, %s135
      %p147 = scmp.eq.s32.totalorder %s29, 1
      %p148 = por %p146, %p147
      %p150 = scmp.ne.s32.totalorder %s135, %s149
      %p151 = scmp.eq.s32.totalorder %s29, 0
      %p152 = por %p150, %p151
      %s154 = sadd.s32 %s153, 1
      %p157 = scmp.eq.s32.totalorder %s23, 1
      %p158 = scmp.ne.s32.totalorder %s153, %s155
      %p159 = scmp.eq.s32.totalorder %s23, 0
      %p160 = por %p158, %p159
      %p161 = scmp.ne.s32.totalorder %s153, %s155
      %p162 = scmp.eq.s32.totalorder %s28, 1
      %p163 = por %p161, %p162
      %p164 = scmp.ne.s32.totalorder %s155, %s156
      %p165 = scmp.eq.s32.totalorder %s28, 0
      %p166 = por %p164, %p165
      %p167 = scmp.ne.s32.totalorder %s155, %s156
      %p168 = scmp.eq.s32.totalorder %s29, 1
      %p169 = por %p167, %p168
      %p171 = scmp.ne.s32.totalorder %s156, %s170
      %p172 = scmp.eq.s32.totalorder %s29, 0
      %p173 = por %p171, %p172
      %s175 = sadd.s32 %s174, 1
      %p178 = scmp.eq.s32.totalorder %s23, 1
      %p179 = scmp.ne.s32.totalorder %s174, %s176
      %p180 = scmp.eq.s32.totalorder %s23, 0
      %p181 = por %p179, %p180
      %p182 = scmp.ne.s32.totalorder %s174, %s176
      %p183 = scmp.eq.s32.totalorder %s28, 1
      %p184 = por %p182, %p183
      %p185 = scmp.ne.s32.totalorder %s176, %s177
      %p186 = scmp.eq.s32.totalorder %s28, 0
      %p187 = por %p185, %p186
      %p188 = scmp.ne.s32.totalorder %s176, %s177
      %p189 = scmp.eq.s32.totalorder %s29, 1
      %p190 = por %p188, %p189
      %p192 = scmp.ne.s32.totalorder %s177, %s191
      %p193 = scmp.eq.s32.totalorder %s29, 0
      %p194 = por %p192, %p193
      %s196 = sadd.s32 %s195, 1
      %p199 = scmp.eq.s32.totalorder %s23, 1
      %p200 = scmp.ne.s32.totalorder %s195, %s197
      %p201 = scmp.eq.s32.totalorder %s23, 0
      %p202 = por %p200, %p201
      %p203 = scmp.ne.s32.totalorder %s195, %s197
      %p204 = scmp.eq.s32.totalorder %s28, 1
      %p205 = por %p203, %p204
      %p206 = scmp.ne.s32.totalorder %s197, %s198
      %p207 = scmp.eq.s32.totalorder %s28, 0
      %p208 = por %p206, %p207
      %p209 = scmp.ne.s32.totalorder %s197, %s198
      %p210 = scmp.eq.s32.totalorder %s29, 1
      %p211 = por %p209, %p210
      %p213 = scmp.ne.s32.totalorder %s198, %s212
      %p214 = scmp.eq.s32.totalorder %s29, 0
      %p215 = por %p213, %p214
      %s217 = sadd.s32 %s216, 1
      %p220 = scmp.eq.s32.totalorder %s23, 1
      %p221 = scmp.ne.s32.totalorder %s216, %s218
      %p222 = scmp.eq.s32.totalorder %s23, 0
      %p223 = por %p221, %p222
      %p224 = scmp.ne.s32.totalorder %s216, %s218
      %p225 = scmp.eq.s32.totalorder %s28, 1
      %p226 = por %p224, %p225
      %p227 = scmp.ne.s32.totalorder %s218, %s219
      %p228 = scmp.eq.s32.totalorder %s28, 0
      %p229 = por %p227, %p228
      %p230 = scmp.ne.s32.totalorder %s218, %s219
      %p231 = scmp.eq.s32.totalorder %s29, 1
      %p232 = por %p230, %p231
      %p234 = scmp.ne.s32.totalorder %s219, %s233
      %p235 = scmp.eq.s32.totalorder %s29, 0
      %p236 = por %p234, %p235
      %s238 = sadd.s32 %s237, 1
      %p241 = scmp.eq.s32.totalorder %s23, 1
      %p242 = scmp.ne.s32.totalorder %s237, %s239
      %p243 = scmp.eq.s32.totalorder %s23, 0
      %p244 = por %p242, %p243
      %p245 = scmp.ne.s32.totalorder %s237, %s239
      %p246 = scmp.eq.s32.totalorder %s28, 1
      %p247 = por %p245, %p246
      %p248 = scmp.ne.s32.totalorder %s239, %s240
      %p249 = scmp.eq.s32.totalorder %s28, 0
      %p250 = por %p248, %p249
      %p251 = scmp.ne.s32.totalorder %s239, %s240
      %p252 = scmp.eq.s32.totalorder %s29, 1
      %p253 = por %p251, %p252
      %p255 = scmp.ne.s32.totalorder %s240, %s254
      %p256 = scmp.eq.s32.totalorder %s29, 0
      %p257 = por %p255, %p256
      %s259 = sadd.s32 %s258, 1
      %p262 = scmp.eq.s32.totalorder %s23, 1
      %p263 = scmp.ne.s32.totalorder %s258, %s260
      %p264 = scmp.eq.s32.totalorder %s23, 0
      %p265 = por %p263, %p264
      %p266 = scmp.ne.s32.totalorder %s258, %s260
      %p267 = scmp.eq.s32.totalorder %s28, 1
      %p268 = por %p266, %p267
      %p269 = scmp.ne.s32.totalorder %s260, %s261
      %p270 = scmp.eq.s32.totalorder %s28, 0
      %p271 = por %p269, %p270
      %p272 = scmp.ne.s32.totalorder %s260, %s261
      %p273 = scmp.eq.s32.totalorder %s29, 1
      %p274 = por %p272, %p273
      %p276 = scmp.ne.s32.totalorder %s261, %s275
      %p277 = scmp.eq.s32.totalorder %s29, 0
      %p278 = por %p276, %p277
      %s280 = sadd.s32 %s279, 1
      %p283 = scmp.eq.s32.totalorder %s23, 1
      %p284 = scmp.ne.s32.totalorder %s279, %s281
      %p285 = scmp.eq.s32.totalorder %s23, 0
      %p286 = por %p284, %p285
      %p287 = scmp.ne.s32.totalorder %s279, %s281
      %p288 = scmp.eq.s32.totalorder %s28, 1
      %p289 = por %p287, %p288
      %p290 = scmp.ne.s32.totalorder %s281, %s282
      %p291 = scmp.eq.s32.totalorder %s28, 0
      %p292 = por %p290, %p291
      %p293 = scmp.ne.s32.totalorder %s281, %s282
      %p294 = scmp.eq.s32.totalorder %s29, 1
      %p295 = por %p293, %p294
      %p297 = scmp.ne.s32.totalorder %s282, %s296
      %p298 = scmp.eq.s32.totalorder %s29, 0
      %p299 = por %p297, %p298
      %s301 = sadd.s32 %s300, 1
      %p304 = scmp.eq.s32.totalorder %s23, 1
      %p305 = scmp.ne.s32.totalorder %s300, %s302
      %p306 = scmp.eq.s32.totalorder %s23, 0
      %p307 = por %p305, %p306
      %p308 = scmp.ne.s32.totalorder %s300, %s302
      %p309 = scmp.eq.s32.totalorder %s28, 1
      %p310 = por %p308, %p309
      %p311 = scmp.ne.s32.totalorder %s302, %s303
      %p312 = scmp.eq.s32.totalorder %s28, 0
      %p313 = por %p311, %p312
      %p314 = scmp.ne.s32.totalorder %s302, %s303
      %p315 = scmp.eq.s32.totalorder %s29, 1
      %p316 = por %p314, %p315
      %p318 = scmp.ne.s32.totalorder %s303, %s317
      %p319 = scmp.eq.s32.totalorder %s29, 0
      %p320 = por %p318, %p319
      %s322 = sadd.s32 %s321, 1
      %p325 = scmp.eq.s32.totalorder %s23, 1
      %p326 = scmp.ne.s32.totalorder %s321, %s323
      %p327 = scmp.eq.s32.totalorder %s23, 0
      %p328 = por %p326, %p327
      %p329 = scmp.ne.s32.totalorder %s321, %s323
      %p330 = scmp.eq.s32.totalorder %s28, 1
      %p331 = por %p329, %p330
      %p332 = scmp.ne.s32.totalorder %s323, %s324
      %p333 = scmp.eq.s32.totalorder %s28, 0
      %p334 = por %p332, %p333
      %p335 = scmp.ne.s32.totalorder %s323, %s324
      %p336 = scmp.eq.s32.totalorder %s29, 1
      %p337 = por %p335, %p336
      %p339 = scmp.ne.s32.totalorder %s324, %s338
      %p340 = scmp.eq.s32.totalorder %s29, 0
      %p341 = por %p339, %p340
      %s342 = ssub.s32 %s30, %s42
      %s343 = ssub.s32 %s31, %s38
      %s344 = sor.u32 %s342, %s343
      %p345 = scmp.eq.s32.totalorder %s344, 0
      %s347 = sadd.s32 %s346, 1
      %s348 = scalar_select %p345, %s346, %s347
      %p351 = pneg %p345
      %p352 = scmp.eq.s32.totalorder %s23, 1
      %p353 = por %p351, %p352
      %p354 = scmp.ne.s32.totalorder %s346, %s349
      %p355 = scmp.eq.s32.totalorder %s23, 0
      %p356 = por %p354, %p355
      %p357 = scmp.ne.s32.totalorder %s346, %s349
      %p358 = scmp.eq.s32.totalorder %s28, 1
      %p359 = por %p357, %p358
      %p360 = scmp.ne.s32.totalorder %s349, %s350
      %p361 = scmp.eq.s32.totalorder %s28, 0
      %p362 = por %p360, %p361
      %p363 = scmp.ne.s32.totalorder %s349, %s350
      %p364 = scmp.eq.s32.totalorder %s29, 1
      %p365 = por %p363, %p364
      %p367 = scmp.ne.s32.totalorder %s350, %s366
      %p368 = scmp.eq.s32.totalorder %s29, 0
      %p369 = por %p367, %p368
      %p370 = scmp.le.s32.totalorder 1, %s23
      %p371 = scmp.lt.s32.totalorder %s23, 3
      %p372 = pnand %p370, %p371
      %p373 = pneg %p372
      // Predicated region
      $region9: #{tpu_custom_call.1} parent=5 // pred_check
        _
      $region10: #{tpu_custom_call.1} parent=5 // pred_check_branch
        %375 = sbr.rel (%p372) target = $region12
      $region11: #{tpu_custom_call.1} parent=5 // pred_region
        %s376 = ssub.s32 %s23, 1
        // Predicated region
        $region13: #{tpu_custom_call.1} parent=11 // pred_check
          %p377 = pneg %p82
        $region14: #{tpu_custom_call.1} parent=11 // pred_check_branch
          %379 = sbr.rel (%p377) target = $region16
        $region15: #{tpu_custom_call.1} parent=11 // pred_region
          _
        $region16: #{tpu_custom_call.1} parent=11 // pred_fallthru
          _
        // Predicated region
        $region17: #{tpu_custom_call.1} parent=11 // pred_check
          %p380 = pneg %p103
        $region18: #{tpu_custom_call.1} parent=11 // pred_check_branch
          %382 = sbr.rel (%p380) target = $region20
        $region19: #{tpu_custom_call.1} parent=11 // pred_region
          _
        $region20: #{tpu_custom_call.1} parent=11 // pred_fallthru
          _
        // Predicated region
        $region21: #{tpu_custom_call.1} parent=11 // pred_check
          %p383 = pneg %p124
        $region22: #{tpu_custom_call.1} parent=11 // pred_check_branch
          %385 = sbr.rel (%p383) target = $region24
        $region23: #{tpu_custom_call.1} parent=11 // pred_region
          _
        $region24: #{tpu_custom_call.1} parent=11 // pred_fallthru
          _
        // Predicated region
        $region25: #{tpu_custom_call.1} parent=11 // pred_check
          %p386 = pneg %p145
        $region26: #{tpu_custom_call.1} parent=11 // pred_check_branch
          %388 = sbr.rel (%p386) target = $region28
        $region27: #{tpu_custom_call.1} parent=11 // pred_region
          _
        $region28: #{tpu_custom_call.1} parent=11 // pred_fallthru
          _
        // Predicated region
        $region29: #{tpu_custom_call.1} parent=11 // pred_check
          %p389 = pneg %p166
        $region30: #{tpu_custom_call.1} parent=11 // pred_check_branch
          %391 = sbr.rel (%p389) target = $region32
        $region31: #{tpu_custom_call.1} parent=11 // pred_region
          _
        $region32: #{tpu_custom_call.1} parent=11 // pred_fallthru
          _
        // Predicated region
        $region33: #{tpu_custom_call.1} parent=11 // pred_check
          %p392 = pneg %p187
        $region34: #{tpu_custom_call.1} parent=11 // pred_check_branch
          %394 = sbr.rel (%p392) target = $region36
        $region35: #{tpu_custom_call.1} parent=11 // pred_region
          _
        $region36: #{tpu_custom_call.1} parent=11 // pred_fallthru
          _
        // Predicated region
        $region37: #{tpu_custom_call.1} parent=11 // pred_check
          %p395 = pneg %p208
        $region38: #{tpu_custom_call.1} parent=11 // pred_check_branch
          %397 = sbr.rel (%p395) target = $region40
        $region39: #{tpu_custom_call.1} parent=11 // pred_region
          _
        $region40: #{tpu_custom_call.1} parent=11 // pred_fallthru
          _
        // Predicated region
        $region41: #{tpu_custom_call.1} parent=11 // pred_check
          %p398 = pneg %p229
        $region42: #{tpu_custom_call.1} parent=11 // pred_check_branch
          %400 = sbr.rel (%p398) target = $region44
        $region43: #{tpu_custom_call.1} parent=11 // pred_region
          _
        $region44: #{tpu_custom_call.1} parent=11 // pred_fallthru
          _
        // Predicated region
        $region45: #{tpu_custom_call.1} parent=11 // pred_check
          %p401 = pneg %p250
        $region46: #{tpu_custom_call.1} parent=11 // pred_check_branch
          %403 = sbr.rel (%p401) target = $region48
        $region47: #{tpu_custom_call.1} parent=11 // pred_region
          _
        $region48: #{tpu_custom_call.1} parent=11 // pred_fallthru
          _
        // Predicated region
        $region49: #{tpu_custom_call.1} parent=11 // pred_check
          %p404 = pneg %p271
        $region50: #{tpu_custom_call.1} parent=11 // pred_check_branch
          %406 = sbr.rel (%p404) target = $region52
        $region51: #{tpu_custom_call.1} parent=11 // pred_region
          _
        $region52: #{tpu_custom_call.1} parent=11 // pred_fallthru
          _
        // Predicated region
        $region53: #{tpu_custom_call.1} parent=11 // pred_check
          %p407 = pneg %p292
        $region54: #{tpu_custom_call.1} parent=11 // pred_check_branch
          %409 = sbr.rel (%p407) target = $region56
        $region55: #{tpu_custom_call.1} parent=11 // pred_region
          _
        $region56: #{tpu_custom_call.1} parent=11 // pred_fallthru
          _
        // Predicated region
        $region57: #{tpu_custom_call.1} parent=11 // pred_check
          %p410 = pneg %p313
        $region58: #{tpu_custom_call.1} parent=11 // pred_check_branch
          %412 = sbr.rel (%p410) target = $region60
        $region59: #{tpu_custom_call.1} parent=11 // pred_region
          _
        $region60: #{tpu_custom_call.1} parent=11 // pred_fallthru
          _
        // Predicated region
        $region61: #{tpu_custom_call.1} parent=11 // pred_check
          %p413 = pneg %p334
        $region62: #{tpu_custom_call.1} parent=11 // pred_check_branch
          %415 = sbr.rel (%p413) target = $region64
        $region63: #{tpu_custom_call.1} parent=11 // pred_region
          _
        $region64: #{tpu_custom_call.1} parent=11 // pred_fallthru
          _
      $region12: #{tpu_custom_call.1} parent=5 // pred_fallthru
        _
      %p416 = scmp.lt.s32.totalorder %s23, 2
      // Predicated region
      $region65: #{tpu_custom_call.1} parent=5 // pred_check
        %p417 = pneg %p416
      $region66: #{tpu_custom_call.1} parent=5 // pred_check_branch
        %419 = sbr.rel (%p417) target = $region68
      $region67: #{tpu_custom_call.1} parent=5 // pred_region
        // Predicated region
        $region69: #{tpu_custom_call.1} parent=67 // pred_check
          %p420 = pneg %p55
        $region70: #{tpu_custom_call.1} parent=67 // pred_check_branch
          %422 = sbr.rel (%p420) target = $region72
        $region71: #{tpu_custom_call.1} parent=67 // pred_region
          %p423 = scmp.lt.s32.totalorder %s30, 1
          %s424 = scalar_select %p423, %s30, 1
          %s425 = smul.addr %s424, 8
          %s426 = scalar_lea.vmem %s0, %s425
        $region72: #{tpu_custom_call.1} parent=67 // pred_fallthru
          _
      $region68: #{tpu_custom_call.1} parent=5 // pred_fallthru
        _
      %p427 = scmp.le.s32.totalorder 1, %s23
      %p428 = scmp.lt.s32.totalorder %s23, 3
      %p429 = pnand %p427, %p428
      %p430 = pneg %p429
      // Predicated region
      $region73: #{tpu_custom_call.1} parent=5 // pred_check
        _
      $region74: #{tpu_custom_call.1} parent=5 // pred_check_branch
        %432 = sbr.rel (%p429) target = $region76
      $region75: #{tpu_custom_call.1} parent=5 // pred_region
        %s433 = ssub.s32 %s23, 1
        %p434 = scmp.lt.s32.totalorder %s32, 1
        %s435 = scalar_select %p434, %s32, 1
        %s436 = smul.addr %s435, 8
        %s437 = scalar_lea.vmem %s0, %s436
        %p438 = pneg %p61
        %p439 = pneg %p58
        %p440 = pneg %p82
        %p441 = pneg %p79
        %p442 = pneg %p103
        %p443 = pneg %p100
        %p444 = pneg %p124
        %p445 = pneg %p121
        %p446 = pneg %p145
        %p447 = pneg %p142
        %p448 = pneg %p166
        %p449 = pneg %p163
        %p450 = pneg %p187
        %p451 = pneg %p184
        %p452 = pneg %p208
        %p453 = pneg %p205
        %p454 = pneg %p229
        %p455 = pneg %p226
        %p456 = pneg %p250
        %p457 = pneg %p247
        %p458 = pneg %p271
        %p459 = pneg %p268
        %p460 = pneg %p292
        %p461 = pneg %p289
        %p462 = pneg %p313
        %p463 = pneg %p310
        %p464 = pneg %p334
        %p465 = pneg %p331
        %p466 = pneg %p362
        %p467 = pneg %p359
        %s468 = sand.u32 %s349, 1
        %s469 = scalar_lea.sflag [#allocation5], %s468
        %s470 = sand.u32 %s349, 1
        %s471 = smul.addr %s470, 8
        %s472 = scalar_lea.vmem [#allocation4], %s471
        %p473 = scmp.lt.s32.totalorder %s32, 1
        %s474 = scalar_select %p473, %s32, 1
        %s475 = smul.addr %s474, 8
        %s476 = scalar_lea.vmem %s0, %s475
        %v478 = vld [vmem:[%s6] sm:$0x1]
        %v479 = vld [vmem:[%s7] sm:$0x1]
        %p480 = scmp.eq.s32.totalorder %s33, 0
        // Predicated region
        $region77: #{tpu_custom_call.1} parent=75 // pred_check
          %p481 = pneg %p480
        $region78: #{tpu_custom_call.1} parent=75 // pred_check_branch
          %483 = sbr.rel (%p481) target = $region80
        $region79: #{tpu_custom_call.1} parent=75 // pred_region
          %v484 = vld [vmem:[%s476] sm:$0xff]
          %vm485 = vcmask 261120
          %v486 = vsel %vm485, %v484, 0.0
          %487 = vadd.xlane.f32.xlu0 %v486
          %v488 = vpop.xlane.xlu0 %487
          %v489 = vrcp.pop 32.0
          %v490 = vmul.f32 %v488, %v489
          %v491 = vsub.f32 %v484, %v490
          %v492 = vmul.f32 %v491, %v491
          %v493 = vsel %vm485, %v492, 0.0
          %494 = vadd.xlane.f32.xlu0 %v493
          %v495 = vpop.xlane.xlu0 %494
          %v496 = vmul.f32 %v495, %v489
          %v497 = vadd.f32 %v496, 1e-05
          %v498 = vrsqrt.pop %v497
          %v499 = vmul.f32 %v491, %v498
          %v501 = vlaneseq
          %v502 = vshrl.u32 %v501, 7
          %v503 = vsub.s32 0, %v502
          %v504 = vrot.slane %v478, %v503
          %v506 = vmul.f32 %v499, %v504
          %v508 = vlaneseq
          %v509 = vshrl.u32 %v508, 7
          %v510 = vsub.s32 0, %v509
          %v511 = vrot.slane %v479, %v510
          %v513 = vadd.f32 %v506, %v511
          %v514 = vpack.c.bf16 %v513, %v513
          loop: start=0, step=1, limit=4
          $region81: #{tpu_custom_call.1} parent=79 // loop_pre_header
            _
          $region82: #{tpu_custom_call.1} parent=79 // loop_header
            %s516 = sphi 0, %s520
            %p517 = scmp.ge.s32.totalorder %s516, 4
          $region83: #{tpu_custom_call.1} parent=79 // loop_header_branch
            %519 = sbr.rel (%p517) target = $region87
          $region84: #{tpu_custom_call.1} parent=79 // loop_body
            %s521 = smul.u32 %s516, 4
            %s522 = smul.addr %s521, 4
            %s523 = scalar_lea.vmem %s2, %s522
            %v524 = vld [vmem:[%s523] sm:$0xf]
            %v525 = vld [vmem:[%s523 + $0x4] sm:$0xf]
            %v526 = vld [vmem:[%s523 + $0x8] sm:$0xf]
            %v527 = vld [vmem:[%s523 + $0xc] sm:$0xf]
            %v532 = vunpack.c.l.b16 %v524
            %v533 = vunpack.c.l.b16 %v525
            %v534 = vunpack.c.l.b16 %v526
            %v535 = vunpack.c.l.b16 %v527
            %v536 = vpack.c.b16 %v533, %v532
            %v537 = vpack.c.b16 %v535, %v534
            %v541 = vsel %vm485, %v514, 0
            %543 = vmatprep.subr.bf16.mxu0 0
            %544 = vmatpush1.bf16.msra.mxu0 %v536
            %545 = vmatprep.subr.bf16.mxu0 0
            %546 = vmatpush1.bf16.msra.mxu0 %v537
            %547 = vmatprep.subr.bf16.mxu0 0
            %548 = vmatpush1.bf16.msra.mxu0 0
            %549 = vmatprep.subr.bf16.mxu0 0
            %550 = vmatpush1.bf16.msra.mxu0 0
            %551 = vmatprep.subr.bf16.mxu0 0
            %552 = vmatpush1.bf16.msra.mxu0 0
            %553 = vmatprep.subr.bf16.mxu0 0
            %554 = vmatpush1.bf16.msra.mxu0 0
            %555 = vmatprep.subr.bf16.mxu0 0
            %556 = vmatpush1.bf16.msra.mxu0 0
            %557 = vmatprep.subr.bf16.mxu0 0
            %558 = vmatpush1.bf16.msra.mxu0 0
            %559 = vmatprep.subr.bf16.mxu0 0
            %560 = vmatpush1.bf16.msra.mxu0 0
            %561 = vmatprep.subr.bf16.mxu0 0
            %562 = vmatpush1.bf16.msra.mxu0 0
            %563 = vmatprep.subr.bf16.mxu0 0
            %564 = vmatpush1.bf16.msra.mxu0 0
            %565 = vmatprep.subr.bf16.mxu0 0
            %566 = vmatpush1.bf16.msra.mxu0 0
            %567 = vmatprep.subr.bf16.mxu0 0
            %568 = vmatpush1.bf16.msra.mxu0 0
            %569 = vmatprep.subr.bf16.mxu0 0
            %570 = vmatpush1.bf16.msra.mxu0 0
            %571 = vmatprep.subr.bf16.mxu0 0
            %572 = vmatpush1.bf16.msra.mxu0 0
            %573 = vmatprep.subr.bf16.mxu0 0
            %574 = vmatpush1.bf16.msra.mxu0 0
            %575 = vmatprep.mubr.bf16.mxu0 0
            %576 = vmatmul.mubr.bf16.gmra.mrb[0].mxu0 %v541
            %v577 = vpop.f32.mrb[0].mxu0
            %v578 = vadd.f32 0.0, %v577
            %v579 = vpop.f32.mrb[0].mxu0
            %v580 = vpop.f32.mrb[0].mxu0
            %v581 = vpop.f32.mrb[0].mxu0
            %582 = vdwg.mxu0
            %v583 = vpack.c.bf16 %v578, %v578
            %s584 = smul.addr %s516, 4
            %s585 = scalar_lea.vmem [#allocation2], %s584
            %vm586 = vcmask 60416
            %587 = vst.msk [vmem:[%s585] sm:$0xf] %vm586, %v583
            %s588 = smul.addr %s521, 4
            %s589 = scalar_lea.vmem %s3, %s588
            %v590 = vld [vmem:[%s589] sm:$0xf]
            %v591 = vld [vmem:[%s589 + $0x4] sm:$0xf]
            %v592 = vld [vmem:[%s589 + $0x8] sm:$0xf]
            %v593 = vld [vmem:[%s589 + $0xc] sm:$0xf]
            %v598 = vunpack.c.l.b16 %v590
            %v599 = vunpack.c.l.b16 %v591
            %v600 = vunpack.c.l.b16 %v592
            %v601 = vunpack.c.l.b16 %v593
            %v602 = vpack.c.b16 %v599, %v598
            %v603 = vpack.c.b16 %v601, %v600
            %606 = vmatprep.subr.bf16.mxu0 0
            %607 = vmatpush1.bf16.msra.mxu0 %v602
            %608 = vmatprep.subr.bf16.mxu0 0
            %609 = vmatpush1.bf16.msra.mxu0 %v603
            %610 = vmatprep.subr.bf16.mxu0 0
            %611 = vmatpush1.bf16.msra.mxu0 0
            %612 = vmatprep.subr.bf16.mxu0 0
            %613 = vmatpush1.bf16.msra.mxu0 0
            %614 = vmatprep.subr.bf16.mxu0 0
            %615 = vmatpush1.bf16.msra.mxu0 0
            %616 = vmatprep.subr.bf16.mxu0 0
            %617 = vmatpush1.bf16.msra.mxu0 0
            %618 = vmatprep.subr.bf16.mxu0 0
            %619 = vmatpush1.bf16.msra.mxu0 0
            %620 = vmatprep.subr.bf16.mxu0 0
            %621 = vmatpush1.bf16.msra.mxu0 0
            %622 = vmatprep.subr.bf16.mxu0 0
            %623 = vmatpush1.bf16.msra.mxu0 0
            %624 = vmatprep.subr.bf16.mxu0 0
            %625 = vmatpush1.bf16.msra.mxu0 0
            %626 = vmatprep.subr.bf16.mxu0 0
            %627 = vmatpush1.bf16.msra.mxu0 0
            %628 = vmatprep.subr.bf16.mxu0 0
            %629 = vmatpush1.bf16.msra.mxu0 0
            %630 = vmatprep.subr.bf16.mxu0 0
            %631 = vmatpush1.bf16.msra.mxu0 0
            %632 = vmatprep.subr.bf16.mxu0 0
            %633 = vmatpush1.bf16.msra.mxu0 0
            %634 = vmatprep.subr.bf16.mxu0 0
            %635 = vmatpush1.bf16.msra.mxu0 0
            %636 = vmatprep.subr.bf16.mxu0 0
            %637 = vmatpush1.bf16.msra.mxu0 0
            %638 = vmatprep.mubr.bf16.mxu0 0
            %639 = vmatmul.mubr.bf16.gmra.mrb[0].mxu0 %v541
            %v640 = vpop.f32.mrb[0].mxu0
            %v641 = vadd.f32 0.0, %v640
            %v642 = vpop.f32.mrb[0].mxu0
            %v643 = vpop.f32.mrb[0].mxu0
            %v644 = vpop.f32.mrb[0].mxu0
            %645 = vdwg.mxu0
            %v646 = vpack.c.bf16 %v641, %v641
            %s647 = smul.addr %s516, 4
            %s648 = scalar_lea.vmem [#allocation3], %s647
            %649 = vst.msk [vmem:[%s648] sm:$0xf] %vm586, %v646
          $region85: #{tpu_custom_call.1} parent=79 // loop_footer
            %s520 = sadd.s32 1, %s516
          $region86: #{tpu_custom_call.1} parent=79 // loop_footer_branch
            %515 = sbr.rel target = $region82
          $region87: #{tpu_custom_call.1} parent=79 // loop_exit
            _
        $region80: #{tpu_custom_call.1} parent=75 // pred_fallthru
          _
        %s650 = smul.u32 %s33, 8
        %s651 = scalar_lea.vmem %s476, %s650
        %v652 = vld [vmem:[%s651] sm:$0xff]
        %vm653 = vcmask 261120
        %v654 = vsel %vm653, %v652, 0.0
        %655 = vadd.xlane.f32.xlu0 %v654
        %v656 = vpop.xlane.xlu0 %655
        %v657 = vrcp.pop 32.0
        %v658 = vmul.f32 %v656, %v657
        %v659 = vsub.f32 %v652, %v658
        %v660 = vmul.f32 %v659, %v659
        %v661 = vsel %vm653, %v660, 0.0
        %662 = vadd.xlane.f32.xlu0 %v661
        %v663 = vpop.xlane.xlu0 %662
        %v664 = vmul.f32 %v663, %v657
        %v665 = vadd.f32 %v664, 1e-05
        %v666 = vrsqrt.pop %v665
        %v667 = vmul.f32 %v659, %v666
        %v669 = vlaneseq
        %v670 = vshrl.u32 %v669, 7
        %v671 = vsub.s32 0, %v670
        %v672 = vrot.slane %v478, %v671
        %v674 = vmul.f32 %v667, %v672
        %v676 = vlaneseq
        %v677 = vshrl.u32 %v676, 7
        %v678 = vsub.s32 0, %v677
        %v679 = vrot.slane %v479, %v678
        %v681 = vadd.f32 %v674, %v679
        %v682 = vpack.c.bf16 %v681, %v681
        loop: start=0, step=1, limit=4
        $region88: #{tpu_custom_call.1} parent=75 // loop_pre_header
          _
        $region89: #{tpu_custom_call.1} parent=75 // loop_header
          %s684 = sphi 0, %s688
          %p685 = scmp.ge.s32.totalorder %s684, 4
          %v689 = vphi 0.0, %v916
        $region90: #{tpu_custom_call.1} parent=75 // loop_header_branch
          %687 = sbr.rel (%p685) target = $region94
        $region91: #{tpu_custom_call.1} parent=75 // loop_body
          %s690 = smul.u32 %s684, 4
          %s691 = smul.addr %s690, 4
          %s692 = scalar_lea.vmem %s1, %s691
          %v693 = vld [vmem:[%s692] sm:$0xf]
          %v694 = vld [vmem:[%s692 + $0x4] sm:$0xf]
          %v695 = vld [vmem:[%s692 + $0x8] sm:$0xf]
          %v696 = vld [vmem:[%s692 + $0xc] sm:$0xf]
          %v701 = vunpack.c.l.b16 %v693
          %v702 = vunpack.c.l.b16 %v694
          %v703 = vunpack.c.l.b16 %v695
          %v704 = vunpack.c.l.b16 %v696
          %v705 = vpack.c.b16 %v702, %v701
          %v706 = vpack.c.b16 %v704, %v703
          %v710 = vsel %vm653, %v682, 0
          %712 = vmatprep.subr.bf16.mxu0 0
          %713 = vmatpush1.bf16.msra.mxu0 %v705
          %714 = vmatprep.subr.bf16.mxu0 0
          %715 = vmatpush1.bf16.msra.mxu0 %v706
          %716 = vmatprep.subr.bf16.mxu0 0
          %717 = vmatpush1.bf16.msra.mxu0 0
          %718 = vmatprep.subr.bf16.mxu0 0
          %719 = vmatpush1.bf16.msra.mxu0 0
          %720 = vmatprep.subr.bf16.mxu0 0
          %721 = vmatpush1.bf16.msra.mxu0 0
          %722 = vmatprep.subr.bf16.mxu0 0
          %723 = vmatpush1.bf16.msra.mxu0 0
          %724 = vmatprep.subr.bf16.mxu0 0
          %725 = vmatpush1.bf16.msra.mxu0 0
          %726 = vmatprep.subr.bf16.mxu0 0
          %727 = vmatpush1.bf16.msra.mxu0 0
          %728 = vmatprep.subr.bf16.mxu0 0
          %729 = vmatpush1.bf16.msra.mxu0 0
          %730 = vmatprep.subr.bf16.mxu0 0
          %731 = vmatpush1.bf16.msra.mxu0 0
          %732 = vmatprep.subr.bf16.mxu0 0
          %733 = vmatpush1.bf16.msra.mxu0 0
          %734 = vmatprep.subr.bf16.mxu0 0
          %735 = vmatpush1.bf16.msra.mxu0 0
          %736 = vmatprep.subr.bf16.mxu0 0
          %737 = vmatpush1.bf16.msra.mxu0 0
          %738 = vmatprep.subr.bf16.mxu0 0
          %739 = vmatpush1.bf16.msra.mxu0 0
          %740 = vmatprep.subr.bf16.mxu0 0
          %741 = vmatpush1.bf16.msra.mxu0 0
          %742 = vmatprep.subr.bf16.mxu0 0
          %743 = vmatpush1.bf16.msra.mxu0 0
          %744 = vmatprep.mubr.bf16.mxu0 0
          %745 = vmatmul.mubr.bf16.gmra.mrb[0].mxu0 %v710
          %v746 = vpop.f32.mrb[0].mxu0
          %v747 = vadd.f32 0.0, %v746
          %v748 = vpop.f32.mrb[0].mxu0
          %v749 = vpop.f32.mrb[0].mxu0
          %v750 = vpop.f32.mrb[0].mxu0
          %751 = vdwg.mxu0
          %v752 = vmul.f32 %v747, 0.35355338
          %v753 = vpack.c.bf16 %v752, %v752
          %s754 = smul.addr %s684, 4
          %s755 = scalar_lea.vmem [#allocation2], %s754
          %v756 = vld [vmem:[%s755] sm:$0xf]
          %s757 = smul.addr %s684, 4
          %s758 = scalar_lea.vmem [#allocation3], %s757
          %v759 = vld [vmem:[%s758] sm:$0xf]
          %vm760 = vcmask 64512
          %v762 = vsel %vm760, %v753, 0
          %v765 = vsel %vm760, %v756, 0
          %767 = vmatprep.subr.bf16.mxu0 0
          %768 = vmatpush1.bf16.xpose.msra.mxu0 %v765
          %769 = vmatprep.subr.bf16.mxu0 0
          %770 = vmatpush1.bf16.xpose.msra.mxu0 0
          %771 = vmatprep.subr.bf16.mxu0 0
          %772 = vmatpush1.bf16.xpose.msra.mxu0 0
          %773 = vmatprep.subr.bf16.mxu0 0
          %774 = vmatpush1.bf16.xpose.msra.mxu0 0
          %775 = vmatprep.subr.bf16.mxu0 0
          %776 = vmatpush1.bf16.xpose.msra.mxu0 0
          %777 = vmatprep.subr.bf16.mxu0 0
          %778 = vmatpush1.bf16.xpose.msra.mxu0 0
          %779 = vmatprep.subr.bf16.mxu0 0
          %780 = vmatpush1.bf16.xpose.msra.mxu0 0
          %781 = vmatprep.subr.bf16.mxu0 0
          %782 = vmatpush1.bf16.xpose.msra.mxu0 0
          %783 = vmatprep.subr.bf16.mxu0 0
          %784 = vmatpush1.bf16.xpose.msra.mxu0 0
          %785 = vmatprep.subr.bf16.mxu0 0
          %786 = vmatpush1.bf16.xpose.msra.mxu0 0
          %787 = vmatprep.subr.bf16.mxu0 0
          %788 = vmatpush1.bf16.xpose.msra.mxu0 0
          %789 = vmatprep.subr.bf16.mxu0 0
          %790 = vmatpush1.bf16.xpose.msra.mxu0 0
          %791 = vmatprep.subr.bf16.mxu0 0
          %792 = vmatpush1.bf16.xpose.msra.mxu0 0
          %793 = vmatprep.subr.bf16.mxu0 0
          %794 = vmatpush1.bf16.xpose.msra.mxu0 0
          %795 = vmatprep.subr.bf16.mxu0 0
          %796 = vmatpush1.bf16.xpose.msra.mxu0 0
          %797 = vmatprep.subr.bf16.mxu0 0
          %798 = vmatpush1.bf16.xpose.msra.mxu0 0
          %799 = vmatprep.mubr.bf16.mxu0 0
          %800 = vmatmul.mubr.bf16.gmra.mrb[0].mxu0 %v762
          %v801 = vpop.f32.mrb[0].mxu0
          %v802 = vadd.f32 0.0, %v801
          %v803 = vpop.f32.mrb[0].mxu0
          %v804 = vpop.f32.mrb[0].mxu0
          %v805 = vpop.f32.mrb[0].mxu0
          %806 = vdwg.mxu0
          %v807 = vsel %vm760, %v802, -inf
          %808 = vmax.xlane.f32.xlu0 %v807
          %v809 = vpop.xlane.xlu0 %808
          %v810 = vsub.f32 %v802, %v809
          %v811 = vmul.f32 %v810, 1.442695
          %v812 = vpow.pop %v811
          %v813 = vsel %vm760, %v812, 0.0
          %814 = vadd.xlane.f32.xlu0 %v813
          %v815 = vpop.xlane.xlu0 %814
          %v816 = vpack.c.bf16 %v812, %v812
          %v818 = vsel %vm760, %v816, 0
          %vm820 = vcmask 1043456
          %v822 = vsel %vm820, %v759, 0
          %824 = vmatprep.subr.bf16.mxu0 0
          %825 = vmatpush1.bf16.msra.mxu0 %v822
          %826 = vmatprep.subr.bf16.mxu0 0
          %827 = vmatpush1.bf16.msra.mxu0 0
          %828 = vmatprep.subr.bf16.mxu0 0
          %829 = vmatpush1.bf16.msra.mxu0 0
          %830 = vmatprep.subr.bf16.mxu0 0
          %831 = vmatpush1.bf16.msra.mxu0 0
          %832 = vmatprep.subr.bf16.mxu0 0
          %833 = vmatpush1.bf16.msra.mxu0 0
          %834 = vmatprep.subr.bf16.mxu0 0
          %835 = vmatpush1.bf16.msra.mxu0 0
          %836 = vmatprep.subr.bf16.mxu0 0
          %837 = vmatpush1.bf16.msra.mxu0 0
          %838 = vmatprep.subr.bf16.mxu0 0
          %839 = vmatpush1.bf16.msra.mxu0 0
          %840 = vmatprep.subr.bf16.mxu0 0
          %841 = vmatpush1.bf16.msra.mxu0 0
          %842 = vmatprep.subr.bf16.mxu0 0
          %843 = vmatpush1.bf16.msra.mxu0 0
          %844 = vmatprep.subr.bf16.mxu0 0
          %845 = vmatpush1.bf16.msra.mxu0 0
          %846 = vmatprep.subr.bf16.mxu0 0
          %847 = vmatpush1.bf16.msra.mxu0 0
          %848 = vmatprep.subr.bf16.mxu0 0
          %849 = vmatpush1.bf16.msra.mxu0 0
          %850 = vmatprep.subr.bf16.mxu0 0
          %851 = vmatpush1.bf16.msra.mxu0 0
          %852 = vmatprep.subr.bf16.mxu0 0
          %853 = vmatpush1.bf16.msra.mxu0 0
          %854 = vmatprep.subr.bf16.mxu0 0
          %855 = vmatpush1.bf16.msra.mxu0 0
          %856 = vmatprep.mubr.bf16.mxu0 0
          %857 = vmatmul.mubr.bf16.gmra.mrb[0].mxu0 %v818
          %v858 = vpop.f32.mrb[0].mxu0
          %v859 = vadd.f32 0.0, %v858
          %v860 = vpop.f32.mrb[0].mxu0
          %v861 = vpop.f32.mrb[0].mxu0
          %v862 = vpop.f32.mrb[0].mxu0
          %863 = vdwg.mxu0
          %v864 = vrcp.pop %v815
          %v865 = vmul.f32 %v859, %v864
          %v866 = vpack.c.bf16 %v865, %v865
          %s867 = smul.addr %s684, 4
          %s868 = scalar_lea.vmem %s4, %s867
          %v869 = vld [vmem:[%s868] sm:$0xf]
          %v871 = vsel %vm760, %v866, 0
          %v874 = vsel %vm820, %v869, 0
          %876 = vmatprep.subr.bf16.mxu0 0
          %877 = vmatpush1.bf16.msra.mxu0 %v874
          %878 = vmatprep.subr.bf16.mxu0 0
          %879 = vmatpush1.bf16.msra.mxu0 0
          %880 = vmatprep.subr.bf16.mxu0 0
          %881 = vmatpush1.bf16.msra.mxu0 0
          %882 = vmatprep.subr.bf16.mxu0 0
          %883 = vmatpush1.bf16.msra.mxu0 0
          %884 = vmatprep.subr.bf16.mxu0 0
          %885 = vmatpush1.bf16.msra.mxu0 0
          %886 = vmatprep.subr.bf16.mxu0 0
          %887 = vmatpush1.bf16.msra.mxu0 0
          %888 = vmatprep.subr.bf16.mxu0 0
          %889 = vmatpush1.bf16.msra.mxu0 0
          %890 = vmatprep.subr.bf16.mxu0 0
          %891 = vmatpush1.bf16.msra.mxu0 0
          %892 = vmatprep.subr.bf16.mxu0 0
          %893 = vmatpush1.bf16.msra.mxu0 0
          %894 = vmatprep.subr.bf16.mxu0 0
          %895 = vmatpush1.bf16.msra.mxu0 0
          %896 = vmatprep.subr.bf16.mxu0 0
          %897 = vmatpush1.bf16.msra.mxu0 0
          %898 = vmatprep.subr.bf16.mxu0 0
          %899 = vmatpush1.bf16.msra.mxu0 0
          %900 = vmatprep.subr.bf16.mxu0 0
          %901 = vmatpush1.bf16.msra.mxu0 0
          %902 = vmatprep.subr.bf16.mxu0 0
          %903 = vmatpush1.bf16.msra.mxu0 0
          %904 = vmatprep.subr.bf16.mxu0 0
          %905 = vmatpush1.bf16.msra.mxu0 0
          %906 = vmatprep.subr.bf16.mxu0 0
          %907 = vmatpush1.bf16.msra.mxu0 0
          %908 = vmatprep.mubr.bf16.mxu0 0
          %909 = vmatmul.mubr.bf16.gmra.mrb[0].mxu0 %v871
          %v910 = vpop.f32.mrb[0].mxu0
          %v911 = vadd.f32 0.0, %v910
          %v912 = vpop.f32.mrb[0].mxu0
          %v913 = vpop.f32.mrb[0].mxu0
          %v914 = vpop.f32.mrb[0].mxu0
          %915 = vdwg.mxu0
          %v916 = vadd.f32 %v689, %v911
        $region92: #{tpu_custom_call.1} parent=75 // loop_footer
          %s688 = sadd.s32 1, %s684
        $region93: #{tpu_custom_call.1} parent=75 // loop_footer_branch
          %683 = sbr.rel target = $region89
        $region94: #{tpu_custom_call.1} parent=75 // loop_exit
          _
        %v917 = vld [vmem:[%s5] sm:$0x1]
        %v919 = vlaneseq
        %v920 = vshrl.u32 %v919, 7
        %v921 = vsub.s32 0, %v920
        %v922 = vrot.slane %v917, %v921
        %v924 = vadd.f32 %v689, %v922
        %v925 = vadd.f32 %v652, %v924
        %v926 = vld [vmem:[%s8] sm:$0x1]
        %v927 = vld [vmem:[%s9] sm:$0x1]
        %v928 = vsel %vm653, %v925, 0.0
        %929 = vadd.xlane.f32.xlu0 %v928
        %v930 = vpop.xlane.xlu0 %929
        %v931 = vmul.f32 %v930, %v657
        %v932 = vsub.f32 %v925, %v931
        %v933 = vmul.f32 %v932, %v932
        %v934 = vsel %vm653, %v933, 0.0
        %935 = vadd.xlane.f32.xlu0 %v934
        %v936 = vpop.xlane.xlu0 %935
        %v937 = vmul.f32 %v936, %v657
        %v938 = vadd.f32 %v937, 1e-05
        %v939 = vrsqrt.pop %v938
        %v940 = vmul.f32 %v932, %v939
        %v942 = vlaneseq
        %v943 = vshrl.u32 %v942, 7
        %v944 = vsub.s32 0, %v943
        %v945 = vrot.slane %v926, %v944
        %v947 = vmul.f32 %v940, %v945
        %v949 = vlaneseq
        %v950 = vshrl.u32 %v949, 7
        %v951 = vsub.s32 0, %v950
        %v952 = vrot.slane %v927, %v951
        %v954 = vadd.f32 %v947, %v952
        %v955 = vpack.c.bf16 %v954, %v954
        %v956 = vld [vmem:[%s10] sm:$0xf]
        %v957 = vld [vmem:[%s10 + $0x4] sm:$0xf]
        %v958 = vld [vmem:[%s10 + $0x8] sm:$0xf]
        %v959 = vld [vmem:[%s10 + $0xc] sm:$0xf]
        %v960 = vld [vmem:[%s11] sm:$0x1]
        %v962 = vlaneseq
        %v963 = vshrl.u32 %v962, 7
        %v964 = vsub.s32 0, %v963
        %v965 = vrot.slane %v960, %v964
        %v971 = vunpack.c.l.b16 %v956
        %v972 = vunpack.c.l.b16 %v957
        %v973 = vunpack.c.l.b16 %v958
        %v974 = vunpack.c.l.b16 %v959
        %v975 = vpack.c.b16 %v972, %v971
        %v976 = vpack.c.b16 %v974, %v973
        %v980 = vsel %vm653, %v955, 0
        %982 = vmatprep.subr.bf16.mxu0 0
        %983 = vmatpush1.bf16.msra.mxu0 %v975
        %984 = vmatprep.subr.bf16.mxu0 0
        %985 = vmatpush1.bf16.msra.mxu0 %v976
        %986 = vmatprep.subr.bf16.mxu0 0
        %987 = vmatpush1.bf16.msra.mxu0 0
        %988 = vmatprep.subr.bf16.mxu0 0
        %989 = vmatpush1.bf16.msra.mxu0 0
        %990 = vmatprep.subr.bf16.mxu0 0
        %991 = vmatpush1.bf16.msra.mxu0 0
        %992 = vmatprep.subr.bf16.mxu0 0
        %993 = vmatpush1.bf16.msra.mxu0 0
        %994 = vmatprep.subr.bf16.mxu0 0
        %995 = vmatpush1.bf16.msra.mxu0 0
        %996 = vmatprep.subr.bf16.mxu0 0
        %997 = vmatpush1.bf16.msra.mxu0 0
        %998 = vmatprep.subr.bf16.mxu0 0
        %999 = vmatpush1.bf16.msra.mxu0 0
        %1000 = vmatprep.subr.bf16.mxu0 0
        %1001 = vmatpush1.bf16.msra.mxu0 0
        %1002 = vmatprep.subr.bf16.mxu0 0
        %1003 = vmatpush1.bf16.msra.mxu0 0
        %1004 = vmatprep.subr.bf16.mxu0 0
        %1005 = vmatpush1.bf16.msra.mxu0 0
        %1006 = vmatprep.subr.bf16.mxu0 0
        %1007 = vmatpush1.bf16.msra.mxu0 0
        %1008 = vmatprep.subr.bf16.mxu0 0
        %1009 = vmatpush1.bf16.msra.mxu0 0
        %1010 = vmatprep.subr.bf16.mxu0 0
        %1011 = vmatpush1.bf16.msra.mxu0 0
        %1012 = vmatprep.subr.bf16.mxu0 0
        %1013 = vmatpush1.bf16.msra.mxu0 0
        %1014 = vmatprep.mubr.bf16.mxu0 0
        %1015 = vmatmul.mubr.bf16.gmra.mrb[0].mxu0 %v980
        %v1016 = vpop.f32.mrb[0].mxu0
        %v1017 = vadd.f32 %v965, %v1016
        %v1018 = vpop.f32.mrb[0].mxu0
        %v1019 = vpop.f32.mrb[0].mxu0
        %v1020 = vpop.f32.mrb[0].mxu0
        %1021 = vdwg.mxu0
        %v1022 = vmax.f32 %v1017, 0.0
        %v1023 = vpack.c.bf16 %v1022, %v1022
        %v1024 = vld [vmem:[%s12] sm:$0xf]
        %v1025 = vld [vmem:[%s12 + $0x4] sm:$0xf]
        %v1026 = vld [vmem:[%s12 + $0x8] sm:$0xf]
        %v1027 = vld [vmem:[%s12 + $0xc] sm:$0xf]
        %v1028 = vld [vmem:[%s12 + $0x10] sm:$0xf]
        %v1029 = vld [vmem:[%s12 + $0x14] sm:$0xf]
        %v1030 = vld [vmem:[%s12 + $0x18] sm:$0xf]
        %v1031 = vld [vmem:[%s12 + $0x1c] sm:$0xf]
        %v1032 = vld [vmem:[%s12 + $0x20] sm:$0xf]
        %v1033 = vld [vmem:[%s12 + $0x24] sm:$0xf]
        %v1034 = vld [vmem:[%s12 + $0x28] sm:$0xf]
        %v1035 = vld [vmem:[%s12 + $0x2c] sm:$0xf]
        %v1036 = vld [vmem:[%s12 + $0x30] sm:$0xf]
        %v1037 = vld [vmem:[%s12 + $0x34] sm:$0xf]
        %v1038 = vld [vmem:[%s12 + $0x38] sm:$0xf]
        %v1039 = vld [vmem:[%s12 + $0x3c] sm:$0xf]
        %v1040 = vld [vmem:[%s13] sm:$0x1]
        %v1042 = vlaneseq
        %v1043 = vshrl.u32 %v1042, 7
        %v1044 = vsub.s32 0, %v1043
        %v1045 = vrot.slane %v1040, %v1044
        %v1063 = vunpack.c.l.b16 %v1024
        %v1064 = vunpack.c.l.b16 %v1025
        %v1065 = vunpack.c.l.b16 %v1026
        %v1066 = vunpack.c.l.b16 %v1027
        %v1067 = vunpack.c.l.b16 %v1028
        %v1068 = vunpack.c.l.b16 %v1029
        %v1069 = vunpack.c.l.b16 %v1030
        %v1070 = vunpack.c.l.b16 %v1031
        %v1071 = vunpack.c.l.b16 %v1032
        %v1072 = vunpack.c.l.b16 %v1033
        %v1073 = vunpack.c.l.b16 %v1034
        %v1074 = vunpack.c.l.b16 %v1035
        %v1075 = vunpack.c.l.b16 %v1036
        %v1076 = vunpack.c.l.b16 %v1037
        %v1077 = vunpack.c.l.b16 %v1038
        %v1078 = vunpack.c.l.b16 %v1039
        %v1079 = vpack.c.b16 %v1064, %v1063
        %v1080 = vpack.c.b16 %v1066, %v1065
        %v1081 = vpack.c.b16 %v1068, %v1067
        %v1082 = vpack.c.b16 %v1070, %v1069
        %v1083 = vpack.c.b16 %v1072, %v1071
        %v1084 = vpack.c.b16 %v1074, %v1073
        %v1085 = vpack.c.b16 %v1076, %v1075
        %v1086 = vpack.c.b16 %v1078, %v1077
        %1095 = vmatprep.subr.bf16.mxu0 0
        %1096 = vmatpush1.bf16.msra.mxu0 %v1079
        %1097 = vmatprep.subr.bf16.mxu0 0
        %1098 = vmatpush1.bf16.msra.mxu0 %v1080
        %1099 = vmatprep.subr.bf16.mxu0 0
        %1100 = vmatpush1.bf16.msra.mxu0 %v1081
        %1101 = vmatprep.subr.bf16.mxu0 0
        %1102 = vmatpush1.bf16.msra.mxu0 %v1082
        %1103 = vmatprep.subr.bf16.mxu0 0
        %1104 = vmatpush1.bf16.msra.mxu0 %v1083
        %1105 = vmatprep.subr.bf16.mxu0 0
        %1106 = vmatpush1.bf16.msra.mxu0 %v1084
        %1107 = vmatprep.subr.bf16.mxu0 0
        %1108 = vmatpush1.bf16.msra.mxu0 %v1085
        %1109 = vmatprep.subr.bf16.mxu0 0
        %1110 = vmatpush1.bf16.msra.mxu0 %v1086
        %1111 = vmatprep.subr.bf16.mxu0 0
        %1112 = vmatpush1.bf16.msra.mxu0 0
        %1113 = vmatprep.subr.bf16.mxu0 0
        %1114 = vmatpush1.bf16.msra.mxu0 0
        %1115 = vmatprep.subr.bf16.mxu0 0
        %1116 = vmatpush1.bf16.msra.mxu0 0
        %1117 = vmatprep.subr.bf16.mxu0 0
        %1118 = vmatpush1.bf16.msra.mxu0 0
        %1119 = vmatprep.subr.bf16.mxu0 0
        %1120 = vmatpush1.bf16.msra.mxu0 0
        %1121 = vmatprep.subr.bf16.mxu0 0
        %1122 = vmatpush1.bf16.msra.mxu0 0
        %1123 = vmatprep.subr.bf16.mxu0 0
        %1124 = vmatpush1.bf16.msra.mxu0 0
        %1125 = vmatprep.subr.bf16.mxu0 0
        %1126 = vmatpush1.bf16.msra.mxu0 0
        %1127 = vmatprep.mubr.bf16.mxu0 0
        %1128 = vmatmul.mubr.bf16.gmra.mrb[0].mxu0 %v1023
        %v1129 = vpop.f32.mrb[0].mxu0
        %v1130 = vadd.f32 %v1045, %v1129
        %v1131 = vpop.f32.mrb[0].mxu0
        %v1132 = vpop.f32.mrb[0].mxu0
        %v1133 = vpop.f32.mrb[0].mxu0
        %1134 = vdwg.mxu0
        %v1135 = vadd.f32 %v925, %v1130
        %1136 = vst.msk [vmem:[%s472] sm:$0xff] %vm653, %v1135
        %s1137 = sand.u32 %s349, 1
        %s1138 = scalar_lea.sflag [#allocation5], %s1137
        %s1139 = sand.u32 %s349, 1
        %s1140 = smul.addr %s1139, 8
        %s1141 = scalar_lea.vmem [#allocation4], %s1140
        // Predicated region
        $region95: #{tpu_custom_call.1} parent=75 // pred_check
          %p1142 = pneg %p359
        $region96: #{tpu_custom_call.1} parent=75 // pred_check_branch
          %1144 = sbr.rel (%p1142) target = $region98
        $region97: #{tpu_custom_call.1} parent=75 // pred_region
          %s1146 = ssub.s32 128, 128
          %1147 = vsyncadd %s1138, %s1146
          %s1148 = sadd.s32 %s33, %s32
          %s1149 = smul.addr %s1148, 128
          %s1150 = scalar_lea.hbm %s14, %s1149
          %s1152 = sshll.u32 %s1141, 4
          %s1153 = int_to_ptr.vmem [resolvable:$true] %s1152
          %1155 = dma.vmem_to_hbm [thread:$0]  %s1153, 128, %s1150, %s1138
        $region98: #{tpu_custom_call.1} parent=75 // pred_fallthru
          _
      $region76: #{tpu_custom_call.1} parent=5 // pred_fallthru
        _
      %p1156 = scmp.le.s32.totalorder 2, %s23
      // Predicated region
      $region99: #{tpu_custom_call.1} parent=5 // pred_check
        %p1157 = pneg %p1156
      $region100: #{tpu_custom_call.1} parent=5 // pred_check_branch
        %1159 = sbr.rel (%p1157) target = $region102
      $region101: #{tpu_custom_call.1} parent=5 // pred_region
        %s1160 = ssub.s32 %s23, 2
        // Predicated region
        $region103: #{tpu_custom_call.1} parent=101 // pred_check
          %p1161 = pneg %p365
        $region104: #{tpu_custom_call.1} parent=101 // pred_check_branch
          %1163 = sbr.rel (%p1161) target = $region106
        $region105: #{tpu_custom_call.1} parent=101 // pred_region
          %s1164 = sand.u32 %s350, 1
          %s1165 = scalar_lea.sflag [#allocation5], %s1164
          %s1166 = sand.u32 %s350, 1
          %s1167 = smul.addr %s1166, 8
          %s1168 = scalar_lea.vmem [#allocation4], %s1167
          %1169 = dma.done %s1165, 128
        $region106: #{tpu_custom_call.1} parent=101 // pred_fallthru
          _
      $region102: #{tpu_custom_call.1} parent=5 // pred_fallthru
        _
    $region6: #{tpu_custom_call.1} parent=1 // loop_footer
      %s27 = sadd.s32 1, %s23
    $region7: #{tpu_custom_call.1} parent=1 // loop_footer_branch
      %22 = sbr.rel target = $region3
    $region8: #{tpu_custom_call.1} parent=1 // loop_exit
      _
    %1170 = vsyncpa [#allocation5], 1
    %s1171 = scalar_lea.sflag [#allocation5], 1
    %1172 = vsyncpa %s1171, 1

</llo_original>
